<compile_context>
chip_gen: v7x
topology: tpu7x:2x2x1
jax: 0.10.0
libtpu: 0.0.40
codegen_flags: <defaults>
</compile_context>

<pallas_src>
import functools

import jax
import jax.numpy as jnp
from jax import lax
from jax.experimental import pallas as pl
from jax.experimental.pallas import tpu as pltpu


_VMEM_LIMIT = 48 * 1024 * 1024      # > default scoped limit, < physical on v5e/v6e/v7x


# --------------------------------------------------------------------------- #
# tiling helpers
# --------------------------------------------------------------------------- #

def _pick_tile(dim, cap, align):
    """Largest multiple of `align` that divides `dim` and is <= cap, else full."""
    if dim <= cap:
        return dim
    t = (cap // align) * align
    while t >= align:
        if dim % t == 0:
            return t
        t -= align
    return dim


def _largest_divisor(dim, cap):
    for t in range(min(dim, cap), 0, -1):
        if dim % t == 0:
            return t
    return 1


# --------------------------------------------------------------------------- #
# Tiled linear:  y = x @ W + b   (bf16 operands, f32 accumulation)
# --------------------------------------------------------------------------- #

def _linear_kernel(x_ref, w_ref, b_ref, o_ref, acc_ref):
    @pl.when(pl.program_id(2) == 0)
    def _():
        acc_ref[...] = jnp.zeros_like(acc_ref)

    acc_ref[...] += jnp.dot(x_ref[...].astype(jnp.bfloat16), w_ref[...],
                            preferred_element_type=jnp.float32)

    @pl.when(pl.program_id(2) == pl.num_programs(2) - 1)
    def _():
        o_ref[...] = (acc_ref[...] + b_ref[...]).astype(o_ref.dtype)


def linear(x, w, b, *, out_dtype=jnp.float32, tm_cap=512, tn_cap=512, tk_cap=512):
    # x: (M, K), w: (K, N) bf16, b: (1, N) f32
    m, kdim = x.shape
    n = w.shape[1]
    tm = _pick_tile(m, tm_cap, 8)
    tn = _pick_tile(n, tn_cap, 128)
    tk = _pick_tile(kdim, tk_cap, 128)
    return pl.pallas_call(
        _linear_kernel,
        grid=(m // tm, n // tn, kdim // tk),
        in_specs=[pl.BlockSpec((tm, tk), lambda i, j, k: (i, k)),
                  pl.BlockSpec((tk, tn), lambda i, j, k: (k, j)),
                  pl.BlockSpec((1, tn), lambda i, j, k: (0, j))],
        out_specs=pl.BlockSpec((tm, tn), lambda i, j, k: (i, j)),
        out_shape=jax.ShapeDtypeStruct((m, n), out_dtype),
        scratch_shapes=[pltpu.VMEM((tm, tn), jnp.float32)],
        compiler_params=pltpu.CompilerParams(
            dimension_semantics=("parallel", "parallel", "arbitrary"),
            vmem_limit_bytes=_VMEM_LIMIT),
    )(x, w, b)


# --------------------------------------------------------------------------- #
# LKA (linear kernel attention) — causal, key-block tiled (flash-style)
# --------------------------------------------------------------------------- #

_LN_HALF = -0.6931471805599453


def _fmap_scaled(x):
    # (1 - 0.5**||x||) * x / max(||x||, 1e-12) ; the ones column of f_map is
    # folded into the scores as a +1 (it adds exactly 1 to every fq.fk product).
    x = x.astype(jnp.float32)
    alpha = jnp.sqrt(jnp.sum(x * x, axis=-1, keepdims=True))
    xn = x / jnp.maximum(alpha, 1e-12)
    scale = 1.0 - jnp.exp(alpha * _LN_HALF)          # 1 - 0.5**alpha
    return scale * xn


def _lka_kernel(q_ref, k_ref, v_ref, o_ref, qk_acc, qkv_acc):
    # q_ref/o_ref: (Hblk, tq, D) ; k_ref/v_ref: (Hblk, tk, D) with tq == tk.
    qi = pl.program_id(1)
    kj = pl.program_id(2)

    @pl.when(kj == 0)
    def _():
        qk_acc[...] = jnp.zeros_like(qk_acc)
        qkv_acc[...] = jnp.zeros_like(qkv_acc)

    def accumulate(diag):
        gq = _fmap_scaled(q_ref[...])
        gk = _fmap_scaled(k_ref[...])
        # s[h, i, j] = fq[h,i] . fk[h,j]  (+1.0 is the ones-column of f_map)
        s = lax.dot_general(gq.astype(jnp.bfloat16), gk.astype(jnp.bfloat16),
                            (((2,), (2,)), ((0,), (0,))),
                            preferred_element_type=jnp.float32) + 1.0
        if diag:                                      # mask only on the diagonal tile
            r = lax.broadcasted_iota(jnp.int32, s.shape, 1)
            c = lax.broadcasted_iota(jnp.int32, s.shape, 2)
            s = jnp.where(r >= c, s, 0.0)             # causal (incl. diagonal)
        qk_acc[...] += jnp.sum(s, axis=-1, keepdims=True)
        qkv_acc[...] += lax.dot_general(s.astype(jnp.bfloat16),
                                        v_ref[...].astype(jnp.bfloat16),
                                        (((2,), (1,)), ((0,), (0,))),
                                        preferred_element_type=jnp.float32)

    @pl.when(kj < qi)        # fully-unmasked key tile below the diagonal
    def _():
        accumulate(False)

    @pl.when(kj == qi)       # diagonal tile: mask + finalize this query block
    def _():
        accumulate(True)
        o_ref[...] = (qkv_acc[...] * pl.reciprocal(qk_acc[...], approx=True)
                      ).astype(o_ref.dtype)
    # kj > qi: fully masked, skipped entirely (and no K/V DMA, see index map).


def lka(q, k, v, *, head_blk_cap=8, t_cap=256):
    bh, n, d = q.shape
    hblk = _largest_divisor(bh, head_blk_cap)        # several heads per grid step
    tq = _pick_tile(n, t_cap, 8)                     # query tile == key tile
    q_spec = pl.BlockSpec((hblk, tq, d), lambda h, qi, kj: (h, qi, 0))
    # Clamp the key-block index so fully-masked steps re-use the previous block
    # (no wasted HBM fetch for the skipped upper-triangular tiles).
    kv_spec = pl.BlockSpec((hblk, tq, d),
                           lambda h, qi, kj: (h, jnp.minimum(kj, qi), 0))
    return pl.pallas_call(
        _lka_kernel,
        grid=(bh // hblk, n // tq, n // tq),
        in_specs=[q_spec, kv_spec, kv_spec],
        out_specs=pl.BlockSpec((hblk, tq, d), lambda h, qi, kj: (h, qi, 0)),
        out_shape=jax.ShapeDtypeStruct((bh, n, d), jnp.float32),
        scratch_shapes=[pltpu.VMEM((hblk, tq, 1), jnp.float32),
                        pltpu.VMEM((hblk, tq, d), jnp.float32)],
        compiler_params=pltpu.CompilerParams(
            dimension_semantics=("parallel", "parallel", "arbitrary"),
            vmem_limit_bytes=_VMEM_LIMIT),
    )(q, k, v)


# --------------------------------------------------------------------------- #
# LSTM recurrence — time axis on the grid, h/c carried in scratch
# --------------------------------------------------------------------------- #

def _sigmoid(x):
    return 0.5 * (jnp.tanh(0.5 * x) + 1.0)           # numerically stable, one EUP op


def _lstm_kernel(xg_ref, otm_ref, w_ref, o_ref, h_s, c_s, *, hid):
    # xg_ref : (Tblk, BHb, 4H) bf16  precomputed x @ W_ih + (b_ih + b_hh), gates [i,f,g,o]
    # otm_ref: (Tblk, BHb, H)  f32   time-major LKA output (for the fused residual)
    # w_ref  : (H, 4H)         bf16  concatenated recurrent weights [i,f,g,o]
    # o_ref  : (Tblk, BHb, H)  f32   = otm + lstm(otm)
    @pl.when(pl.program_id(1) == 0)                  # first time chunk: reset state
    def _():
        h_s[...] = jnp.zeros_like(h_s)
        c_s[...] = jnp.zeros_like(c_s)

    t_blk = xg_ref.shape[0]
    w = w_ref[...]
    fused = (hid % 128 == 0)                         # lane-aligned gate slices
    if not fused:
        w_gates = [w[:, g * hid:(g + 1) * hid] for g in range(4)]   # one-time slices

    def step(t, carry):
        xz = xg_ref[t].astype(jnp.float32)           # (BHb, 4H)
        hb = h_s[...].astype(jnp.bfloat16)
        if fused:
            z = xz + jnp.dot(hb, w, preferred_element_type=jnp.float32)
            zi = z[:, 0 * hid:1 * hid]
            zf = z[:, 1 * hid:2 * hid]
            zg = z[:, 2 * hid:3 * hid]
            zo = z[:, 3 * hid:4 * hid]
        else:
            zi = xz[:, 0 * hid:1 * hid] + jnp.dot(hb, w_gates[0],
                                                  preferred_element_type=jnp.float32)
            zf = xz[:, 1 * hid:2 * hid] + jnp.dot(hb, w_gates[1],
                                                  preferred_element_type=jnp.float32)
            zg = xz[:, 2 * hid:3 * hid] + jnp.dot(hb, w_gates[2],
                                                  preferred_element_type=jnp.float32)
            zo = xz[:, 3 * hid:4 * hid] + jnp.dot(hb, w_gates[3],
                                                  preferred_element_type=jnp.float32)
        i_g = _sigmoid(zi)
        f_g = _sigmoid(zf)
        g_g = jnp.tanh(zg)
        o_g = _sigmoid(zo)
        c_new = f_g * c_s[...] + i_g * g_g
        h_new = o_g * jnp.tanh(c_new)
        c_s[...] = c_new
        h_s[...] = h_new
        o_ref[t] = otm_ref[t] + h_new                # fused residual add
        return carry

    lax.fori_loop(0, t_blk, step, 0, unroll=True)


def lstm(xg, o_tm, whh, *, t_blk_cap=16, bh_cap=256):
    n, bh, four_h = xg.shape
    hid = four_h // 4
    # Fill MXU rows but keep >= 2 grid steps on the parallel axis when possible
    # (v7x has 2 TensorCores); state lives in scratch across the time axis.
    cap = min(bh_cap, max(bh // 2, 1))
    bhb = _pick_tile(bh, cap, 8)
    t_blk = _pick_tile(n, t_blk_cap, 1)
    kernel = functools.partial(_lstm_kernel, hid=hid)
    return pl.pallas_call(
        kernel,
        grid=(bh // bhb, n // t_blk),                # time axis innermost / "arbitrary"
        in_specs=[pl.BlockSpec((t_blk, bhb, four_h), lambda i, t: (t, i, 0)),
                  pl.BlockSpec((t_blk, bhb, hid), lambda i, t: (t, i, 0)),
                  pl.BlockSpec((hid, four_h), lambda i, t: (0, 0))],
        out_specs=pl.BlockSpec((t_blk, bhb, hid), lambda i, t: (t, i, 0)),
        out_shape=jax.ShapeDtypeStruct((n, bh, hid), jnp.float32),
        scratch_shapes=[pltpu.VMEM((bhb, hid), jnp.float32),    # h state
                        pltpu.VMEM((bhb, hid), jnp.float32)],   # c state
        compiler_params=pltpu.CompilerParams(
            dimension_semantics=("parallel", "arbitrary"),
            vmem_limit_bytes=_VMEM_LIMIT),
    )(xg, o_tm, whh)


# --------------------------------------------------------------------------- #
# Head: l1 -> GELU -> l2 -> LayerNorm -> (+ layer residual), row-tiled
# --------------------------------------------------------------------------- #

_SQRT_HALF = 0.7071067811865476


def _erf(x):
    # TODO(synk): exact erf (F.gelu default) approximated with the A&S 7.1.26
    # polynomial (|err| <= 1.5e-7, i.e. fp32-level) since erf may not lower in Mosaic.
    p = 0.3275911
    a1, a2, a3, a4, a5 = (0.254829592, -0.284496736, 1.421413741,
                          -1.453152027, 1.061405429)
    z = jnp.abs(x)
    t = 1.0 / (1.0 + p * z)
    poly = t * (a1 + t * (a2 + t * (a3 + t * (a4 + t * a5))))
    e = 1.0 - poly * jnp.exp(-z * z)
    return jnp.where(x >= 0, e, -e)


def _head_kernel(x_ref, r_ref, w1_ref, b1_ref, w2_ref, b2_ref, g_ref, be_ref, o_ref):
    h = jnp.dot(x_ref[...].astype(jnp.bfloat16), w1_ref[...],
                preferred_element_type=jnp.float32) + b1_ref[...]
    h = 0.5 * h * (1.0 + _erf(h * _SQRT_HALF))                  # exact-form GELU
    h = jnp.dot(h.astype(jnp.bfloat16), w2_ref[...],
                preferred_element_type=jnp.float32) + b2_ref[...]
    mu = jnp.mean(h, axis=-1, keepdims=True)
    var = jnp.mean(jnp.square(h - mu), axis=-1, keepdims=True)
    ln = (h - mu) * lax.rsqrt(var + 1e-5) * g_ref[...] + be_ref[...]
    o_ref[...] = (ln + r_ref[...]).astype(o_ref.dtype)          # fused layer residual


def head(x, resid, w1, b1, w2, b2, g, beta, *, tm_cap=512):
    m, kdim = x.shape
    hdim = w1.shape[1]
    n = w2.shape[1]
    tm = _pick_tile(m, tm_cap, 8)
    return pl.pallas_call(
        _head_kernel,
        grid=(m // tm,),
        in_specs=[pl.BlockSpec((tm, kdim), lambda i: (i, 0)),
                  pl.BlockSpec((tm, n), lambda i: (i, 0)),
                  pl.BlockSpec((kdim, hdim), lambda i: (0, 0)),
                  pl.BlockSpec((1, hdim), lambda i: (0, 0)),
                  pl.BlockSpec((hdim, n), lambda i: (0, 0)),
                  pl.BlockSpec((1, n), lambda i: (0, 0)),
                  pl.BlockSpec((1, n), lambda i: (0, 0)),
                  pl.BlockSpec((1, n), lambda i: (0, 0))],
        out_specs=pl.BlockSpec((tm, n), lambda i: (i, 0)),
        out_shape=jax.ShapeDtypeStruct((m, n), jnp.float32),
        compiler_params=pltpu.CompilerParams(
            dimension_semantics=("parallel",),
            vmem_limit_bytes=_VMEM_LIMIT),
    )(x, resid, w1, b1, w2, b2, g, beta)


# --------------------------------------------------------------------------- #
# Model glue (plain JAX: reshapes / transposes / embedding lookup)
# --------------------------------------------------------------------------- #

def lka_lstm_layer(x, p, n_h, hid_sz):
    b, s, e = x.shape
    x2 = x.reshape(b * s, e)

    # Fused Q/K/V projection (bf16 activations to halve HBM traffic).
    qkv = linear(x2, p["wqkv"], p["bqkv"], out_dtype=jnp.bfloat16)
    qkv = (qkv.reshape(b, s, 3, n_h, hid_sz)
              .transpose(2, 0, 3, 1, 4)
              .reshape(3, b * n_h, s, hid_sz))
    q, k, v = qkv[0], qkv[1], qkv[2]

    o = lka(q, k, v)                                            # (b*n_h, s, hid) f32

    # LSTM: input projection hoisted into one big tiled matmul (bias folded in);
    # the recurrence kernel only does h @ W_hh per step and fuses the residual.
    # TODO(synk): the o -> time-major and y -> token-major transposes below are
    # still materialized by XLA; folding them into LKA/LSTM out_specs would save
    # two more activation HBM round trips per layer.
    o_tm = jnp.transpose(o, (1, 0, 2))                          # (s, b*n_h, hid)
    xg = linear(o_tm.reshape(s * b * n_h, hid_sz), p["wih"], p["blstm"],
                out_dtype=jnp.bfloat16)
    xg = xg.reshape(s, b * n_h, 4 * hid_sz)                     # no transpose needed
    y_tm = lstm(xg, o_tm, p["whh"])                             # o + lstm(o)

    o_tok = (y_tm.reshape(s, b, n_h, hid_sz)
                 .transpose(1, 0, 2, 3)
                 .reshape(b * s, n_h * hid_sz))
    # Head with the outer layer residual (+ x) fused into the kernel.
    y = head(o_tok, x2, p["w1"], p["b1"], p["w2"], p["b2"], p["g"], p["beta"])
    return y.reshape(b, s, e)


def model_forward(tokens, params, n_h, hid_sz):
    x = jnp.take(params["emb"], tokens, axis=0)                 # (b, s, emb)
    for p in params["layers"]:
        x = lka_lstm_layer(x, p, n_h, hid_sz)                   # residual fused in head
    b, s, e = x.shape
    logits = linear(x.reshape(b * s, e), params["w_tok"], params["b_tok"])
    return logits.reshape(b, s, -1)


# --------------------------------------------------------------------------- #
# Deterministic parameter init (synthetic weights, shapes from the nn.Module)
# --------------------------------------------------------------------------- #

def init_params(key, vocab, emb, hid, n_h, n_layers=8):
    keys = jax.random.split(key, 2 + n_layers)

    def lin(k, fan_in, fan_out):
        kw, kb = jax.random.split(k)
        w = jax.random.normal(kw, (fan_in, fan_out), jnp.float32) / jnp.sqrt(
            jnp.float32(fan_in))
        b = jax.random.normal(kb, (1, fan_out), jnp.float32) * 0.01
        return w.astype(jnp.bfloat16), b                        # bf16 weights in HBM

    params = {"emb": jax.random.normal(keys[0], (vocab, emb), jnp.float32) * 0.02}

    layers = []
    for li in range(n_layers):
        k = jax.random.split(keys[2 + li], 6)
        wqkv, bqkv = lin(k[0], emb, 3 * n_h * hid)
        wih, _ = lin(k[1], hid, 4 * hid)                        # gates [i,f,g,o]
        blstm = jax.random.normal(k[2], (1, 4 * hid), jnp.float32) * 0.01  # b_ih+b_hh
        whh = (jax.random.normal(k[3], (hid, 4 * hid), jnp.float32)
               / jnp.sqrt(jnp.float32(hid))).astype(jnp.bfloat16)  # concat [i,f,g,o]
        w1, b1 = lin(k[4], n_h * hid, emb)
        w2, b2 = lin(k[5], emb, emb)
        layers.append(dict(
            wqkv=wqkv, bqkv=bqkv, wih=wih, blstm=blstm, whh=whh,
            w1=w1, b1=b1, w2=w2, b2=b2,
            g=jnp.ones((1, emb), jnp.float32),
            beta=jnp.zeros((1, emb), jnp.float32)))
    params["layers"] = layers

    w_tok, b_tok = lin(keys[1], emb, vocab)
    params["w_tok"] = w_tok
    params["b_tok"] = b_tok
    return params


# --------------------------------------------------------------------------- #
# main
# --------------------------------------------------------------------------- #

if __name__ == "__main__":
    vocab_sz, emb_sz, hid_sz, n_h = 32, 32, 16, 2
    batch, seq = 2, 8

    key = jax.random.PRNGKey(0)
    pkey, tkey = jax.random.split(key)
    params = init_params(pkey, vocab_sz, emb_sz, hid_sz, n_h, n_layers=8)
    tokens = jax.random.randint(tkey, (batch, seq), 0, vocab_sz, dtype=jnp.int32)

    fwd = jax.jit(functools.partial(model_forward, n_h=n_h, hid_sz=hid_sz))
    logits = fwd(tokens, params)
    logits = jax.block_until_ready(logits)

    assert logits.shape == (batch, seq, vocab_sz), logits.shape
    assert bool(jnp.all(jnp.isfinite(logits)))
    print("KERNEL_OK")
</pallas_src>

<mosaic_0001>
module attributes {stable_mosaic.version = 11 : i64} {
  func.func @_linear_kernel(%arg0: i32, %arg1: i32, %arg2: i32, %arg3: memref<16x32xf32, #tpu.memory_space<vmem>>, %arg4: memref<32x96xbf16, #tpu.memory_space<vmem>>, %arg5: memref<1x96xf32, #tpu.memory_space<vmem>>, %arg6: memref<16x96xbf16, #tpu.memory_space<vmem>>, %arg7: memref<16x96xf32, #tpu.memory_space<vmem>>) attributes {dimension_semantics = [#tpu.dimension_semantics<parallel>, #tpu.dimension_semantics<parallel>, #tpu.dimension_semantics<arbitrary>], iteration_bounds = array<i64: 1, 1, 1>, scalar_prefetch = 0 : i64, scratch_operands = 1 : i64, tpu.core_type = #tpu.core_type<tc>, window_params = [{transform_indices = @transform_0, window_bounds = array<i64: 16, 32>}, {transform_indices = @transform_1, window_bounds = array<i64: 32, 96>}, {transform_indices = @transform_2, window_bounds = array<i64: 1, 96>}, {transform_indices = @transform_3, window_bounds = array<i64: 16, 96>}]} {
    %c0_i32 = arith.constant 0 : i32
    %0 = arith.cmpi eq, %arg2, %c0_i32 : i32
    %1 = arith.extui %0 : i1 to i32
    %c0_i32_0 = arith.constant 0 : i32
    %2 = arith.cmpi ne, %1, %c0_i32_0 : i32
    scf.if %2 {
      %cst_10 = arith.constant 0.000000e+00 : f32
      %13 = vector.broadcast %cst_10 : f32 to vector<16x96xf32>
      %c0_11 = arith.constant 0 : index
      %c0_12 = arith.constant 0 : index
      %14 = vector.load %arg7[%c0_11, %c0_12] : memref<16x96xf32, #tpu.memory_space<vmem>>, vector<16x96xf32>
      tpu.vector_store %arg7[%c0_11, %c0_12], %13 {strides = array<i32>} : memref<16x96xf32, #tpu.memory_space<vmem>>, vector<16x96xf32>,
    } else {
    }
    %c0 = arith.constant 0 : index
    %c0_1 = arith.constant 0 : index
    %3 = vector.load %arg7[%c0, %c0_1] : memref<16x96xf32, #tpu.memory_space<vmem>>, vector<16x96xf32>
    %c0_2 = arith.constant 0 : index
    %c0_3 = arith.constant 0 : index
    %4 = vector.load %arg3[%c0_2, %c0_3] : memref<16x32xf32, #tpu.memory_space<vmem>>, vector<16x32xf32>
    %5 = arith.truncf %4 : vector<16x32xf32> to vector<16x32xbf16>
    %c0_4 = arith.constant 0 : index
    %c0_5 = arith.constant 0 : index
    %6 = vector.load %arg4[%c0_4, %c0_5] : memref<32x96xbf16, #tpu.memory_space<vmem>>, vector<32x96xbf16>
    %cst = arith.constant dense<0.000000e+00> : vector<16x96xf32>
    %7 = tpu.matmul %5, %6, %cst {dimension_numbers = #tpu.dot_dimension_numbers<[1], [0], [0], [1], [0, 0, 1, 1], [], []>} : vector<16x32xbf16>, vector<32x96xbf16>, vector<16x96xf32> -> vector<16x96xf32>
    %8 = arith.addf %3, %7 : vector<16x96xf32>
    %c0_6 = arith.constant 0 : index
    %c0_7 = arith.constant 0 : index
    %9 = vector.load %arg7[%c0_6, %c0_7] : memref<16x96xf32, #tpu.memory_space<vmem>>, vector<16x96xf32>
    tpu.vector_store %arg7[%c0_6, %c0_7], %8 {strides = array<i32>} : memref<16x96xf32, #tpu.memory_space<vmem>>, vector<16x96xf32>,
    %c0_i32_8 = arith.constant 0 : i32
    %10 = arith.cmpi eq, %arg2, %c0_i32_8 : i32
    %11 = arith.extui %10 : i1 to i32
    %c0_i32_9 = arith.constant 0 : i32
    %12 = arith.cmpi ne, %11, %c0_i32_9 : i32
    scf.if %12 {
      %c0_10 = arith.constant 0 : index
      %c0_11 = arith.constant 0 : index
      %13 = vector.load %arg7[%c0_10, %c0_11] : memref<16x96xf32, #tpu.memory_space<vmem>>, vector<16x96xf32>
      %c0_12 = arith.constant 0 : index
      %c0_13 = arith.constant 0 : index
      %14 = vector.load %arg5[%c0_12, %c0_13] : memref<1x96xf32, #tpu.memory_space<vmem>>, vector<1x96xf32>
      %15 = vector.broadcast %14 : vector<1x96xf32> to vector<16x96xf32>
      %16 = arith.addf %13, %15 : vector<16x96xf32>
      %17 = arith.truncf %16 : vector<16x96xf32> to vector<16x96xbf16>
      %c0_14 = arith.constant 0 : index
      %c0_15 = arith.constant 0 : index
      %18 = vector.load %arg6[%c0_14, %c0_15] : memref<16x96xbf16, #tpu.memory_space<vmem>>, vector<16x96xbf16>
      tpu.vector_store %arg6[%c0_14, %c0_15], %17 {strides = array<i32>} : memref<16x96xbf16, #tpu.memory_space<vmem>>, vector<16x96xbf16>,
    } else {
    }
    return
  }
  func.func @transform_0(%arg0: i32, %arg1: i32, %arg2: i32) -> (i32, i32) {
    %c0_i32 = arith.constant 0 : i32
    return %arg0, %arg2 : i32, i32
  }
  func.func @transform_1(%arg0: i32, %arg1: i32, %arg2: i32) -> (i32, i32) {
    %c0_i32 = arith.constant 0 : i32
    return %arg2, %arg1 : i32, i32
  }
  func.func @transform_2(%arg0: i32, %arg1: i32, %arg2: i32) -> (i32, i32) {
    %c0_i32 = arith.constant 0 : i32
    %c0_i32_0 = arith.constant 0 : i32
    return %c0_i32, %arg1 : i32, i32
  }
  func.func @transform_3(%arg0: i32, %arg1: i32, %arg2: i32) -> (i32, i32) {
    %c0_i32 = arith.constant 0 : i32
    return %arg0, %arg1 : i32, i32
  }
}

module attributes {stable_mosaic.version = 11 : i64} {
  func.func @_lka_kernel(%arg0: i32, %arg1: i32, %arg2: i32, %arg3: memref<4x8x16xbf16, #tpu.memory_space<vmem>>, %arg4: memref<4x8x16xbf16, #tpu.memory_space<vmem>>, %arg5: memref<4x8x16xbf16, #tpu.memory_space<vmem>>, %arg6: memref<4x8x16xf32, #tpu.memory_space<vmem>>, %arg7: memref<4x8x1xf32, #tpu.memory_space<vmem>>, %arg8: memref<4x8x16xf32, #tpu.memory_space<vmem>>) attributes {dimension_semantics = [#tpu.dimension_semantics<parallel>, #tpu.dimension_semantics<parallel>, #tpu.dimension_semantics<arbitrary>], iteration_bounds = array<i64: 1, 1, 1>, scalar_prefetch = 0 : i64, scratch_operands = 2 : i64, tpu.core_type = #tpu.core_type<tc>, window_params = [{transform_indices = @transform_0, window_bounds = array<i64: 4, 8, 16>}, {transform_indices = @transform_1, window_bounds = array<i64: 4, 8, 16>}, {transform_indices = @transform_2, window_bounds = array<i64: 4, 8, 16>}, {transform_indices = @transform_3, window_bounds = array<i64: 4, 8, 16>}]} {
    %c0_i32 = arith.constant 0 : i32
    %0 = arith.cmpi eq, %arg2, %c0_i32 : i32
    %1 = arith.extui %0 : i1 to i32
    %c0_i32_0 = arith.constant 0 : i32
    %2 = arith.cmpi ne, %1, %c0_i32_0 : i32
    scf.if %2 {
      %cst = arith.constant 0.000000e+00 : f32
      %9 = vector.broadcast %cst : f32 to vector<4x8x1xf32>
      %c0 = arith.constant 0 : index
      %c0_3 = arith.constant 0 : index
      %c0_4 = arith.constant 0 : index
      %10 = vector.load %arg7[%c0, %c0_3, %c0_4] : memref<4x8x1xf32, #tpu.memory_space<vmem>>, vector<4x8x1xf32>
      tpu.vector_store %arg7[%c0, %c0_3, %c0_4], %9 {strides = array<i32>} : memref<4x8x1xf32, #tpu.memory_space<vmem>>, vector<4x8x1xf32>,
      %cst_5 = arith.constant 0.000000e+00 : f32
      %11 = vector.broadcast %cst_5 : f32 to vector<4x8x16xf32>
      %c0_6 = arith.constant 0 : index
      %c0_7 = arith.constant 0 : index
      %c0_8 = arith.constant 0 : index
      %12 = vector.load %arg8[%c0_6, %c0_7, %c0_8] : memref<4x8x16xf32, #tpu.memory_space<vmem>>, vector<4x8x16xf32>
      tpu.vector_store %arg8[%c0_6, %c0_7, %c0_8], %11 {strides = array<i32>} : memref<4x8x16xf32, #tpu.memory_space<vmem>>, vector<4x8x16xf32>,
    } else {
    }
    %3 = arith.cmpi slt, %arg2, %arg1 : i32
    %4 = arith.extui %3 : i1 to i32
    %c0_i32_1 = arith.constant 0 : i32
    %5 = arith.cmpi ne, %4, %c0_i32_1 : i32
    scf.if %5 {
      %c0 = arith.constant 0 : index
      %c0_3 = arith.constant 0 : index
      %c0_4 = arith.constant 0 : index
      %9 = vector.load %arg3[%c0, %c0_3, %c0_4] : memref<4x8x16xbf16, #tpu.memory_space<vmem>>, vector<4x8x16xbf16>
      %10 = arith.extf %9 : vector<4x8x16xbf16> to vector<4x8x16xf32>
      %11 = arith.mulf %10, %10 : vector<4x8x16xf32>
      %cst = arith.constant dense<0.000000e+00> : vector<4x8xf32>
      %12 = vector.multi_reduction <add>, %11, %cst [2] : vector<4x8x16xf32> to vector<4x8xf32>
      %13 = vector.shape_cast %12 : vector<4x8xf32> to vector<4x8x1xf32>
      %14 = math.sqrt %13 : vector<4x8x1xf32>
      %cst_5 = arith.constant 9.99999996E-13 : f32
      %15 = vector.broadcast %cst_5 : f32 to vector<4x8x1xf32>
      %16 = arith.maximumf %14, %15 : vector<4x8x1xf32>
      %17 = vector.broadcast %16 : vector<4x8x1xf32> to vector<4x8x16xf32>
      %18 = arith.divf %10, %17 : vector<4x8x16xf32>
      %cst_6 = arith.constant -0.693147182 : f32
      %19 = vector.broadcast %cst_6 : f32 to vector<4x8x1xf32>
      %20 = arith.mulf %14, %19 : vector<4x8x1xf32>
      %21 = math.exp %20 : vector<4x8x1xf32>
      %cst_7 = arith.constant 1.000000e+00 : f32
      %22 = vector.broadcast %cst_7 : f32 to vector<4x8x1xf32>
      %23 = arith.subf %22, %21 : vector<4x8x1xf32>
      %24 = vector.broadcast %23 : vector<4x8x1xf32> to vector<4x8x16xf32>
      %25 = arith.mulf %24, %18 : vector<4x8x16xf32>
      %c0_8 = arith.constant 0 : index
      %c0_9 = arith.constant 0 : index
      %c0_10 = arith.constant 0 : index
      %26 = vector.load %arg4[%c0_8, %c0_9, %c0_10] : memref<4x8x16xbf16, #tpu.memory_space<vmem>>, vector<4x8x16xbf16>
      %27 = arith.extf %26 : vector<4x8x16xbf16> to vector<4x8x16xf32>
      %28 = arith.mulf %27, %27 : vector<4x8x16xf32>
      %cst_11 = arith.constant dense<0.000000e+00> : vector<4x8xf32>
      %29 = vector.multi_reduction <add>, %28, %cst_11 [2] : vector<4x8x16xf32> to vector<4x8xf32>
      %30 = vector.shape_cast %29 : vector<4x8xf32> to vector<4x8x1xf32>
      %31 = math.sqrt %30 : vector<4x8x1xf32>
      %cst_12 = arith.constant 9.99999996E-13 : f32
      %32 = vector.broadcast %cst_12 : f32 to vector<4x8x1xf32>
      %33 = arith.maximumf %31, %32 : vector<4x8x1xf32>
      %34 = vector.broadcast %33 : vector<4x8x1xf32> to vector<4x8x16xf32>
      %35 = arith.divf %27, %34 : vector<4x8x16xf32>
      %cst_13 = arith.constant -0.693147182 : f32
      %36 = vector.broadcast %cst_13 : f32 to vector<4x8x1xf32>
      %37 = arith.mulf %31, %36 : vector<4x8x1xf32>
      %38 = math.exp %37 : vector<4x8x1xf32>
      %cst_14 = arith.constant 1.000000e+00 : f32
      %39 = vector.broadcast %cst_14 : f32 to vector<4x8x1xf32>
      %40 = arith.subf %39, %38 : vector<4x8x1xf32>
      %41 = vector.broadcast %40 : vector<4x8x1xf32> to vector<4x8x16xf32>
      %42 = arith.mulf %41, %35 : vector<4x8x16xf32>
      %43 = arith.truncf %25 : vector<4x8x16xf32> to vector<4x8x16xbf16>
      %44 = arith.truncf %42 : vector<4x8x16xf32> to vector<4x8x16xbf16>
      %cst_15 = arith.constant dense<0.000000e+00> : vector<4x8x8xf32>
      %45 = tpu.matmul %43, %44, %cst_15 {dimension_numbers = #tpu.dot_dimension_numbers<[2], [2], [1], [1], [0, 0, 0, 1, 1, 1], [0], [0]>} : vector<4x8x16xbf16>, vector<4x8x16xbf16>, vector<4x8x8xf32> -> vector<4x8x8xf32>
      %cst_16 = arith.constant 1.000000e+00 : f32
      %46 = vector.broadcast %cst_16 : f32 to vector<4x8x8xf32>
      %47 = arith.addf %45, %46 : vector<4x8x8xf32>
      %c0_17 = arith.constant 0 : index
      %c0_18 = arith.constant 0 : index
      %c0_19 = arith.constant 0 : index
      %48 = vector.load %arg7[%c0_17, %c0_18, %c0_19] : memref<4x8x1xf32, #tpu.memory_space<vmem>>, vector<4x8x1xf32>
      %cst_20 = arith.constant dense<0.000000e+00> : vector<4x8xf32>
      %49 = vector.multi_reduction <add>, %47, %cst_20 [2] : vector<4x8x8xf32> to vector<4x8xf32>
      %50 = vector.shape_cast %49 : vector<4x8xf32> to vector<4x8x1xf32>
      %51 = arith.addf %48, %50 : vector<4x8x1xf32>
      %c0_21 = arith.constant 0 : index
      %c0_22 = arith.constant 0 : index
      %c0_23 = arith.constant 0 : index
      %52 = vector.load %arg7[%c0_21, %c0_22, %c0_23] : memref<4x8x1xf32, #tpu.memory_space<vmem>>, vector<4x8x1xf32>
      tpu.vector_store %arg7[%c0_21, %c0_22, %c0_23], %51 {strides = array<i32>} : memref<4x8x1xf32, #tpu.memory_space<vmem>>, vector<4x8x1xf32>,
      %c0_24 = arith.constant 0 : index
      %c0_25 = arith.constant 0 : index
      %c0_26 = arith.constant 0 : index
      %53 = vector.load %arg8[%c0_24, %c0_25, %c0_26] : memref<4x8x16xf32, #tpu.memory_space<vmem>>, vector<4x8x16xf32>
      %54 = arith.truncf %47 : vector<4x8x8xf32> to vector<4x8x8xbf16>
      %c0_27 = arith.constant 0 : index
      %c0_28 = arith.constant 0 : index
      %c0_29 = arith.constant 0 : index
      %55 = vector.load %arg5[%c0_27, %c0_28, %c0_29] : memref<4x8x16xbf16, #tpu.memory_space<vmem>>, vector<4x8x16xbf16>
      %cst_30 = arith.constant dense<0.000000e+00> : vector<4x8x16xf32>
      %56 = tpu.matmul %54, %55, %cst_30 {dimension_numbers = #tpu.dot_dimension_numbers<[2], [1], [1], [2], [0, 0, 0, 1, 1, 2], [0], [0]>} : vector<4x8x8xbf16>, vector<4x8x16xbf16>, vector<4x8x16xf32> -> vector<4x8x16xf32>
      %57 = arith.addf %53, %56 : vector<4x8x16xf32>
      %c0_31 = arith.constant 0 : index
      %c0_32 = arith.constant 0 : index
      %c0_33 = arith.constant 0 : index
      %58 = vector.load %arg8[%c0_31, %c0_32, %c0_33] : memref<4x8x16xf32, #tpu.memory_space<vmem>>, vector<4x8x16xf32>
      tpu.vector_store %arg8[%c0_31, %c0_32, %c0_33], %57 {strides = array<i32>} : memref<4x8x16xf32, #tpu.memory_space<vmem>>, vector<4x8x16xf32>,
    } else {
    }
    %6 = arith.cmpi eq, %arg2, %arg1 : i32
    %7 = arith.extui %6 : i1 to i32
    %c0_i32_2 = arith.constant 0 : i32
    %8 = arith.cmpi ne, %7, %c0_i32_2 : i32
    scf.if %8 {
      %c0 = arith.constant 0 : index
      %c0_3 = arith.constant 0 : index
      %c0_4 = arith.constant 0 : index
      %9 = vector.load %arg3[%c0, %c0_3, %c0_4] : memref<4x8x16xbf16, #tpu.memory_space<vmem>>, vector<4x8x16xbf16>
      %10 = arith.extf %9 : vector<4x8x16xbf16> to vector<4x8x16xf32>
      %11 = arith.mulf %10, %10 : vector<4x8x16xf32>
      %cst = arith.constant dense<0.000000e+00> : vector<4x8xf32>
      %12 = vector.multi_reduction <add>, %11, %cst [2] : vector<4x8x16xf32> to vector<4x8xf32>
      %13 = vector.shape_cast %12 : vector<4x8xf32> to vector<4x8x1xf32>
      %14 = math.sqrt %13 : vector<4x8x1xf32>
      %cst_5 = arith.constant 9.99999996E-13 : f32
      %15 = vector.broadcast %cst_5 : f32 to vector<4x8x1xf32>
      %16 = arith.maximumf %14, %15 : vector<4x8x1xf32>
      %17 = vector.broadcast %16 : vector<4x8x1xf32> to vector<4x8x16xf32>
      %18 = arith.divf %10, %17 : vector<4x8x16xf32>
      %cst_6 = arith.constant -0.693147182 : f32
      %19 = vector.broadcast %cst_6 : f32 to vector<4x8x1xf32>
      %20 = arith.mulf %14, %19 : vector<4x8x1xf32>
      %21 = math.exp %20 : vector<4x8x1xf32>
      %cst_7 = arith.constant 1.000000e+00 : f32
      %22 = vector.broadcast %cst_7 : f32 to vector<4x8x1xf32>
      %23 = arith.subf %22, %21 : vector<4x8x1xf32>
      %24 = vector.broadcast %23 : vector<4x8x1xf32> to vector<4x8x16xf32>
      %25 = arith.mulf %24, %18 : vector<4x8x16xf32>
      %c0_8 = arith.constant 0 : index
      %c0_9 = arith.constant 0 : index
      %c0_10 = arith.constant 0 : index
      %26 = vector.load %arg4[%c0_8, %c0_9, %c0_10] : memref<4x8x16xbf16, #tpu.memory_space<vmem>>, vector<4x8x16xbf16>
      %27 = arith.extf %26 : vector<4x8x16xbf16> to vector<4x8x16xf32>
      %28 = arith.mulf %27, %27 : vector<4x8x16xf32>
      %cst_11 = arith.constant dense<0.000000e+00> : vector<4x8xf32>
      %29 = vector.multi_reduction <add>, %28, %cst_11 [2] : vector<4x8x16xf32> to vector<4x8xf32>
      %30 = vector.shape_cast %29 : vector<4x8xf32> to vector<4x8x1xf32>
      %31 = math.sqrt %30 : vector<4x8x1xf32>
      %cst_12 = arith.constant 9.99999996E-13 : f32
      %32 = vector.broadcast %cst_12 : f32 to vector<4x8x1xf32>
      %33 = arith.maximumf %31, %32 : vector<4x8x1xf32>
      %34 = vector.broadcast %33 : vector<4x8x1xf32> to vector<4x8x16xf32>
      %35 = arith.divf %27, %34 : vector<4x8x16xf32>
      %cst_13 = arith.constant -0.693147182 : f32
      %36 = vector.broadcast %cst_13 : f32 to vector<4x8x1xf32>
      %37 = arith.mulf %31, %36 : vector<4x8x1xf32>
      %38 = math.exp %37 : vector<4x8x1xf32>
      %cst_14 = arith.constant 1.000000e+00 : f32
      %39 = vector.broadcast %cst_14 : f32 to vector<4x8x1xf32>
      %40 = arith.subf %39, %38 : vector<4x8x1xf32>
      %41 = vector.broadcast %40 : vector<4x8x1xf32> to vector<4x8x16xf32>
      %42 = arith.mulf %41, %35 : vector<4x8x16xf32>
      %43 = arith.truncf %25 : vector<4x8x16xf32> to vector<4x8x16xbf16>
      %44 = arith.truncf %42 : vector<4x8x16xf32> to vector<4x8x16xbf16>
      %cst_15 = arith.constant dense<0.000000e+00> : vector<4x8x8xf32>
      %45 = tpu.matmul %43, %44, %cst_15 {dimension_numbers = #tpu.dot_dimension_numbers<[2], [2], [1], [1], [0, 0, 0, 1, 1, 1], [0], [0]>} : vector<4x8x16xbf16>, vector<4x8x16xbf16>, vector<4x8x8xf32> -> vector<4x8x8xf32>
      %cst_16 = arith.constant 1.000000e+00 : f32
      %46 = vector.broadcast %cst_16 : f32 to vector<4x8x8xf32>
      %47 = arith.addf %45, %46 : vector<4x8x8xf32>
      %48 = tpu.iota {dimensions = array<i32: 1>} : vector<4x8x8xi32>
      %49 = tpu.iota {dimensions = array<i32: 2>} : vector<4x8x8xi32>
      %50 = arith.cmpi sge, %48, %49 : vector<4x8x8xi32>
      %cst_17 = arith.constant 0.000000e+00 : f32
      %51 = vector.broadcast %cst_17 : f32 to vector<4x8x8xf32>
      %52 = arith.select %50, %47, %51 : vector<4x8x8xi1>, vector<4x8x8xf32>
      %c0_18 = arith.constant 0 : index
      %c0_19 = arith.constant 0 : index
      %c0_20 = arith.constant 0 : index
      %53 = vector.load %arg7[%c0_18, %c0_19, %c0_20] : memref<4x8x1xf32, #tpu.memory_space<vmem>>, vector<4x8x1xf32>
      %cst_21 = arith.constant dense<0.000000e+00> : vector<4x8xf32>
      %54 = vector.multi_reduction <add>, %52, %cst_21 [2] : vector<4x8x8xf32> to vector<4x8xf32>
      %55 = vector.shape_cast %54 : vector<4x8xf32> to vector<4x8x1xf32>
      %56 = arith.addf %53, %55 : vector<4x8x1xf32>
      %c0_22 = arith.constant 0 : index
      %c0_23 = arith.constant 0 : index
      %c0_24 = arith.constant 0 : index
      %57 = vector.load %arg7[%c0_22, %c0_23, %c0_24] : memref<4x8x1xf32, #tpu.memory_space<vmem>>, vector<4x8x1xf32>
      tpu.vector_store %arg7[%c0_22, %c0_23, %c0_24], %56 {strides = array<i32>} : memref<4x8x1xf32, #tpu.memory_space<vmem>>, vector<4x8x1xf32>,
      %c0_25 = arith.constant 0 : index
      %c0_26 = arith.constant 0 : index
      %c0_27 = arith.constant 0 : index
      %58 = vector.load %arg8[%c0_25, %c0_26, %c0_27] : memref<4x8x16xf32, #tpu.memory_space<vmem>>, vector<4x8x16xf32>
      %59 = arith.truncf %52 : vector<4x8x8xf32> to vector<4x8x8xbf16>
      %c0_28 = arith.constant 0 : index
      %c0_29 = arith.constant 0 : index
      %c0_30 = arith.constant 0 : index
      %60 = vector.load %arg5[%c0_28, %c0_29, %c0_30] : memref<4x8x16xbf16, #tpu.memory_space<vmem>>, vector<4x8x16xbf16>
      %cst_31 = arith.constant dense<0.000000e+00> : vector<4x8x16xf32>
      %61 = tpu.matmul %59, %60, %cst_31 {dimension_numbers = #tpu.dot_dimension_numbers<[2], [1], [1], [2], [0, 0, 0, 1, 1, 2], [0], [0]>} : vector<4x8x8xbf16>, vector<4x8x16xbf16>, vector<4x8x16xf32> -> vector<4x8x16xf32>
      %62 = arith.addf %58, %61 : vector<4x8x16xf32>
      %c0_32 = arith.constant 0 : index
      %c0_33 = arith.constant 0 : index
      %c0_34 = arith.constant 0 : index
      %63 = vector.load %arg8[%c0_32, %c0_33, %c0_34] : memref<4x8x16xf32, #tpu.memory_space<vmem>>, vector<4x8x16xf32>
      tpu.vector_store %arg8[%c0_32, %c0_33, %c0_34], %62 {strides = array<i32>} : memref<4x8x16xf32, #tpu.memory_space<vmem>>, vector<4x8x16xf32>,
      %c0_35 = arith.constant 0 : index
      %c0_36 = arith.constant 0 : index
      %c0_37 = arith.constant 0 : index
      %64 = vector.load %arg8[%c0_35, %c0_36, %c0_37] : memref<4x8x16xf32, #tpu.memory_space<vmem>>, vector<4x8x16xf32>
      %c0_38 = arith.constant 0 : index
      %c0_39 = arith.constant 0 : index
      %c0_40 = arith.constant 0 : index
      %65 = vector.load %arg7[%c0_38, %c0_39, %c0_40] : memref<4x8x1xf32, #tpu.memory_space<vmem>>, vector<4x8x1xf32>
      %66 = tpu.reciprocal %65 {approx = true} : vector<4x8x1xf32> -> vector<4x8x1xf32>
      %67 = vector.broadcast %66 : vector<4x8x1xf32> to vector<4x8x16xf32>
      %68 = arith.mulf %64, %67 : vector<4x8x16xf32>
      %c0_41 = arith.constant 0 : index
      %c0_42 = arith.constant 0 : index
      %c0_43 = arith.constant 0 : index
      %69 = vector.load %arg6[%c0_41, %c0_42, %c0_43] : memref<4x8x16xf32, #tpu.memory_space<vmem>>, vector<4x8x16xf32>
      tpu.vector_store %arg6[%c0_41, %c0_42, %c0_43], %68 {strides = array<i32>} : memref<4x8x16xf32, #tpu.memory_space<vmem>>, vector<4x8x16xf32>,
    } else {
    }
    return
  }
  func.func @transform_0(%arg0: i32, %arg1: i32, %arg2: i32) -> (i32, i32, i32) {
    %c0_i32 = arith.constant 0 : i32
    %c0_i32_0 = arith.constant 0 : i32
    return %arg0, %arg1, %c0_i32 : i32, i32, i32
  }
  func.func @transform_1(%arg0: i32, %arg1: i32, %arg2: i32) -> (i32, i32, i32) {
    %0 = arith.minsi %arg2, %arg1 : i32
    %c0_i32 = arith.constant 0 : i32
    %c0_i32_0 = arith.constant 0 : i32
    return %arg0, %0, %c0_i32 : i32, i32, i32
  }
  func.func @transform_2(%arg0: i32, %arg1: i32, %arg2: i32) -> (i32, i32, i32) {
    %0 = arith.minsi %arg2, %arg1 : i32
    %c0_i32 = arith.constant 0 : i32
    %c0_i32_0 = arith.constant 0 : i32
    return %arg0, %0, %c0_i32 : i32, i32, i32
  }
  func.func @transform_3(%arg0: i32, %arg1: i32, %arg2: i32) -> (i32, i32, i32) {
    %c0_i32 = arith.constant 0 : i32
    %c0_i32_0 = arith.constant 0 : i32
    return %arg0, %arg1, %c0_i32 : i32, i32, i32
  }
}

module attributes {stable_mosaic.version = 11 : i64} {
  func.func @_linear_kernel(%arg0: i32, %arg1: i32, %arg2: i32, %arg3: memref<32x16xf32, #tpu.memory_space<vmem>>, %arg4: memref<16x64xbf16, #tpu.memory_space<vmem>>, %arg5: memref<1x64xf32, #tpu.memory_space<vmem>>, %arg6: memref<32x64xbf16, #tpu.memory_space<vmem>>, %arg7: memref<32x64xf32, #tpu.memory_space<vmem>>) attributes {dimension_semantics = [#tpu.dimension_semantics<parallel>, #tpu.dimension_semantics<parallel>, #tpu.dimension_semantics<arbitrary>], iteration_bounds = array<i64: 1, 1, 1>, scalar_prefetch = 0 : i64, scratch_operands = 1 : i64, tpu.core_type = #tpu.core_type<tc>, window_params = [{transform_indices = @transform_0, window_bounds = array<i64: 32, 16>}, {transform_indices = @transform_1, window_bounds = array<i64: 16, 64>}, {transform_indices = @transform_2, window_bounds = array<i64: 1, 64>}, {transform_indices = @transform_3, window_bounds = array<i64: 32, 64>}]} {
    %c0_i32 = arith.constant 0 : i32
    %0 = arith.cmpi eq, %arg2, %c0_i32 : i32
    %1 = arith.extui %0 : i1 to i32
    %c0_i32_0 = arith.constant 0 : i32
    %2 = arith.cmpi ne, %1, %c0_i32_0 : i32
    scf.if %2 {
      %cst_10 = arith.constant 0.000000e+00 : f32
      %13 = vector.broadcast %cst_10 : f32 to vector<32x64xf32>
      %c0_11 = arith.constant 0 : index
      %c0_12 = arith.constant 0 : index
      %14 = vector.load %arg7[%c0_11, %c0_12] : memref<32x64xf32, #tpu.memory_space<vmem>>, vector<32x64xf32>
      tpu.vector_store %arg7[%c0_11, %c0_12], %13 {strides = array<i32>} : memref<32x64xf32, #tpu.memory_space<vmem>>, vector<32x64xf32>,
    } else {
    }
    %c0 = arith.constant 0 : index
    %c0_1 = arith.constant 0 : index
    %3 = vector.load %arg7[%c0, %c0_1] : memref<32x64xf32, #tpu.memory_space<vmem>>, vector<32x64xf32>
    %c0_2 = arith.constant 0 : index
    %c0_3 = arith.constant 0 : index
    %4 = vector.load %arg3[%c0_2, %c0_3] : memref<32x16xf32, #tpu.memory_space<vmem>>, vector<32x16xf32>
    %5 = arith.truncf %4 : vector<32x16xf32> to vector<32x16xbf16>
    %c0_4 = arith.constant 0 : index
    %c0_5 = arith.constant 0 : index
    %6 = vector.load %arg4[%c0_4, %c0_5] : memref<16x64xbf16, #tpu.memory_space<vmem>>, vector<16x64xbf16>
    %cst = arith.constant dense<0.000000e+00> : vector<32x64xf32>
    %7 = tpu.matmul %5, %6, %cst {dimension_numbers = #tpu.dot_dimension_numbers<[1], [0], [0], [1], [0, 0, 1, 1], [], []>} : vector<32x16xbf16>, vector<16x64xbf16>, vector<32x64xf32> -> vector<32x64xf32>
    %8 = arith.addf %3, %7 : vector<32x64xf32>
    %c0_6 = arith.constant 0 : index
    %c0_7 = arith.constant 0 : index
    %9 = vector.load %arg7[%c0_6, %c0_7] : memref<32x64xf32, #tpu.memory_space<vmem>>, vector<32x64xf32>
    tpu.vector_store %arg7[%c0_6, %c0_7], %8 {strides = array<i32>} : memref<32x64xf32, #tpu.memory_space<vmem>>, vector<32x64xf32>,
    %c0_i32_8 = arith.constant 0 : i32
    %10 = arith.cmpi eq, %arg2, %c0_i32_8 : i32
    %11 = arith.extui %10 : i1 to i32
    %c0_i32_9 = arith.constant 0 : i32
    %12 = arith.cmpi ne, %11, %c0_i32_9 : i32
    scf.if %12 {
      %c0_10 = arith.constant 0 : index
      %c0_11 = arith.constant 0 : index
      %13 = vector.load %arg7[%c0_10, %c0_11] : memref<32x64xf32, #tpu.memory_space<vmem>>, vector<32x64xf32>
      %c0_12 = arith.constant 0 : index
      %c0_13 = arith.constant 0 : index
      %14 = vector.load %arg5[%c0_12, %c0_13] : memref<1x64xf32, #tpu.memory_space<vmem>>, vector<1x64xf32>
      %15 = vector.broadcast %14 : vector<1x64xf32> to vector<32x64xf32>
      %16 = arith.addf %13, %15 : vector<32x64xf32>
      %17 = arith.truncf %16 : vector<32x64xf32> to vector<32x64xbf16>
      %c0_14 = arith.constant 0 : index
      %c0_15 = arith.constant 0 : index
      %18 = vector.load %arg6[%c0_14, %c0_15] : memref<32x64xbf16, #tpu.memory_space<vmem>>, vector<32x64xbf16>
      tpu.vector_store %arg6[%c0_14, %c0_15], %17 {strides = array<i32>} : memref<32x64xbf16, #tpu.memory_space<vmem>>, vector<32x64xbf16>,
    } else {
    }
    return
  }
  func.func @transform_0(%arg0: i32, %arg1: i32, %arg2: i32) -> (i32, i32) {
    %c0_i32 = arith.constant 0 : i32
    return %arg0, %arg2 : i32, i32
  }
  func.func @transform_1(%arg0: i32, %arg1: i32, %arg2: i32) -> (i32, i32) {
    %c0_i32 = arith.constant 0 : i32
    return %arg2, %arg1 : i32, i32
  }
  func.func @transform_2(%arg0: i32, %arg1: i32, %arg2: i32) -> (i32, i32) {
    %c0_i32 = arith.constant 0 : i32
    %c0_i32_0 = arith.constant 0 : i32
    return %c0_i32, %arg1 : i32, i32
  }
  func.func @transform_3(%arg0: i32, %arg1: i32, %arg2: i32) -> (i32, i32) {
    %c0_i32 = arith.constant 0 : i32
    return %arg0, %arg1 : i32, i32
  }
}

module attributes {stable_mosaic.version = 11 : i64} {
  func.func @_lstm_kernel(%arg0: i32, %arg1: i32, %arg2: memref<8x4x64xbf16, #tpu.memory_space<vmem>>, %arg3: memref<8x4x16xf32, #tpu.memory_space<vmem>>, %arg4: memref<16x64xbf16, #tpu.memory_space<vmem>>, %arg5: memref<8x4x16xf32, #tpu.memory_space<vmem>>, %arg6: memref<4x16xf32, #tpu.memory_space<vmem>>, %arg7: memref<4x16xf32, #tpu.memory_space<vmem>>) attributes {dimension_semantics = [#tpu.dimension_semantics<parallel>, #tpu.dimension_semantics<arbitrary>], iteration_bounds = array<i64: 1, 1>, scalar_prefetch = 0 : i64, scratch_operands = 2 : i64, tpu.core_type = #tpu.core_type<tc>, window_params = [{transform_indices = @transform_0, window_bounds = array<i64: 8, 4, 64>}, {transform_indices = @transform_1, window_bounds = array<i64: 8, 4, 16>}, {pipeline_mode = #tpu.pipeline_mode<synchronous>, transform_indices = @transform_2, window_bounds = array<i64: 16, 64>}, {transform_indices = @transform_3, window_bounds = array<i64: 8, 4, 16>}]} {
    %c0_i32 = arith.constant 0 : i32
    %0 = arith.cmpi eq, %arg1, %c0_i32 : i32
    %1 = arith.extui %0 : i1 to i32
    %c0_i32_0 = arith.constant 0 : i32
    %2 = arith.cmpi ne, %1, %c0_i32_0 : i32
    scf.if %2 {
      %cst_218 = arith.constant 0.000000e+00 : f32
      %456 = vector.broadcast %cst_218 : f32 to vector<4x16xf32>
      %c0_219 = arith.constant 0 : index
      %c0_220 = arith.constant 0 : index
      %457 = vector.load %arg6[%c0_219, %c0_220] : memref<4x16xf32, #tpu.memory_space<vmem>>, vector<4x16xf32>
      tpu.vector_store %arg6[%c0_219, %c0_220], %456 {strides = array<i32>} : memref<4x16xf32, #tpu.memory_space<vmem>>, vector<4x16xf32>,
      %cst_221 = arith.constant 0.000000e+00 : f32
      %458 = vector.broadcast %cst_221 : f32 to vector<4x16xf32>
      %c0_222 = arith.constant 0 : index
      %c0_223 = arith.constant 0 : index
      %459 = vector.load %arg7[%c0_222, %c0_223] : memref<4x16xf32, #tpu.memory_space<vmem>>, vector<4x16xf32>
      tpu.vector_store %arg7[%c0_222, %c0_223], %458 {strides = array<i32>} : memref<4x16xf32, #tpu.memory_space<vmem>>, vector<4x16xf32>,
    } else {
    }
    %c0 = arith.constant 0 : index
    %c0_1 = arith.constant 0 : index
    %3 = vector.load %arg4[%c0, %c0_1] : memref<16x64xbf16, #tpu.memory_space<vmem>>, vector<16x64xbf16>
    %4 = vector.extract_strided_slice %3 {offsets = [0, 0], sizes = [16, 16], strides = [1, 1]} : vector<16x64xbf16> to vector<16x16xbf16>
    %5 = vector.extract_strided_slice %3 {offsets = [0, 16], sizes = [16, 16], strides = [1, 1]} : vector<16x64xbf16> to vector<16x16xbf16>
    %6 = vector.extract_strided_slice %3 {offsets = [0, 32], sizes = [16, 16], strides = [1, 1]} : vector<16x64xbf16> to vector<16x16xbf16>
    %7 = vector.extract_strided_slice %3 {offsets = [0, 48], sizes = [16, 16], strides = [1, 1]} : vector<16x64xbf16> to vector<16x16xbf16>
    %c0_i32_2 = arith.constant 0 : i32
    %8 = arith.index_cast %c0_i32_2 : i32 to index
    %c0_3 = arith.constant 0 : index
    %c0_4 = arith.constant 0 : index
    %9 = vector.load %arg2[%8, %c0_3, %c0_4] : memref<8x4x64xbf16, #tpu.memory_space<vmem>>, vector<1x4x64xbf16>
    %10 = vector.shape_cast %9 : vector<1x4x64xbf16> to vector<4x64xbf16>
    %11 = arith.extf %10 : vector<4x64xbf16> to vector<4x64xf32>
    %c0_5 = arith.constant 0 : index
    %c0_6 = arith.constant 0 : index
    %12 = vector.load %arg6[%c0_5, %c0_6] : memref<4x16xf32, #tpu.memory_space<vmem>>, vector<4x16xf32>
    %13 = arith.truncf %12 : vector<4x16xf32> to vector<4x16xbf16>
    %14 = vector.extract_strided_slice %11 {offsets = [0, 0], sizes = [4, 16], strides = [1, 1]} : vector<4x64xf32> to vector<4x16xf32>
    %cst = arith.constant dense<0.000000e+00> : vector<4x16xf32>
    %15 = tpu.matmul %13, %4, %cst {dimension_numbers = #tpu.dot_dimension_numbers<[1], [0], [0], [1], [0, 0, 1, 1], [], []>} : vector<4x16xbf16>, vector<16x16xbf16>, vector<4x16xf32> -> vector<4x16xf32>
    %16 = arith.addf %14, %15 : vector<4x16xf32>
    %17 = vector.extract_strided_slice %11 {offsets = [0, 16], sizes = [4, 16], strides = [1, 1]} : vector<4x64xf32> to vector<4x16xf32>
    %cst_7 = arith.constant dense<0.000000e+00> : vector<4x16xf32>
    %18 = tpu.matmul %13, %5, %cst_7 {dimension_numbers = #tpu.dot_dimension_numbers<[1], [0], [0], [1], [0, 0, 1, 1], [], []>} : vector<4x16xbf16>, vector<16x16xbf16>, vector<4x16xf32> -> vector<4x16xf32>
    %19 = arith.addf %17, %18 : vector<4x16xf32>
    %20 = vector.extract_strided_slice %11 {offsets = [0, 32], sizes = [4, 16], strides = [1, 1]} : vector<4x64xf32> to vector<4x16xf32>
    %cst_8 = arith.constant dense<0.000000e+00> : vector<4x16xf32>
    %21 = tpu.matmul %13, %6, %cst_8 {dimension_numbers = #tpu.dot_dimension_numbers<[1], [0], [0], [1], [0, 0, 1, 1], [], []>} : vector<4x16xbf16>, vector<16x16xbf16>, vector<4x16xf32> -> vector<4x16xf32>
    %22 = arith.addf %20, %21 : vector<4x16xf32>
    %23 = vector.extract_strided_slice %11 {offsets = [0, 48], sizes = [4, 16], strides = [1, 1]} : vector<4x64xf32> to vector<4x16xf32>
    %cst_9 = arith.constant dense<0.000000e+00> : vector<4x16xf32>
    %24 = tpu.matmul %13, %7, %cst_9 {dimension_numbers = #tpu.dot_dimension_numbers<[1], [0], [0], [1], [0, 0, 1, 1], [], []>} : vector<4x16xbf16>, vector<16x16xbf16>, vector<4x16xf32> -> vector<4x16xf32>
    %25 = arith.addf %23, %24 : vector<4x16xf32>
    %cst_10 = arith.constant 5.000000e-01 : f32
    %26 = vector.broadcast %cst_10 : f32 to vector<4x16xf32>
    %27 = arith.mulf %26, %16 : vector<4x16xf32>
    %28 = math.tanh %27 : vector<4x16xf32>
    %cst_11 = arith.constant 1.000000e+00 : f32
    %29 = vector.broadcast %cst_11 : f32 to vector<4x16xf32>
    %30 = arith.addf %28, %29 : vector<4x16xf32>
    %cst_12 = arith.constant 5.000000e-01 : f32
    %31 = vector.broadcast %cst_12 : f32 to vector<4x16xf32>
    %32 = arith.mulf %31, %30 : vector<4x16xf32>
    %cst_13 = arith.constant 5.000000e-01 : f32
    %33 = vector.broadcast %cst_13 : f32 to vector<4x16xf32>
    %34 = arith.mulf %33, %19 : vector<4x16xf32>
    %35 = math.tanh %34 : vector<4x16xf32>
    %cst_14 = arith.constant 1.000000e+00 : f32
    %36 = vector.broadcast %cst_14 : f32 to vector<4x16xf32>
    %37 = arith.addf %35, %36 : vector<4x16xf32>
    %cst_15 = arith.constant 5.000000e-01 : f32
    %38 = vector.broadcast %cst_15 : f32 to vector<4x16xf32>
    %39 = arith.mulf %38, %37 : vector<4x16xf32>
    %40 = math.tanh %22 : vector<4x16xf32>
    %cst_16 = arith.constant 5.000000e-01 : f32
    %41 = vector.broadcast %cst_16 : f32 to vector<4x16xf32>
    %42 = arith.mulf %41, %25 : vector<4x16xf32>
    %43 = math.tanh %42 : vector<4x16xf32>
    %cst_17 = arith.constant 1.000000e+00 : f32
    %44 = vector.broadcast %cst_17 : f32 to vector<4x16xf32>
    %45 = arith.addf %43, %44 : vector<4x16xf32>
    %cst_18 = arith.constant 5.000000e-01 : f32
    %46 = vector.broadcast %cst_18 : f32 to vector<4x16xf32>
    %47 = arith.mulf %46, %45 : vector<4x16xf32>
    %c0_19 = arith.constant 0 : index
    %c0_20 = arith.constant 0 : index
    %48 = vector.load %arg7[%c0_19, %c0_20] : memref<4x16xf32, #tpu.memory_space<vmem>>, vector<4x16xf32>
    %49 = arith.mulf %39, %48 : vector<4x16xf32>
    %50 = arith.mulf %32, %40 : vector<4x16xf32>
    %51 = arith.addf %49, %50 : vector<4x16xf32>
    %52 = math.tanh %51 : vector<4x16xf32>
    %53 = arith.mulf %47, %52 : vector<4x16xf32>
    %c0_21 = arith.constant 0 : index
    %c0_22 = arith.constant 0 : index
    %54 = vector.load %arg7[%c0_21, %c0_22] : memref<4x16xf32, #tpu.memory_space<vmem>>, vector<4x16xf32>
    tpu.vector_store %arg7[%c0_21, %c0_22], %51 {strides = array<i32>} : memref<4x16xf32, #tpu.memory_space<vmem>>, vector<4x16xf32>,
    %c0_23 = arith.constant 0 : index
    %c0_24 = arith.constant 0 : index
    %55 = vector.load %arg6[%c0_23, %c0_24] : memref<4x16xf32, #tpu.memory_space<vmem>>, vector<4x16xf32>
    tpu.vector_store %arg6[%c0_23, %c0_24], %53 {strides = array<i32>} : memref<4x16xf32, #tpu.memory_space<vmem>>, vector<4x16xf32>,
    %56 = arith.index_cast %c0_i32_2 : i32 to index
    %c0_25 = arith.constant 0 : index
    %c0_26 = arith.constant 0 : index
    %57 = vector.load %arg3[%56, %c0_25, %c0_26] : memref<8x4x16xf32, #tpu.memory_space<vmem>>, vector<1x4x16xf32>
    %58 = vector.shape_cast %57 : vector<1x4x16xf32> to vector<4x16xf32>
    %59 = arith.addf %58, %53 : vector<4x16xf32>
    %60 = arith.index_cast %c0_i32_2 : i32 to index
    %c0_27 = arith.constant 0 : index
    %c0_28 = arith.constant 0 : index
    %61 = vector.load %arg5[%60, %c0_27, %c0_28] : memref<8x4x16xf32, #tpu.memory_space<vmem>>, vector<1x4x16xf32>
    %62 = vector.shape_cast %61 : vector<1x4x16xf32> to vector<4x16xf32>
    %63 = vector.shape_cast %59 : vector<4x16xf32> to vector<1x4x16xf32>
    tpu.vector_store %arg5[%60, %c0_27, %c0_28], %63 {strides = array<i32>} : memref<8x4x16xf32, #tpu.memory_space<vmem>>, vector<1x4x16xf32>,
    %c1_i32 = arith.constant 1 : i32
    %64 = arith.index_cast %c1_i32 : i32 to index
    %c0_29 = arith.constant 0 : index
    %c0_30 = arith.constant 0 : index
    %65 = vector.load %arg2[%64, %c0_29, %c0_30] : memref<8x4x64xbf16, #tpu.memory_space<vmem>>, vector<1x4x64xbf16>
    %66 = vector.shape_cast %65 : vector<1x4x64xbf16> to vector<4x64xbf16>
    %67 = arith.extf %66 : vector<4x64xbf16> to vector<4x64xf32>
    %c0_31 = arith.constant 0 : index
    %c0_32 = arith.constant 0 : index
    %68 = vector.load %arg6[%c0_31, %c0_32] : memref<4x16xf32, #tpu.memory_space<vmem>>, vector<4x16xf32>
    %69 = arith.truncf %68 : vector<4x16xf32> to vector<4x16xbf16>
    %70 = vector.extract_strided_slice %67 {offsets = [0, 0], sizes = [4, 16], strides = [1, 1]} : vector<4x64xf32> to vector<4x16xf32>
    %cst_33 = arith.constant dense<0.000000e+00> : vector<4x16xf32>
    %71 = tpu.matmul %69, %4, %cst_33 {dimension_numbers = #tpu.dot_dimension_numbers<[1], [0], [0], [1], [0, 0, 1, 1], [], []>} : vector<4x16xbf16>, vector<16x16xbf16>, vector<4x16xf32> -> vector<4x16xf32>
    %72 = arith.addf %70, %71 : vector<4x16xf32>
    %73 = vector.extract_strided_slice %67 {offsets = [0, 16], sizes = [4, 16], strides = [1, 1]} : vector<4x64xf32> to vector<4x16xf32>
    %cst_34 = arith.constant dense<0.000000e+00> : vector<4x16xf32>
    %74 = tpu.matmul %69, %5, %cst_34 {dimension_numbers = #tpu.dot_dimension_numbers<[1], [0], [0], [1], [0, 0, 1, 1], [], []>} : vector<4x16xbf16>, vector<16x16xbf16>, vector<4x16xf32> -> vector<4x16xf32>
    %75 = arith.addf %73, %74 : vector<4x16xf32>
    %76 = vector.extract_strided_slice %67 {offsets = [0, 32], sizes = [4, 16], strides = [1, 1]} : vector<4x64xf32> to vector<4x16xf32>
    %cst_35 = arith.constant dense<0.000000e+00> : vector<4x16xf32>
    %77 = tpu.matmul %69, %6, %cst_35 {dimension_numbers = #tpu.dot_dimension_numbers<[1], [0], [0], [1], [0, 0, 1, 1], [], []>} : vector<4x16xbf16>, vector<16x16xbf16>, vector<4x16xf32> -> vector<4x16xf32>
    %78 = arith.addf %76, %77 : vector<4x16xf32>
    %79 = vector.extract_strided_slice %67 {offsets = [0, 48], sizes = [4, 16], strides = [1, 1]} : vector<4x64xf32> to vector<4x16xf32>
    %cst_36 = arith.constant dense<0.000000e+00> : vector<4x16xf32>
    %80 = tpu.matmul %69, %7, %cst_36 {dimension_numbers = #tpu.dot_dimension_numbers<[1], [0], [0], [1], [0, 0, 1, 1], [], []>} : vector<4x16xbf16>, vector<16x16xbf16>, vector<4x16xf32> -> vector<4x16xf32>
    %81 = arith.addf %79, %80 : vector<4x16xf32>
    %cst_37 = arith.constant 5.000000e-01 : f32
    %82 = vector.broadcast %cst_37 : f32 to vector<4x16xf32>
    %83 = arith.mulf %82, %72 : vector<4x16xf32>
    %84 = math.tanh %83 : vector<4x16xf32>
    %cst_38 = arith.constant 1.000000e+00 : f32
    %85 = vector.broadcast %cst_38 : f32 to vector<4x16xf32>
    %86 = arith.addf %84, %85 : vector<4x16xf32>
    %cst_39 = arith.constant 5.000000e-01 : f32
    %87 = vector.broadcast %cst_39 : f32 to vector<4x16xf32>
    %88 = arith.mulf %87, %86 : vector<4x16xf32>
    %cst_40 = arith.constant 5.000000e-01 : f32
    %89 = vector.broadcast %cst_40 : f32 to vector<4x16xf32>
    %90 = arith.mulf %89, %75 : vector<4x16xf32>
    %91 = math.tanh %90 : vector<4x16xf32>
    %cst_41 = arith.constant 1.000000e+00 : f32
    %92 = vector.broadcast %cst_41 : f32 to vector<4x16xf32>
    %93 = arith.addf %91, %92 : vector<4x16xf32>
    %cst_42 = arith.constant 5.000000e-01 : f32
    %94 = vector.broadcast %cst_42 : f32 to vector<4x16xf32>
    %95 = arith.mulf %94, %93 : vector<4x16xf32>
    %96 = math.tanh %78 : vector<4x16xf32>
    %cst_43 = arith.constant 5.000000e-01 : f32
    %97 = vector.broadcast %cst_43 : f32 to vector<4x16xf32>
    %98 = arith.mulf %97, %81 : vector<4x16xf32>
    %99 = math.tanh %98 : vector<4x16xf32>
    %cst_44 = arith.constant 1.000000e+00 : f32
    %100 = vector.broadcast %cst_44 : f32 to vector<4x16xf32>
    %101 = arith.addf %99, %100 : vector<4x16xf32>
    %cst_45 = arith.constant 5.000000e-01 : f32
    %102 = vector.broadcast %cst_45 : f32 to vector<4x16xf32>
    %103 = arith.mulf %102, %101 : vector<4x16xf32>
    %c0_46 = arith.constant 0 : index
    %c0_47 = arith.constant 0 : index
    %104 = vector.load %arg7[%c0_46, %c0_47] : memref<4x16xf32, #tpu.memory_space<vmem>>, vector<4x16xf32>
    %105 = arith.mulf %95, %104 : vector<4x16xf32>
    %106 = arith.mulf %88, %96 : vector<4x16xf32>
    %107 = arith.addf %105, %106 : vector<4x16xf32>
    %108 = math.tanh %107 : vector<4x16xf32>
    %109 = arith.mulf %103, %108 : vector<4x16xf32>
    %c0_48 = arith.constant 0 : index
    %c0_49 = arith.constant 0 : index
    %110 = vector.load %arg7[%c0_48, %c0_49] : memref<4x16xf32, #tpu.memory_space<vmem>>, vector<4x16xf32>
    tpu.vector_store %arg7[%c0_48, %c0_49], %107 {strides = array<i32>} : memref<4x16xf32, #tpu.memory_space<vmem>>, vector<4x16xf32>,
    %c0_50 = arith.constant 0 : index
    %c0_51 = arith.constant 0 : index
    %111 = vector.load %arg6[%c0_50, %c0_51] : memref<4x16xf32, #tpu.memory_space<vmem>>, vector<4x16xf32>
    tpu.vector_store %arg6[%c0_50, %c0_51], %109 {strides = array<i32>} : memref<4x16xf32, #tpu.memory_space<vmem>>, vector<4x16xf32>,
    %112 = arith.index_cast %c1_i32 : i32 to index
    %c0_52 = arith.constant 0 : index
    %c0_53 = arith.constant 0 : index
    %113 = vector.load %arg3[%112, %c0_52, %c0_53] : memref<8x4x16xf32, #tpu.memory_space<vmem>>, vector<1x4x16xf32>
    %114 = vector.shape_cast %113 : vector<1x4x16xf32> to vector<4x16xf32>
    %115 = arith.addf %114, %109 : vector<4x16xf32>
    %116 = arith.index_cast %c1_i32 : i32 to index
    %c0_54 = arith.constant 0 : index
    %c0_55 = arith.constant 0 : index
    %117 = vector.load %arg5[%116, %c0_54, %c0_55] : memref<8x4x16xf32, #tpu.memory_space<vmem>>, vector<1x4x16xf32>
    %118 = vector.shape_cast %117 : vector<1x4x16xf32> to vector<4x16xf32>
    %119 = vector.shape_cast %115 : vector<4x16xf32> to vector<1x4x16xf32>
    tpu.vector_store %arg5[%116, %c0_54, %c0_55], %119 {strides = array<i32>} : memref<8x4x16xf32, #tpu.memory_space<vmem>>, vector<1x4x16xf32>,
    %c2_i32 = arith.constant 2 : i32
    %120 = arith.index_cast %c2_i32 : i32 to index
    %c0_56 = arith.constant 0 : index
    %c0_57 = arith.constant 0 : index
    %121 = vector.load %arg2[%120, %c0_56, %c0_57] : memref<8x4x64xbf16, #tpu.memory_space<vmem>>, vector<1x4x64xbf16>
    %122 = vector.shape_cast %121 : vector<1x4x64xbf16> to vector<4x64xbf16>
    %123 = arith.extf %122 : vector<4x64xbf16> to vector<4x64xf32>
    %c0_58 = arith.constant 0 : index
    %c0_59 = arith.constant 0 : index
    %124 = vector.load %arg6[%c0_58, %c0_59] : memref<4x16xf32, #tpu.memory_space<vmem>>, vector<4x16xf32>
    %125 = arith.truncf %124 : vector<4x16xf32> to vector<4x16xbf16>
    %126 = vector.extract_strided_slice %123 {offsets = [0, 0], sizes = [4, 16], strides = [1, 1]} : vector<4x64xf32> to vector<4x16xf32>
    %cst_60 = arith.constant dense<0.000000e+00> : vector<4x16xf32>
    %127 = tpu.matmul %125, %4, %cst_60 {dimension_numbers = #tpu.dot_dimension_numbers<[1], [0], [0], [1], [0, 0, 1, 1], [], []>} : vector<4x16xbf16>, vector<16x16xbf16>, vector<4x16xf32> -> vector<4x16xf32>
    %128 = arith.addf %126, %127 : vector<4x16xf32>
    %129 = vector.extract_strided_slice %123 {offsets = [0, 16], sizes = [4, 16], strides = [1, 1]} : vector<4x64xf32> to vector<4x16xf32>
    %cst_61 = arith.constant dense<0.000000e+00> : vector<4x16xf32>
    %130 = tpu.matmul %125, %5, %cst_61 {dimension_numbers = #tpu.dot_dimension_numbers<[1], [0], [0], [1], [0, 0, 1, 1], [], []>} : vector<4x16xbf16>, vector<16x16xbf16>, vector<4x16xf32> -> vector<4x16xf32>
    %131 = arith.addf %129, %130 : vector<4x16xf32>
    %132 = vector.extract_strided_slice %123 {offsets = [0, 32], sizes = [4, 16], strides = [1, 1]} : vector<4x64xf32> to vector<4x16xf32>
    %cst_62 = arith.constant dense<0.000000e+00> : vector<4x16xf32>
    %133 = tpu.matmul %125, %6, %cst_62 {dimension_numbers = #tpu.dot_dimension_numbers<[1], [0], [0], [1], [0, 0, 1, 1], [], []>} : vector<4x16xbf16>, vector<16x16xbf16>, vector<4x16xf32> -> vector<4x16xf32>
    %134 = arith.addf %132, %133 : vector<4x16xf32>
    %135 = vector.extract_strided_slice %123 {offsets = [0, 48], sizes = [4, 16], strides = [1, 1]} : vector<4x64xf32> to vector<4x16xf32>
    %cst_63 = arith.constant dense<0.000000e+00> : vector<4x16xf32>
    %136 = tpu.matmul %125, %7, %cst_63 {dimension_numbers = #tpu.dot_dimension_numbers<[1], [0], [0], [1], [0, 0, 1, 1], [], []>} : vector<4x16xbf16>, vector<16x16xbf16>, vector<4x16xf32> -> vector<4x16xf32>
    %137 = arith.addf %135, %136 : vector<4x16xf32>
    %cst_64 = arith.constant 5.000000e-01 : f32
    %138 = vector.broadcast %cst_64 : f32 to vector<4x16xf32>
    %139 = arith.mulf %138, %128 : vector<4x16xf32>
    %140 = math.tanh %139 : vector<4x16xf32>
    %cst_65 = arith.constant 1.000000e+00 : f32
    %141 = vector.broadcast %cst_65 : f32 to vector<4x16xf32>
    %142 = arith.addf %140, %141 : vector<4x16xf32>
    %cst_66 = arith.constant 5.000000e-01 : f32
    %143 = vector.broadcast %cst_66 : f32 to vector<4x16xf32>
    %144 = arith.mulf %143, %142 : vector<4x16xf32>
    %cst_67 = arith.constant 5.000000e-01 : f32
    %145 = vector.broadcast %cst_67 : f32 to vector<4x16xf32>
    %146 = arith.mulf %145, %131 : vector<4x16xf32>
    %147 = math.tanh %146 : vector<4x16xf32>
    %cst_68 = arith.constant 1.000000e+00 : f32
    %148 = vector.broadcast %cst_68 : f32 to vector<4x16xf32>
    %149 = arith.addf %147, %148 : vector<4x16xf32>
    %cst_69 = arith.constant 5.000000e-01 : f32
    %150 = vector.broadcast %cst_69 : f32 to vector<4x16xf32>
    %151 = arith.mulf %150, %149 : vector<4x16xf32>
    %152 = math.tanh %134 : vector<4x16xf32>
    %cst_70 = arith.constant 5.000000e-01 : f32
    %153 = vector.broadcast %cst_70 : f32 to vector<4x16xf32>
    %154 = arith.mulf %153, %137 : vector<4x16xf32>
    %155 = math.tanh %154 : vector<4x16xf32>
    %cst_71 = arith.constant 1.000000e+00 : f32
    %156 = vector.broadcast %cst_71 : f32 to vector<4x16xf32>
    %157 = arith.addf %155, %156 : vector<4x16xf32>
    %cst_72 = arith.constant 5.000000e-01 : f32
    %158 = vector.broadcast %cst_72 : f32 to vector<4x16xf32>
    %159 = arith.mulf %158, %157 : vector<4x16xf32>
    %c0_73 = arith.constant 0 : index
    %c0_74 = arith.constant 0 : index
    %160 = vector.load %arg7[%c0_73, %c0_74] : memref<4x16xf32, #tpu.memory_space<vmem>>, vector<4x16xf32>
    %161 = arith.mulf %151, %160 : vector<4x16xf32>
    %162 = arith.mulf %144, %152 : vector<4x16xf32>
    %163 = arith.addf %161, %162 : vector<4x16xf32>
    %164 = math.tanh %163 : vector<4x16xf32>
    %165 = arith.mulf %159, %164 : vector<4x16xf32>
    %c0_75 = arith.constant 0 : index
    %c0_76 = arith.constant 0 : index
    %166 = vector.load %arg7[%c0_75, %c0_76] : memref<4x16xf32, #tpu.memory_space<vmem>>, vector<4x16xf32>
    tpu.vector_store %arg7[%c0_75, %c0_76], %163 {strides = array<i32>} : memref<4x16xf32, #tpu.memory_space<vmem>>, vector<4x16xf32>,
    %c0_77 = arith.constant 0 : index
    %c0_78 = arith.constant 0 : index
    %167 = vector.load %arg6[%c0_77, %c0_78] : memref<4x16xf32, #tpu.memory_space<vmem>>, vector<4x16xf32>
    tpu.vector_store %arg6[%c0_77, %c0_78], %165 {strides = array<i32>} : memref<4x16xf32, #tpu.memory_space<vmem>>, vector<4x16xf32>,
    %168 = arith.index_cast %c2_i32 : i32 to index
    %c0_79 = arith.constant 0 : index
    %c0_80 = arith.constant 0 : index
    %169 = vector.load %arg3[%168, %c0_79, %c0_80] : memref<8x4x16xf32, #tpu.memory_space<vmem>>, vector<1x4x16xf32>
    %170 = vector.shape_cast %169 : vector<1x4x16xf32> to vector<4x16xf32>
    %171 = arith.addf %170, %165 : vector<4x16xf32>
    %172 = arith.index_cast %c2_i32 : i32 to index
    %c0_81 = arith.constant 0 : index
    %c0_82 = arith.constant 0 : index
    %173 = vector.load %arg5[%172, %c0_81, %c0_82] : memref<8x4x16xf32, #tpu.memory_space<vmem>>, vector<1x4x16xf32>
    %174 = vector.shape_cast %173 : vector<1x4x16xf32> to vector<4x16xf32>
    %175 = vector.shape_cast %171 : vector<4x16xf32> to vector<1x4x16xf32>
    tpu.vector_store %arg5[%172, %c0_81, %c0_82], %175 {strides = array<i32>} : memref<8x4x16xf32, #tpu.memory_space<vmem>>, vector<1x4x16xf32>,
    %c3_i32 = arith.constant 3 : i32
    %176 = arith.index_cast %c3_i32 : i32 to index
    %c0_83 = arith.constant 0 : index
    %c0_84 = arith.constant 0 : index
    %177 = vector.load %arg2[%176, %c0_83, %c0_84] : memref<8x4x64xbf16, #tpu.memory_space<vmem>>, vector<1x4x64xbf16>
    %178 = vector.shape_cast %177 : vector<1x4x64xbf16> to vector<4x64xbf16>
    %179 = arith.extf %178 : vector<4x64xbf16> to vector<4x64xf32>
    %c0_85 = arith.constant 0 : index
    %c0_86 = arith.constant 0 : index
    %180 = vector.load %arg6[%c0_85, %c0_86] : memref<4x16xf32, #tpu.memory_space<vmem>>, vector<4x16xf32>
    %181 = arith.truncf %180 : vector<4x16xf32> to vector<4x16xbf16>
    %182 = vector.extract_strided_slice %179 {offsets = [0, 0], sizes = [4, 16], strides = [1, 1]} : vector<4x64xf32> to vector<4x16xf32>
    %cst_87 = arith.constant dense<0.000000e+00> : vector<4x16xf32>
    %183 = tpu.matmul %181, %4, %cst_87 {dimension_numbers = #tpu.dot_dimension_numbers<[1], [0], [0], [1], [0, 0, 1, 1], [], []>} : vector<4x16xbf16>, vector<16x16xbf16>, vector<4x16xf32> -> vector<4x16xf32>
    %184 = arith.addf %182, %183 : vector<4x16xf32>
    %185 = vector.extract_strided_slice %179 {offsets = [0, 16], sizes = [4, 16], strides = [1, 1]} : vector<4x64xf32> to vector<4x16xf32>
    %cst_88 = arith.constant dense<0.000000e+00> : vector<4x16xf32>
    %186 = tpu.matmul %181, %5, %cst_88 {dimension_numbers = #tpu.dot_dimension_numbers<[1], [0], [0], [1], [0, 0, 1, 1], [], []>} : vector<4x16xbf16>, vector<16x16xbf16>, vector<4x16xf32> -> vector<4x16xf32>
    %187 = arith.addf %185, %186 : vector<4x16xf32>
    %188 = vector.extract_strided_slice %179 {offsets = [0, 32], sizes = [4, 16], strides = [1, 1]} : vector<4x64xf32> to vector<4x16xf32>
    %cst_89 = arith.constant dense<0.000000e+00> : vector<4x16xf32>
    %189 = tpu.matmul %181, %6, %cst_89 {dimension_numbers = #tpu.dot_dimension_numbers<[1], [0], [0], [1], [0, 0, 1, 1], [], []>} : vector<4x16xbf16>, vector<16x16xbf16>, vector<4x16xf32> -> vector<4x16xf32>
    %190 = arith.addf %188, %189 : vector<4x16xf32>
    %191 = vector.extract_strided_slice %179 {offsets = [0, 48], sizes = [4, 16], strides = [1, 1]} : vector<4x64xf32> to vector<4x16xf32>
    %cst_90 = arith.constant dense<0.000000e+00> : vector<4x16xf32>
    %192 = tpu.matmul %181, %7, %cst_90 {dimension_numbers = #tpu.dot_dimension_numbers<[1], [0], [0], [1], [0, 0, 1, 1], [], []>} : vector<4x16xbf16>, vector<16x16xbf16>, vector<4x16xf32> -> vector<4x16xf32>
    %193 = arith.addf %191, %192 : vector<4x16xf32>
    %cst_91 = arith.constant 5.000000e-01 : f32
    %194 = vector.broadcast %cst_91 : f32 to vector<4x16xf32>
    %195 = arith.mulf %194, %184 : vector<4x16xf32>
    %196 = math.tanh %195 : vector<4x16xf32>
    %cst_92 = arith.constant 1.000000e+00 : f32
    %197 = vector.broadcast %cst_92 : f32 to vector<4x16xf32>
    %198 = arith.addf %196, %197 : vector<4x16xf32>
    %cst_93 = arith.constant 5.000000e-01 : f32
    %199 = vector.broadcast %cst_93 : f32 to vector<4x16xf32>
    %200 = arith.mulf %199, %198 : vector<4x16xf32>
    %cst_94 = arith.constant 5.000000e-01 : f32
    %201 = vector.broadcast %cst_94 : f32 to vector<4x16xf32>
    %202 = arith.mulf %201, %187 : vector<4x16xf32>
    %203 = math.tanh %202 : vector<4x16xf32>
    %cst_95 = arith.constant 1.000000e+00 : f32
    %204 = vector.broadcast %cst_95 : f32 to vector<4x16xf32>
    %205 = arith.addf %203, %204 : vector<4x16xf32>
    %cst_96 = arith.constant 5.000000e-01 : f32
    %206 = vector.broadcast %cst_96 : f32 to vector<4x16xf32>
    %207 = arith.mulf %206, %205 : vector<4x16xf32>
    %208 = math.tanh %190 : vector<4x16xf32>
    %cst_97 = arith.constant 5.000000e-01 : f32
    %209 = vector.broadcast %cst_97 : f32 to vector<4x16xf32>
    %210 = arith.mulf %209, %193 : vector<4x16xf32>
    %211 = math.tanh %210 : vector<4x16xf32>
    %cst_98 = arith.constant 1.000000e+00 : f32
    %212 = vector.broadcast %cst_98 : f32 to vector<4x16xf32>
    %213 = arith.addf %211, %212 : vector<4x16xf32>
    %cst_99 = arith.constant 5.000000e-01 : f32
    %214 = vector.broadcast %cst_99 : f32 to vector<4x16xf32>
    %215 = arith.mulf %214, %213 : vector<4x16xf32>
    %c0_100 = arith.constant 0 : index
    %c0_101 = arith.constant 0 : index
    %216 = vector.load %arg7[%c0_100, %c0_101] : memref<4x16xf32, #tpu.memory_space<vmem>>, vector<4x16xf32>
    %217 = arith.mulf %207, %216 : vector<4x16xf32>
    %218 = arith.mulf %200, %208 : vector<4x16xf32>
    %219 = arith.addf %217, %218 : vector<4x16xf32>
    %220 = math.tanh %219 : vector<4x16xf32>
    %221 = arith.mulf %215, %220 : vector<4x16xf32>
    %c0_102 = arith.constant 0 : index
    %c0_103 = arith.constant 0 : index
    %222 = vector.load %arg7[%c0_102, %c0_103] : memref<4x16xf32, #tpu.memory_space<vmem>>, vector<4x16xf32>
    tpu.vector_store %arg7[%c0_102, %c0_103], %219 {strides = array<i32>} : memref<4x16xf32, #tpu.memory_space<vmem>>, vector<4x16xf32>,
    %c0_104 = arith.constant 0 : index
    %c0_105 = arith.constant 0 : index
    %223 = vector.load %arg6[%c0_104, %c0_105] : memref<4x16xf32, #tpu.memory_space<vmem>>, vector<4x16xf32>
    tpu.vector_store %arg6[%c0_104, %c0_105], %221 {strides = array<i32>} : memref<4x16xf32, #tpu.memory_space<vmem>>, vector<4x16xf32>,
    %224 = arith.index_cast %c3_i32 : i32 to index
    %c0_106 = arith.constant 0 : index
    %c0_107 = arith.constant 0 : index
    %225 = vector.load %arg3[%224, %c0_106, %c0_107] : memref<8x4x16xf32, #tpu.memory_space<vmem>>, vector<1x4x16xf32>
    %226 = vector.shape_cast %225 : vector<1x4x16xf32> to vector<4x16xf32>
    %227 = arith.addf %226, %221 : vector<4x16xf32>
    %228 = arith.index_cast %c3_i32 : i32 to index
    %c0_108 = arith.constant 0 : index
    %c0_109 = arith.constant 0 : index
    %229 = vector.load %arg5[%228, %c0_108, %c0_109] : memref<8x4x16xf32, #tpu.memory_space<vmem>>, vector<1x4x16xf32>
    %230 = vector.shape_cast %229 : vector<1x4x16xf32> to vector<4x16xf32>
    %231 = vector.shape_cast %227 : vector<4x16xf32> to vector<1x4x16xf32>
    tpu.vector_store %arg5[%228, %c0_108, %c0_109], %231 {strides = array<i32>} : memref<8x4x16xf32, #tpu.memory_space<vmem>>, vector<1x4x16xf32>,
    %c4_i32 = arith.constant 4 : i32
    %232 = arith.index_cast %c4_i32 : i32 to index
    %c0_110 = arith.constant 0 : index
    %c0_111 = arith.constant 0 : index
    %233 = vector.load %arg2[%232, %c0_110, %c0_111] : memref<8x4x64xbf16, #tpu.memory_space<vmem>>, vector<1x4x64xbf16>
    %234 = vector.shape_cast %233 : vector<1x4x64xbf16> to vector<4x64xbf16>
    %235 = arith.extf %234 : vector<4x64xbf16> to vector<4x64xf32>
    %c0_112 = arith.constant 0 : index
    %c0_113 = arith.constant 0 : index
    %236 = vector.load %arg6[%c0_112, %c0_113] : memref<4x16xf32, #tpu.memory_space<vmem>>, vector<4x16xf32>
    %237 = arith.truncf %236 : vector<4x16xf32> to vector<4x16xbf16>
    %238 = vector.extract_strided_slice %235 {offsets = [0, 0], sizes = [4, 16], strides = [1, 1]} : vector<4x64xf32> to vector<4x16xf32>
    %cst_114 = arith.constant dense<0.000000e+00> : vector<4x16xf32>
    %239 = tpu.matmul %237, %4, %cst_114 {dimension_numbers = #tpu.dot_dimension_numbers<[1], [0], [0], [1], [0, 0, 1, 1], [], []>} : vector<4x16xbf16>, vector<16x16xbf16>, vector<4x16xf32> -> vector<4x16xf32>
    %240 = arith.addf %238, %239 : vector<4x16xf32>
    %241 = vector.extract_strided_slice %235 {offsets = [0, 16], sizes = [4, 16], strides = [1, 1]} : vector<4x64xf32> to vector<4x16xf32>
    %cst_115 = arith.constant dense<0.000000e+00> : vector<4x16xf32>
    %242 = tpu.matmul %237, %5, %cst_115 {dimension_numbers = #tpu.dot_dimension_numbers<[1], [0], [0], [1], [0, 0, 1, 1], [], []>} : vector<4x16xbf16>, vector<16x16xbf16>, vector<4x16xf32> -> vector<4x16xf32>
    %243 = arith.addf %241, %242 : vector<4x16xf32>
    %244 = vector.extract_strided_slice %235 {offsets = [0, 32], sizes = [4, 16], strides = [1, 1]} : vector<4x64xf32> to vector<4x16xf32>
    %cst_116 = arith.constant dense<0.000000e+00> : vector<4x16xf32>
    %245 = tpu.matmul %237, %6, %cst_116 {dimension_numbers = #tpu.dot_dimension_numbers<[1], [0], [0], [1], [0, 0, 1, 1], [], []>} : vector<4x16xbf16>, vector<16x16xbf16>, vector<4x16xf32> -> vector<4x16xf32>
    %246 = arith.addf %244, %245 : vector<4x16xf32>
    %247 = vector.extract_strided_slice %235 {offsets = [0, 48], sizes = [4, 16], strides = [1, 1]} : vector<4x64xf32> to vector<4x16xf32>
    %cst_117 = arith.constant dense<0.000000e+00> : vector<4x16xf32>
    %248 = tpu.matmul %237, %7, %cst_117 {dimension_numbers = #tpu.dot_dimension_numbers<[1], [0], [0], [1], [0, 0, 1, 1], [], []>} : vector<4x16xbf16>, vector<16x16xbf16>, vector<4x16xf32> -> vector<4x16xf32>
    %249 = arith.addf %247, %248 : vector<4x16xf32>
    %cst_118 = arith.constant 5.000000e-01 : f32
    %250 = vector.broadcast %cst_118 : f32 to vector<4x16xf32>
    %251 = arith.mulf %250, %240 : vector<4x16xf32>
    %252 = math.tanh %251 : vector<4x16xf32>
    %cst_119 = arith.constant 1.000000e+00 : f32
    %253 = vector.broadcast %cst_119 : f32 to vector<4x16xf32>
    %254 = arith.addf %252, %253 : vector<4x16xf32>
    %cst_120 = arith.constant 5.000000e-01 : f32
    %255 = vector.broadcast %cst_120 : f32 to vector<4x16xf32>
    %256 = arith.mulf %255, %254 : vector<4x16xf32>
    %cst_121 = arith.constant 5.000000e-01 : f32
    %257 = vector.broadcast %cst_121 : f32 to vector<4x16xf32>
    %258 = arith.mulf %257, %243 : vector<4x16xf32>
    %259 = math.tanh %258 : vector<4x16xf32>
    %cst_122 = arith.constant 1.000000e+00 : f32
    %260 = vector.broadcast %cst_122 : f32 to vector<4x16xf32>
    %261 = arith.addf %259, %260 : vector<4x16xf32>
    %cst_123 = arith.constant 5.000000e-01 : f32
    %262 = vector.broadcast %cst_123 : f32 to vector<4x16xf32>
    %263 = arith.mulf %262, %261 : vector<4x16xf32>
    %264 = math.tanh %246 : vector<4x16xf32>
    %cst_124 = arith.constant 5.000000e-01 : f32
    %265 = vector.broadcast %cst_124 : f32 to vector<4x16xf32>
    %266 = arith.mulf %265, %249 : vector<4x16xf32>
    %267 = math.tanh %266 : vector<4x16xf32>
    %cst_125 = arith.constant 1.000000e+00 : f32
    %268 = vector.broadcast %cst_125 : f32 to vector<4x16xf32>
    %269 = arith.addf %267, %268 : vector<4x16xf32>
    %cst_126 = arith.constant 5.000000e-01 : f32
    %270 = vector.broadcast %cst_126 : f32 to vector<4x16xf32>
    %271 = arith.mulf %270, %269 : vector<4x16xf32>
    %c0_127 = arith.constant 0 : index
    %c0_128 = arith.constant 0 : index
    %272 = vector.load %arg7[%c0_127, %c0_128] : memref<4x16xf32, #tpu.memory_space<vmem>>, vector<4x16xf32>
    %273 = arith.mulf %263, %272 : vector<4x16xf32>
    %274 = arith.mulf %256, %264 : vector<4x16xf32>
    %275 = arith.addf %273, %274 : vector<4x16xf32>
    %276 = math.tanh %275 : vector<4x16xf32>
    %277 = arith.mulf %271, %276 : vector<4x16xf32>
    %c0_129 = arith.constant 0 : index
    %c0_130 = arith.constant 0 : index
    %278 = vector.load %arg7[%c0_129, %c0_130] : memref<4x16xf32, #tpu.memory_space<vmem>>, vector<4x16xf32>
    tpu.vector_store %arg7[%c0_129, %c0_130], %275 {strides = array<i32>} : memref<4x16xf32, #tpu.memory_space<vmem>>, vector<4x16xf32>,
    %c0_131 = arith.constant 0 : index
    %c0_132 = arith.constant 0 : index
    %279 = vector.load %arg6[%c0_131, %c0_132] : memref<4x16xf32, #tpu.memory_space<vmem>>, vector<4x16xf32>
    tpu.vector_store %arg6[%c0_131, %c0_132], %277 {strides = array<i32>} : memref<4x16xf32, #tpu.memory_space<vmem>>, vector<4x16xf32>,
    %280 = arith.index_cast %c4_i32 : i32 to index
    %c0_133 = arith.constant 0 : index
    %c0_134 = arith.constant 0 : index
    %281 = vector.load %arg3[%280, %c0_133, %c0_134] : memref<8x4x16xf32, #tpu.memory_space<vmem>>, vector<1x4x16xf32>
    %282 = vector.shape_cast %281 : vector<1x4x16xf32> to vector<4x16xf32>
    %283 = arith.addf %282, %277 : vector<4x16xf32>
    %284 = arith.index_cast %c4_i32 : i32 to index
    %c0_135 = arith.constant 0 : index
    %c0_136 = arith.constant 0 : index
    %285 = vector.load %arg5[%284, %c0_135, %c0_136] : memref<8x4x16xf32, #tpu.memory_space<vmem>>, vector<1x4x16xf32>
    %286 = vector.shape_cast %285 : vector<1x4x16xf32> to vector<4x16xf32>
    %287 = vector.shape_cast %283 : vector<4x16xf32> to vector<1x4x16xf32>
    tpu.vector_store %arg5[%284, %c0_135, %c0_136], %287 {strides = array<i32>} : memref<8x4x16xf32, #tpu.memory_space<vmem>>, vector<1x4x16xf32>,
    %c5_i32 = arith.constant 5 : i32
    %288 = arith.index_cast %c5_i32 : i32 to index
    %c0_137 = arith.constant 0 : index
    %c0_138 = arith.constant 0 : index
    %289 = vector.load %arg2[%288, %c0_137, %c0_138] : memref<8x4x64xbf16, #tpu.memory_space<vmem>>, vector<1x4x64xbf16>
    %290 = vector.shape_cast %289 : vector<1x4x64xbf16> to vector<4x64xbf16>
    %291 = arith.extf %290 : vector<4x64xbf16> to vector<4x64xf32>
    %c0_139 = arith.constant 0 : index
    %c0_140 = arith.constant 0 : index
    %292 = vector.load %arg6[%c0_139, %c0_140] : memref<4x16xf32, #tpu.memory_space<vmem>>, vector<4x16xf32>
    %293 = arith.truncf %292 : vector<4x16xf32> to vector<4x16xbf16>
    %294 = vector.extract_strided_slice %291 {offsets = [0, 0], sizes = [4, 16], strides = [1, 1]} : vector<4x64xf32> to vector<4x16xf32>
    %cst_141 = arith.constant dense<0.000000e+00> : vector<4x16xf32>
    %295 = tpu.matmul %293, %4, %cst_141 {dimension_numbers = #tpu.dot_dimension_numbers<[1], [0], [0], [1], [0, 0, 1, 1], [], []>} : vector<4x16xbf16>, vector<16x16xbf16>, vector<4x16xf32> -> vector<4x16xf32>
    %296 = arith.addf %294, %295 : vector<4x16xf32>
    %297 = vector.extract_strided_slice %291 {offsets = [0, 16], sizes = [4, 16], strides = [1, 1]} : vector<4x64xf32> to vector<4x16xf32>
    %cst_142 = arith.constant dense<0.000000e+00> : vector<4x16xf32>
    %298 = tpu.matmul %293, %5, %cst_142 {dimension_numbers = #tpu.dot_dimension_numbers<[1], [0], [0], [1], [0, 0, 1, 1], [], []>} : vector<4x16xbf16>, vector<16x16xbf16>, vector<4x16xf32> -> vector<4x16xf32>
    %299 = arith.addf %297, %298 : vector<4x16xf32>
    %300 = vector.extract_strided_slice %291 {offsets = [0, 32], sizes = [4, 16], strides = [1, 1]} : vector<4x64xf32> to vector<4x16xf32>
    %cst_143 = arith.constant dense<0.000000e+00> : vector<4x16xf32>
    %301 = tpu.matmul %293, %6, %cst_143 {dimension_numbers = #tpu.dot_dimension_numbers<[1], [0], [0], [1], [0, 0, 1, 1], [], []>} : vector<4x16xbf16>, vector<16x16xbf16>, vector<4x16xf32> -> vector<4x16xf32>
    %302 = arith.addf %300, %301 : vector<4x16xf32>
    %303 = vector.extract_strided_slice %291 {offsets = [0, 48], sizes = [4, 16], strides = [1, 1]} : vector<4x64xf32> to vector<4x16xf32>
    %cst_144 = arith.constant dense<0.000000e+00> : vector<4x16xf32>
    %304 = tpu.matmul %293, %7, %cst_144 {dimension_numbers = #tpu.dot_dimension_numbers<[1], [0], [0], [1], [0, 0, 1, 1], [], []>} : vector<4x16xbf16>, vector<16x16xbf16>, vector<4x16xf32> -> vector<4x16xf32>
    %305 = arith.addf %303, %304 : vector<4x16xf32>
    %cst_145 = arith.constant 5.000000e-01 : f32
    %306 = vector.broadcast %cst_145 : f32 to vector<4x16xf32>
    %307 = arith.mulf %306, %296 : vector<4x16xf32>
    %308 = math.tanh %307 : vector<4x16xf32>
    %cst_146 = arith.constant 1.000000e+00 : f32
    %309 = vector.broadcast %cst_146 : f32 to vector<4x16xf32>
    %310 = arith.addf %308, %309 : vector<4x16xf32>
    %cst_147 = arith.constant 5.000000e-01 : f32
    %311 = vector.broadcast %cst_147 : f32 to vector<4x16xf32>
    %312 = arith.mulf %311, %310 : vector<4x16xf32>
    %cst_148 = arith.constant 5.000000e-01 : f32
    %313 = vector.broadcast %cst_148 : f32 to vector<4x16xf32>
    %314 = arith.mulf %313, %299 : vector<4x16xf32>
    %315 = math.tanh %314 : vector<4x16xf32>
    %cst_149 = arith.constant 1.000000e+00 : f32
    %316 = vector.broadcast %cst_149 : f32 to vector<4x16xf32>
    %317 = arith.addf %315, %316 : vector<4x16xf32>
    %cst_150 = arith.constant 5.000000e-01 : f32
    %318 = vector.broadcast %cst_150 : f32 to vector<4x16xf32>
    %319 = arith.mulf %318, %317 : vector<4x16xf32>
    %320 = math.tanh %302 : vector<4x16xf32>
    %cst_151 = arith.constant 5.000000e-01 : f32
    %321 = vector.broadcast %cst_151 : f32 to vector<4x16xf32>
    %322 = arith.mulf %321, %305 : vector<4x16xf32>
    %323 = math.tanh %322 : vector<4x16xf32>
    %cst_152 = arith.constant 1.000000e+00 : f32
    %324 = vector.broadcast %cst_152 : f32 to vector<4x16xf32>
    %325 = arith.addf %323, %324 : vector<4x16xf32>
    %cst_153 = arith.constant 5.000000e-01 : f32
    %326 = vector.broadcast %cst_153 : f32 to vector<4x16xf32>
    %327 = arith.mulf %326, %325 : vector<4x16xf32>
    %c0_154 = arith.constant 0 : index
    %c0_155 = arith.constant 0 : index
    %328 = vector.load %arg7[%c0_154, %c0_155] : memref<4x16xf32, #tpu.memory_space<vmem>>, vector<4x16xf32>
    %329 = arith.mulf %319, %328 : vector<4x16xf32>
    %330 = arith.mulf %312, %320 : vector<4x16xf32>
    %331 = arith.addf %329, %330 : vector<4x16xf32>
    %332 = math.tanh %331 : vector<4x16xf32>
    %333 = arith.mulf %327, %332 : vector<4x16xf32>
    %c0_156 = arith.constant 0 : index
    %c0_157 = arith.constant 0 : index
    %334 = vector.load %arg7[%c0_156, %c0_157] : memref<4x16xf32, #tpu.memory_space<vmem>>, vector<4x16xf32>
    tpu.vector_store %arg7[%c0_156, %c0_157], %331 {strides = array<i32>} : memref<4x16xf32, #tpu.memory_space<vmem>>, vector<4x16xf32>,
    %c0_158 = arith.constant 0 : index
    %c0_159 = arith.constant 0 : index
    %335 = vector.load %arg6[%c0_158, %c0_159] : memref<4x16xf32, #tpu.memory_space<vmem>>, vector<4x16xf32>
    tpu.vector_store %arg6[%c0_158, %c0_159], %333 {strides = array<i32>} : memref<4x16xf32, #tpu.memory_space<vmem>>, vector<4x16xf32>,
    %336 = arith.index_cast %c5_i32 : i32 to index
    %c0_160 = arith.constant 0 : index
    %c0_161 = arith.constant 0 : index
    %337 = vector.load %arg3[%336, %c0_160, %c0_161] : memref<8x4x16xf32, #tpu.memory_space<vmem>>, vector<1x4x16xf32>
    %338 = vector.shape_cast %337 : vector<1x4x16xf32> to vector<4x16xf32>
    %339 = arith.addf %338, %333 : vector<4x16xf32>
    %340 = arith.index_cast %c5_i32 : i32 to index
    %c0_162 = arith.constant 0 : index
    %c0_163 = arith.constant 0 : index
    %341 = vector.load %arg5[%340, %c0_162, %c0_163] : memref<8x4x16xf32, #tpu.memory_space<vmem>>, vector<1x4x16xf32>
    %342 = vector.shape_cast %341 : vector<1x4x16xf32> to vector<4x16xf32>
    %343 = vector.shape_cast %339 : vector<4x16xf32> to vector<1x4x16xf32>
    tpu.vector_store %arg5[%340, %c0_162, %c0_163], %343 {strides = array<i32>} : memref<8x4x16xf32, #tpu.memory_space<vmem>>, vector<1x4x16xf32>,
    %c6_i32 = arith.constant 6 : i32
    %344 = arith.index_cast %c6_i32 : i32 to index
    %c0_164 = arith.constant 0 : index
    %c0_165 = arith.constant 0 : index
    %345 = vector.load %arg2[%344, %c0_164, %c0_165] : memref<8x4x64xbf16, #tpu.memory_space<vmem>>, vector<1x4x64xbf16>
    %346 = vector.shape_cast %345 : vector<1x4x64xbf16> to vector<4x64xbf16>
    %347 = arith.extf %346 : vector<4x64xbf16> to vector<4x64xf32>
    %c0_166 = arith.constant 0 : index
    %c0_167 = arith.constant 0 : index
    %348 = vector.load %arg6[%c0_166, %c0_167] : memref<4x16xf32, #tpu.memory_space<vmem>>, vector<4x16xf32>
    %349 = arith.truncf %348 : vector<4x16xf32> to vector<4x16xbf16>
    %350 = vector.extract_strided_slice %347 {offsets = [0, 0], sizes = [4, 16], strides = [1, 1]} : vector<4x64xf32> to vector<4x16xf32>
    %cst_168 = arith.constant dense<0.000000e+00> : vector<4x16xf32>
    %351 = tpu.matmul %349, %4, %cst_168 {dimension_numbers = #tpu.dot_dimension_numbers<[1], [0], [0], [1], [0, 0, 1, 1], [], []>} : vector<4x16xbf16>, vector<16x16xbf16>, vector<4x16xf32> -> vector<4x16xf32>
    %352 = arith.addf %350, %351 : vector<4x16xf32>
    %353 = vector.extract_strided_slice %347 {offsets = [0, 16], sizes = [4, 16], strides = [1, 1]} : vector<4x64xf32> to vector<4x16xf32>
    %cst_169 = arith.constant dense<0.000000e+00> : vector<4x16xf32>
    %354 = tpu.matmul %349, %5, %cst_169 {dimension_numbers = #tpu.dot_dimension_numbers<[1], [0], [0], [1], [0, 0, 1, 1], [], []>} : vector<4x16xbf16>, vector<16x16xbf16>, vector<4x16xf32> -> vector<4x16xf32>
    %355 = arith.addf %353, %354 : vector<4x16xf32>
    %356 = vector.extract_strided_slice %347 {offsets = [0, 32], sizes = [4, 16], strides = [1, 1]} : vector<4x64xf32> to vector<4x16xf32>
    %cst_170 = arith.constant dense<0.000000e+00> : vector<4x16xf32>
    %357 = tpu.matmul %349, %6, %cst_170 {dimension_numbers = #tpu.dot_dimension_numbers<[1], [0], [0], [1], [0, 0, 1, 1], [], []>} : vector<4x16xbf16>, vector<16x16xbf16>, vector<4x16xf32> -> vector<4x16xf32>
    %358 = arith.addf %356, %357 : vector<4x16xf32>
    %359 = vector.extract_strided_slice %347 {offsets = [0, 48], sizes = [4, 16], strides = [1, 1]} : vector<4x64xf32> to vector<4x16xf32>
    %cst_171 = arith.constant dense<0.000000e+00> : vector<4x16xf32>
    %360 = tpu.matmul %349, %7, %cst_171 {dimension_numbers = #tpu.dot_dimension_numbers<[1], [0], [0], [1], [0, 0, 1, 1], [], []>} : vector<4x16xbf16>, vector<16x16xbf16>, vector<4x16xf32> -> vector<4x16xf32>
    %361 = arith.addf %359, %360 : vector<4x16xf32>
    %cst_172 = arith.constant 5.000000e-01 : f32
    %362 = vector.broadcast %cst_172 : f32 to vector<4x16xf32>
    %363 = arith.mulf %362, %352 : vector<4x16xf32>
    %364 = math.tanh %363 : vector<4x16xf32>
    %cst_173 = arith.constant 1.000000e+00 : f32
    %365 = vector.broadcast %cst_173 : f32 to vector<4x16xf32>
    %366 = arith.addf %364, %365 : vector<4x16xf32>
    %cst_174 = arith.constant 5.000000e-01 : f32
    %367 = vector.broadcast %cst_174 : f32 to vector<4x16xf32>
    %368 = arith.mulf %367, %366 : vector<4x16xf32>
    %cst_175 = arith.constant 5.000000e-01 : f32
    %369 = vector.broadcast %cst_175 : f32 to vector<4x16xf32>
    %370 = arith.mulf %369, %355 : vector<4x16xf32>
    %371 = math.tanh %370 : vector<4x16xf32>
    %cst_176 = arith.constant 1.000000e+00 : f32
    %372 = vector.broadcast %cst_176 : f32 to vector<4x16xf32>
    %373 = arith.addf %371, %372 : vector<4x16xf32>
    %cst_177 = arith.constant 5.000000e-01 : f32
    %374 = vector.broadcast %cst_177 : f32 to vector<4x16xf32>
    %375 = arith.mulf %374, %373 : vector<4x16xf32>
    %376 = math.tanh %358 : vector<4x16xf32>
    %cst_178 = arith.constant 5.000000e-01 : f32
    %377 = vector.broadcast %cst_178 : f32 to vector<4x16xf32>
    %378 = arith.mulf %377, %361 : vector<4x16xf32>
    %379 = math.tanh %378 : vector<4x16xf32>
    %cst_179 = arith.constant 1.000000e+00 : f32
    %380 = vector.broadcast %cst_179 : f32 to vector<4x16xf32>
    %381 = arith.addf %379, %380 : vector<4x16xf32>
    %cst_180 = arith.constant 5.000000e-01 : f32
    %382 = vector.broadcast %cst_180 : f32 to vector<4x16xf32>
    %383 = arith.mulf %382, %381 : vector<4x16xf32>
    %c0_181 = arith.constant 0 : index
    %c0_182 = arith.constant 0 : index
    %384 = vector.load %arg7[%c0_181, %c0_182] : memref<4x16xf32, #tpu.memory_space<vmem>>, vector<4x16xf32>
    %385 = arith.mulf %375, %384 : vector<4x16xf32>
    %386 = arith.mulf %368, %376 : vector<4x16xf32>
    %387 = arith.addf %385, %386 : vector<4x16xf32>
    %388 = math.tanh %387 : vector<4x16xf32>
    %389 = arith.mulf %383, %388 : vector<4x16xf32>
    %c0_183 = arith.constant 0 : index
    %c0_184 = arith.constant 0 : index
    %390 = vector.load %arg7[%c0_183, %c0_184] : memref<4x16xf32, #tpu.memory_space<vmem>>, vector<4x16xf32>
    tpu.vector_store %arg7[%c0_183, %c0_184], %387 {strides = array<i32>} : memref<4x16xf32, #tpu.memory_space<vmem>>, vector<4x16xf32>,
    %c0_185 = arith.constant 0 : index
    %c0_186 = arith.constant 0 : index
    %391 = vector.load %arg6[%c0_185, %c0_186] : memref<4x16xf32, #tpu.memory_space<vmem>>, vector<4x16xf32>
    tpu.vector_store %arg6[%c0_185, %c0_186], %389 {strides = array<i32>} : memref<4x16xf32, #tpu.memory_space<vmem>>, vector<4x16xf32>,
    %392 = arith.index_cast %c6_i32 : i32 to index
    %c0_187 = arith.constant 0 : index
    %c0_188 = arith.constant 0 : index
    %393 = vector.load %arg3[%392, %c0_187, %c0_188] : memref<8x4x16xf32, #tpu.memory_space<vmem>>, vector<1x4x16xf32>
    %394 = vector.shape_cast %393 : vector<1x4x16xf32> to vector<4x16xf32>
    %395 = arith.addf %394, %389 : vector<4x16xf32>
    %396 = arith.index_cast %c6_i32 : i32 to index
    %c0_189 = arith.constant 0 : index
    %c0_190 = arith.constant 0 : index
    %397 = vector.load %arg5[%396, %c0_189, %c0_190] : memref<8x4x16xf32, #tpu.memory_space<vmem>>, vector<1x4x16xf32>
    %398 = vector.shape_cast %397 : vector<1x4x16xf32> to vector<4x16xf32>
    %399 = vector.shape_cast %395 : vector<4x16xf32> to vector<1x4x16xf32>
    tpu.vector_store %arg5[%396, %c0_189, %c0_190], %399 {strides = array<i32>} : memref<8x4x16xf32, #tpu.memory_space<vmem>>, vector<1x4x16xf32>,
    %c7_i32 = arith.constant 7 : i32
    %400 = arith.index_cast %c7_i32 : i32 to index
    %c0_191 = arith.constant 0 : index
    %c0_192 = arith.constant 0 : index
    %401 = vector.load %arg2[%400, %c0_191, %c0_192] : memref<8x4x64xbf16, #tpu.memory_space<vmem>>, vector<1x4x64xbf16>
    %402 = vector.shape_cast %401 : vector<1x4x64xbf16> to vector<4x64xbf16>
    %403 = arith.extf %402 : vector<4x64xbf16> to vector<4x64xf32>
    %c0_193 = arith.constant 0 : index
    %c0_194 = arith.constant 0 : index
    %404 = vector.load %arg6[%c0_193, %c0_194] : memref<4x16xf32, #tpu.memory_space<vmem>>, vector<4x16xf32>
    %405 = arith.truncf %404 : vector<4x16xf32> to vector<4x16xbf16>
    %406 = vector.extract_strided_slice %403 {offsets = [0, 0], sizes = [4, 16], strides = [1, 1]} : vector<4x64xf32> to vector<4x16xf32>
    %cst_195 = arith.constant dense<0.000000e+00> : vector<4x16xf32>
    %407 = tpu.matmul %405, %4, %cst_195 {dimension_numbers = #tpu.dot_dimension_numbers<[1], [0], [0], [1], [0, 0, 1, 1], [], []>} : vector<4x16xbf16>, vector<16x16xbf16>, vector<4x16xf32> -> vector<4x16xf32>
    %408 = arith.addf %406, %407 : vector<4x16xf32>
    %409 = vector.extract_strided_slice %403 {offsets = [0, 16], sizes = [4, 16], strides = [1, 1]} : vector<4x64xf32> to vector<4x16xf32>
    %cst_196 = arith.constant dense<0.000000e+00> : vector<4x16xf32>
    %410 = tpu.matmul %405, %5, %cst_196 {dimension_numbers = #tpu.dot_dimension_numbers<[1], [0], [0], [1], [0, 0, 1, 1], [], []>} : vector<4x16xbf16>, vector<16x16xbf16>, vector<4x16xf32> -> vector<4x16xf32>
    %411 = arith.addf %409, %410 : vector<4x16xf32>
    %412 = vector.extract_strided_slice %403 {offsets = [0, 32], sizes = [4, 16], strides = [1, 1]} : vector<4x64xf32> to vector<4x16xf32>
    %cst_197 = arith.constant dense<0.000000e+00> : vector<4x16xf32>
    %413 = tpu.matmul %405, %6, %cst_197 {dimension_numbers = #tpu.dot_dimension_numbers<[1], [0], [0], [1], [0, 0, 1, 1], [], []>} : vector<4x16xbf16>, vector<16x16xbf16>, vector<4x16xf32> -> vector<4x16xf32>
    %414 = arith.addf %412, %413 : vector<4x16xf32>
    %415 = vector.extract_strided_slice %403 {offsets = [0, 48], sizes = [4, 16], strides = [1, 1]} : vector<4x64xf32> to vector<4x16xf32>
    %cst_198 = arith.constant dense<0.000000e+00> : vector<4x16xf32>
    %416 = tpu.matmul %405, %7, %cst_198 {dimension_numbers = #tpu.dot_dimension_numbers<[1], [0], [0], [1], [0, 0, 1, 1], [], []>} : vector<4x16xbf16>, vector<16x16xbf16>, vector<4x16xf32> -> vector<4x16xf32>
    %417 = arith.addf %415, %416 : vector<4x16xf32>
    %cst_199 = arith.constant 5.000000e-01 : f32
    %418 = vector.broadcast %cst_199 : f32 to vector<4x16xf32>
    %419 = arith.mulf %418, %408 : vector<4x16xf32>
    %420 = math.tanh %419 : vector<4x16xf32>
    %cst_200 = arith.constant 1.000000e+00 : f32
    %421 = vector.broadcast %cst_200 : f32 to vector<4x16xf32>
    %422 = arith.addf %420, %421 : vector<4x16xf32>
    %cst_201 = arith.constant 5.000000e-01 : f32
    %423 = vector.broadcast %cst_201 : f32 to vector<4x16xf32>
    %424 = arith.mulf %423, %422 : vector<4x16xf32>
    %cst_202 = arith.constant 5.000000e-01 : f32
    %425 = vector.broadcast %cst_202 : f32 to vector<4x16xf32>
    %426 = arith.mulf %425, %411 : vector<4x16xf32>
    %427 = math.tanh %426 : vector<4x16xf32>
    %cst_203 = arith.constant 1.000000e+00 : f32
    %428 = vector.broadcast %cst_203 : f32 to vector<4x16xf32>
    %429 = arith.addf %427, %428 : vector<4x16xf32>
    %cst_204 = arith.constant 5.000000e-01 : f32
    %430 = vector.broadcast %cst_204 : f32 to vector<4x16xf32>
    %431 = arith.mulf %430, %429 : vector<4x16xf32>
    %432 = math.tanh %414 : vector<4x16xf32>
    %cst_205 = arith.constant 5.000000e-01 : f32
    %433 = vector.broadcast %cst_205 : f32 to vector<4x16xf32>
    %434 = arith.mulf %433, %417 : vector<4x16xf32>
    %435 = math.tanh %434 : vector<4x16xf32>
    %cst_206 = arith.constant 1.000000e+00 : f32
    %436 = vector.broadcast %cst_206 : f32 to vector<4x16xf32>
    %437 = arith.addf %435, %436 : vector<4x16xf32>
    %cst_207 = arith.constant 5.000000e-01 : f32
    %438 = vector.broadcast %cst_207 : f32 to vector<4x16xf32>
    %439 = arith.mulf %438, %437 : vector<4x16xf32>
    %c0_208 = arith.constant 0 : index
    %c0_209 = arith.constant 0 : index
    %440 = vector.load %arg7[%c0_208, %c0_209] : memref<4x16xf32, #tpu.memory_space<vmem>>, vector<4x16xf32>
    %441 = arith.mulf %431, %440 : vector<4x16xf32>
    %442 = arith.mulf %424, %432 : vector<4x16xf32>
    %443 = arith.addf %441, %442 : vector<4x16xf32>
    %444 = math.tanh %443 : vector<4x16xf32>
    %445 = arith.mulf %439, %444 : vector<4x16xf32>
    %c0_210 = arith.constant 0 : index
    %c0_211 = arith.constant 0 : index
    %446 = vector.load %arg7[%c0_210, %c0_211] : memref<4x16xf32, #tpu.memory_space<vmem>>, vector<4x16xf32>
    tpu.vector_store %arg7[%c0_210, %c0_211], %443 {strides = array<i32>} : memref<4x16xf32, #tpu.memory_space<vmem>>, vector<4x16xf32>,
    %c0_212 = arith.constant 0 : index
    %c0_213 = arith.constant 0 : index
    %447 = vector.load %arg6[%c0_212, %c0_213] : memref<4x16xf32, #tpu.memory_space<vmem>>, vector<4x16xf32>
    tpu.vector_store %arg6[%c0_212, %c0_213], %445 {strides = array<i32>} : memref<4x16xf32, #tpu.memory_space<vmem>>, vector<4x16xf32>,
    %448 = arith.index_cast %c7_i32 : i32 to index
    %c0_214 = arith.constant 0 : index
    %c0_215 = arith.constant 0 : index
    %449 = vector.load %arg3[%448, %c0_214, %c0_215] : memref<8x4x16xf32, #tpu.memory_space<vmem>>, vector<1x4x16xf32>
    %450 = vector.shape_cast %449 : vector<1x4x16xf32> to vector<4x16xf32>
    %451 = arith.addf %450, %445 : vector<4x16xf32>
    %452 = arith.index_cast %c7_i32 : i32 to index
    %c0_216 = arith.constant 0 : index
    %c0_217 = arith.constant 0 : index
    %453 = vector.load %arg5[%452, %c0_216, %c0_217] : memref<8x4x16xf32, #tpu.memory_space<vmem>>, vector<1x4x16xf32>
    %454 = vector.shape_cast %453 : vector<1x4x16xf32> to vector<4x16xf32>
    %455 = vector.shape_cast %451 : vector<4x16xf32> to vector<1x4x16xf32>
    tpu.vector_store %arg5[%452, %c0_216, %c0_217], %455 {strides = array<i32>} : memref<8x4x16xf32, #tpu.memory_space<vmem>>, vector<1x4x16xf32>,
    %c8_i32 = arith.constant 8 : i32
    return
  }
  func.func @transform_0(%arg0: i32, %arg1: i32) -> (i32, i32, i32) {
    %c0_i32 = arith.constant 0 : i32
    %c0_i32_0 = arith.constant 0 : i32
    return %arg1, %arg0, %c0_i32 : i32, i32, i32
  }
  func.func @transform_1(%arg0: i32, %arg1: i32) -> (i32, i32, i32) {
    %c0_i32 = arith.constant 0 : i32
    %c0_i32_0 = arith.constant 0 : i32
    return %arg1, %arg0, %c0_i32 : i32, i32, i32
  }
  func.func @transform_2(%arg0: i32, %arg1: i32) -> (i32, i32) {
    %c0_i32 = arith.constant 0 : i32
    %c0_i32_0 = arith.constant 0 : i32
    %c0_i32_1 = arith.constant 0 : i32
    return %c0_i32, %c0_i32_0 : i32, i32
  }
  func.func @transform_3(%arg0: i32, %arg1: i32) -> (i32, i32, i32) {
    %c0_i32 = arith.constant 0 : i32
    %c0_i32_0 = arith.constant 0 : i32
    return %arg1, %arg0, %c0_i32 : i32, i32, i32
  }
}

module attributes {stable_mosaic.version = 11 : i64} {
  func.func @_linear_kernel(%arg0: i32, %arg1: i32, %arg2: i32, %arg3: memref<16x32xf32, #tpu.memory_space<vmem>>, %arg4: memref<32x32xbf16, #tpu.memory_space<vmem>>, %arg5: memref<1x32xf32, #tpu.memory_space<vmem>>, %arg6: memref<16x32xf32, #tpu.memory_space<vmem>>, %arg7: memref<16x32xf32, #tpu.memory_space<vmem>>) attributes {dimension_semantics = [#tpu.dimension_semantics<parallel>, #tpu.dimension_semantics<parallel>, #tpu.dimension_semantics<arbitrary>], iteration_bounds = array<i64: 1, 1, 1>, scalar_prefetch = 0 : i64, scratch_operands = 1 : i64, tpu.core_type = #tpu.core_type<tc>, window_params = [{transform_indices = @transform_0, window_bounds = array<i64: 16, 32>}, {transform_indices = @transform_1, window_bounds = array<i64: 32, 32>}, {transform_indices = @transform_2, window_bounds = array<i64: 1, 32>}, {transform_indices = @transform_3, window_bounds = array<i64: 16, 32>}]} {
    %c0_i32 = arith.constant 0 : i32
    %0 = arith.cmpi eq, %arg2, %c0_i32 : i32
    %1 = arith.extui %0 : i1 to i32
    %c0_i32_0 = arith.constant 0 : i32
    %2 = arith.cmpi ne, %1, %c0_i32_0 : i32
    scf.if %2 {
      %cst_10 = arith.constant 0.000000e+00 : f32
      %13 = vector.broadcast %cst_10 : f32 to vector<16x32xf32>
      %c0_11 = arith.constant 0 : index
      %c0_12 = arith.constant 0 : index
      %14 = vector.load %arg7[%c0_11, %c0_12] : memref<16x32xf32, #tpu.memory_space<vmem>>, vector<16x32xf32>
      tpu.vector_store %arg7[%c0_11, %c0_12], %13 {strides = array<i32>} : memref<16x32xf32, #tpu.memory_space<vmem>>, vector<16x32xf32>,
    } else {
    }
    %c0 = arith.constant 0 : index
    %c0_1 = arith.constant 0 : index
    %3 = vector.load %arg7[%c0, %c0_1] : memref<16x32xf32, #tpu.memory_space<vmem>>, vector<16x32xf32>
    %c0_2 = arith.constant 0 : index
    %c0_3 = arith.constant 0 : index
    %4 = vector.load %arg3[%c0_2, %c0_3] : memref<16x32xf32, #tpu.memory_space<vmem>>, vector<16x32xf32>
    %5 = arith.truncf %4 : vector<16x32xf32> to vector<16x32xbf16>
    %c0_4 = arith.constant 0 : index
    %c0_5 = arith.constant 0 : index
    %6 = vector.load %arg4[%c0_4, %c0_5] : memref<32x32xbf16, #tpu.memory_space<vmem>>, vector<32x32xbf16>
    %cst = arith.constant dense<0.000000e+00> : vector<16x32xf32>
    %7 = tpu.matmul %5, %6, %cst {dimension_numbers = #tpu.dot_dimension_numbers<[1], [0], [0], [1], [0, 0, 1, 1], [], []>} : vector<16x32xbf16>, vector<32x32xbf16>, vector<16x32xf32> -> vector<16x32xf32>
    %8 = arith.addf %3, %7 : vector<16x32xf32>
    %c0_6 = arith.constant 0 : index
    %c0_7 = arith.constant 0 : index
    %9 = vector.load %arg7[%c0_6, %c0_7] : memref<16x32xf32, #tpu.memory_space<vmem>>, vector<16x32xf32>
    tpu.vector_store %arg7[%c0_6, %c0_7], %8 {strides = array<i32>} : memref<16x32xf32, #tpu.memory_space<vmem>>, vector<16x32xf32>,
    %c0_i32_8 = arith.constant 0 : i32
    %10 = arith.cmpi eq, %arg2, %c0_i32_8 : i32
    %11 = arith.extui %10 : i1 to i32
    %c0_i32_9 = arith.constant 0 : i32
    %12 = arith.cmpi ne, %11, %c0_i32_9 : i32
    scf.if %12 {
      %c0_10 = arith.constant 0 : index
      %c0_11 = arith.constant 0 : index
      %13 = vector.load %arg7[%c0_10, %c0_11] : memref<16x32xf32, #tpu.memory_space<vmem>>, vector<16x32xf32>
      %c0_12 = arith.constant 0 : index
      %c0_13 = arith.constant 0 : index
      %14 = vector.load %arg5[%c0_12, %c0_13] : memref<1x32xf32, #tpu.memory_space<vmem>>, vector<1x32xf32>
      %15 = vector.broadcast %14 : vector<1x32xf32> to vector<16x32xf32>
      %16 = arith.addf %13, %15 : vector<16x32xf32>
      %c0_14 = arith.constant 0 : index
      %c0_15 = arith.constant 0 : index
      %17 = vector.load %arg6[%c0_14, %c0_15] : memref<16x32xf32, #tpu.memory_space<vmem>>, vector<16x32xf32>
      tpu.vector_store %arg6[%c0_14, %c0_15], %16 {strides = array<i32>} : memref<16x32xf32, #tpu.memory_space<vmem>>, vector<16x32xf32>,
    } else {
    }
    return
  }
  func.func @transform_0(%arg0: i32, %arg1: i32, %arg2: i32) -> (i32, i32) {
    %c0_i32 = arith.constant 0 : i32
    return %arg0, %arg2 : i32, i32
  }
  func.func @transform_1(%arg0: i32, %arg1: i32, %arg2: i32) -> (i32, i32) {
    %c0_i32 = arith.constant 0 : i32
    return %arg2, %arg1 : i32, i32
  }
  func.func @transform_2(%arg0: i32, %arg1: i32, %arg2: i32) -> (i32, i32) {
    %c0_i32 = arith.constant 0 : i32
    %c0_i32_0 = arith.constant 0 : i32
    return %c0_i32, %arg1 : i32, i32
  }
  func.func @transform_3(%arg0: i32, %arg1: i32, %arg2: i32) -> (i32, i32) {
    %c0_i32 = arith.constant 0 : i32
    return %arg0, %arg1 : i32, i32
  }
}

module attributes {stable_mosaic.version = 11 : i64} {
  func.func @_head_kernel(%arg0: i32, %arg1: memref<16x32xf32, #tpu.memory_space<vmem>>, %arg2: memref<16x32xf32, #tpu.memory_space<vmem>>, %arg3: memref<32x32xbf16, #tpu.memory_space<vmem>>, %arg4: memref<1x32xf32, #tpu.memory_space<vmem>>, %arg5: memref<32x32xbf16, #tpu.memory_space<vmem>>, %arg6: memref<1x32xf32, #tpu.memory_space<vmem>>, %arg7: memref<1x32xf32, #tpu.memory_space<vmem>>, %arg8: memref<1x32xf32, #tpu.memory_space<vmem>>, %arg9: memref<16x32xf32, #tpu.memory_space<vmem>>) attributes {dimension_semantics = [#tpu.dimension_semantics<parallel>], iteration_bounds = array<i64: 1>, scalar_prefetch = 0 : i64, scratch_operands = 0 : i64, tpu.core_type = #tpu.core_type<tc>, window_params = [{transform_indices = @transform_0, window_bounds = array<i64: 16, 32>}, {transform_indices = @transform_1, window_bounds = array<i64: 16, 32>}, {pipeline_mode = #tpu.pipeline_mode<synchronous>, transform_indices = @transform_2, window_bounds = array<i64: 32, 32>}, {pipeline_mode = #tpu.pipeline_mode<synchronous>, transform_indices = @transform_3, window_bounds = array<i64: 1, 32>}, {pipeline_mode = #tpu.pipeline_mode<synchronous>, transform_indices = @transform_4, window_bounds = array<i64: 32, 32>}, {pipeline_mode = #tpu.pipeline_mode<synchronous>, transform_indices = @transform_5, window_bounds = array<i64: 1, 32>}, {pipeline_mode = #tpu.pipeline_mode<synchronous>, transform_indices = @transform_6, window_bounds = array<i64: 1, 32>}, {pipeline_mode = #tpu.pipeline_mode<synchronous>, transform_indices = @transform_7, window_bounds = array<i64: 1, 32>}, {transform_indices = @transform_8, window_bounds = array<i64: 16, 32>}]} {
    %c0 = arith.constant 0 : index
    %c0_0 = arith.constant 0 : index
    %0 = vector.load %arg1[%c0, %c0_0] : memref<16x32xf32, #tpu.memory_space<vmem>>, vector<16x32xf32>
    %1 = arith.truncf %0 : vector<16x32xf32> to vector<16x32xbf16>
    %c0_1 = arith.constant 0 : index
    %c0_2 = arith.constant 0 : index
    %2 = vector.load %arg3[%c0_1, %c0_2] : memref<32x32xbf16, #tpu.memory_space<vmem>>, vector<32x32xbf16>
    %cst = arith.constant dense<0.000000e+00> : vector<16x32xf32>
    %3 = tpu.matmul %1, %2, %cst {dimension_numbers = #tpu.dot_dimension_numbers<[1], [0], [0], [1], [0, 0, 1, 1], [], []>} : vector<16x32xbf16>, vector<32x32xbf16>, vector<16x32xf32> -> vector<16x32xf32>
    %c0_3 = arith.constant 0 : index
    %c0_4 = arith.constant 0 : index
    %4 = vector.load %arg4[%c0_3, %c0_4] : memref<1x32xf32, #tpu.memory_space<vmem>>, vector<1x32xf32>
    %5 = vector.broadcast %4 : vector<1x32xf32> to vector<16x32xf32>
    %6 = arith.addf %3, %5 : vector<16x32xf32>
    %cst_5 = arith.constant 5.000000e-01 : f32
    %7 = vector.broadcast %cst_5 : f32 to vector<16x32xf32>
    %8 = arith.mulf %7, %6 : vector<16x32xf32>
    %cst_6 = arith.constant 0.707106769 : f32
    %9 = vector.broadcast %cst_6 : f32 to vector<16x32xf32>
    %10 = arith.mulf %6, %9 : vector<16x32xf32>
    %11 = math.absf %10 : vector<16x32xf32>
    %cst_7 = arith.constant 0.327591091 : f32
    %12 = vector.broadcast %cst_7 : f32 to vector<16x32xf32>
    %13 = arith.mulf %12, %11 : vector<16x32xf32>
    %cst_8 = arith.constant 1.000000e+00 : f32
    %14 = vector.broadcast %cst_8 : f32 to vector<16x32xf32>
    %15 = arith.addf %14, %13 : vector<16x32xf32>
    %cst_9 = arith.constant 1.000000e+00 : f32
    %16 = vector.broadcast %cst_9 : f32 to vector<16x32xf32>
    %17 = arith.divf %16, %15 : vector<16x32xf32>
    %cst_10 = arith.constant 1.06140542 : f32
    %18 = vector.broadcast %cst_10 : f32 to vector<16x32xf32>
    %19 = arith.mulf %17, %18 : vector<16x32xf32>
    %cst_11 = arith.constant -1.45315206 : f32
    %20 = vector.broadcast %cst_11 : f32 to vector<16x32xf32>
    %21 = arith.addf %20, %19 : vector<16x32xf32>
    %22 = arith.mulf %17, %21 : vector<16x32xf32>
    %cst_12 = arith.constant 1.42141378 : f32
    %23 = vector.broadcast %cst_12 : f32 to vector<16x32xf32>
    %24 = arith.addf %23, %22 : vector<16x32xf32>
    %25 = arith.mulf %17, %24 : vector<16x32xf32>
    %cst_13 = arith.constant -0.284496725 : f32
    %26 = vector.broadcast %cst_13 : f32 to vector<16x32xf32>
    %27 = arith.addf %26, %25 : vector<16x32xf32>
    %28 = arith.mulf %17, %27 : vector<16x32xf32>
    %cst_14 = arith.constant 0.254829586 : f32
    %29 = vector.broadcast %cst_14 : f32 to vector<16x32xf32>
    %30 = arith.addf %29, %28 : vector<16x32xf32>
    %31 = arith.mulf %17, %30 : vector<16x32xf32>
    %cst_15 = arith.constant 0.000000e+00 : f32
    %32 = vector.broadcast %cst_15 : f32 to vector<16x32xf32>
    %33 = arith.subf %32, %11 : vector<16x32xf32>
    %34 = arith.mulf %33, %11 : vector<16x32xf32>
    %35 = math.exp %34 : vector<16x32xf32>
    %36 = arith.mulf %31, %35 : vector<16x32xf32>
    %cst_16 = arith.constant 1.000000e+00 : f32
    %37 = vector.broadcast %cst_16 : f32 to vector<16x32xf32>
    %38 = arith.subf %37, %36 : vector<16x32xf32>
    %cst_17 = arith.constant 0.000000e+00 : f32
    %39 = vector.broadcast %cst_17 : f32 to vector<16x32xf32>
    %40 = arith.cmpf oge, %10, %39 : vector<16x32xf32>
    %cst_18 = arith.constant 0.000000e+00 : f32
    %41 = vector.broadcast %cst_18 : f32 to vector<16x32xf32>
    %42 = arith.subf %41, %38 : vector<16x32xf32>
    %43 = arith.select %40, %38, %42 : vector<16x32xi1>, vector<16x32xf32>
    %cst_19 = arith.constant 1.000000e+00 : f32
    %44 = vector.broadcast %cst_19 : f32 to vector<16x32xf32>
    %45 = arith.addf %44, %43 : vector<16x32xf32>
    %46 = arith.mulf %8, %45 : vector<16x32xf32>
    %47 = arith.truncf %46 : vector<16x32xf32> to vector<16x32xbf16>
    %c0_20 = arith.constant 0 : index
    %c0_21 = arith.constant 0 : index
    %48 = vector.load %arg5[%c0_20, %c0_21] : memref<32x32xbf16, #tpu.memory_space<vmem>>, vector<32x32xbf16>
    %cst_22 = arith.constant dense<0.000000e+00> : vector<16x32xf32>
    %49 = tpu.matmul %47, %48, %cst_22 {dimension_numbers = #tpu.dot_dimension_numbers<[1], [0], [0], [1], [0, 0, 1, 1], [], []>} : vector<16x32xbf16>, vector<32x32xbf16>, vector<16x32xf32> -> vector<16x32xf32>
    %c0_23 = arith.constant 0 : index
    %c0_24 = arith.constant 0 : index
    %50 = vector.load %arg6[%c0_23, %c0_24] : memref<1x32xf32, #tpu.memory_space<vmem>>, vector<1x32xf32>
    %51 = vector.broadcast %50 : vector<1x32xf32> to vector<16x32xf32>
    %52 = arith.addf %49, %51 : vector<16x32xf32>
    %cst_25 = arith.constant dense<0.000000e+00> : vector<16xf32>
    %53 = vector.multi_reduction <add>, %52, %cst_25 [1] : vector<16x32xf32> to vector<16xf32>
    %54 = vector.shape_cast %53 : vector<16xf32> to vector<16x1xf32>
    %cst_26 = arith.constant 3.200000e+01 : f32
    %55 = vector.broadcast %cst_26 : f32 to vector<16x1xf32>
    %56 = arith.divf %54, %55 : vector<16x1xf32>
    %57 = vector.broadcast %56 : vector<16x1xf32> to vector<16x32xf32>
    %58 = arith.subf %52, %57 : vector<16x32xf32>
    %59 = arith.mulf %58, %58 : vector<16x32xf32>
    %cst_27 = arith.constant dense<0.000000e+00> : vector<16xf32>
    %60 = vector.multi_reduction <add>, %59, %cst_27 [1] : vector<16x32xf32> to vector<16xf32>
    %61 = vector.shape_cast %60 : vector<16xf32> to vector<16x1xf32>
    %cst_28 = arith.constant 3.200000e+01 : f32
    %62 = vector.broadcast %cst_28 : f32 to vector<16x1xf32>
    %63 = arith.divf %61, %62 : vector<16x1xf32>
    %64 = vector.broadcast %56 : vector<16x1xf32> to vector<16x32xf32>
    %65 = arith.subf %52, %64 : vector<16x32xf32>
    %cst_29 = arith.constant 9.99999974E-6 : f32
    %66 = vector.broadcast %cst_29 : f32 to vector<16x1xf32>
    %67 = arith.addf %63, %66 : vector<16x1xf32>
    %68 = math.rsqrt %67 : vector<16x1xf32>
    %69 = vector.broadcast %68 : vector<16x1xf32> to vector<16x32xf32>
    %70 = arith.mulf %65, %69 : vector<16x32xf32>
    %c0_30 = arith.constant 0 : index
    %c0_31 = arith.constant 0 : index
    %71 = vector.load %arg7[%c0_30, %c0_31] : memref<1x32xf32, #tpu.memory_space<vmem>>, vector<1x32xf32>
    %72 = vector.broadcast %71 : vector<1x32xf32> to vector<16x32xf32>
    %73 = arith.mulf %70, %72 : vector<16x32xf32>
    %c0_32 = arith.constant 0 : index
    %c0_33 = arith.constant 0 : index
    %74 = vector.load %arg8[%c0_32, %c0_33] : memref<1x32xf32, #tpu.memory_space<vmem>>, vector<1x32xf32>
    %75 = vector.broadcast %74 : vector<1x32xf32> to vector<16x32xf32>
    %76 = arith.addf %73, %75 : vector<16x32xf32>
    %c0_34 = arith.constant 0 : index
    %c0_35 = arith.constant 0 : index
    %77 = vector.load %arg2[%c0_34, %c0_35] : memref<16x32xf32, #tpu.memory_space<vmem>>, vector<16x32xf32>
    %78 = arith.addf %76, %77 : vector<16x32xf32>
    %c0_36 = arith.constant 0 : index
    %c0_37 = arith.constant 0 : index
    %79 = vector.load %arg9[%c0_36, %c0_37] : memref<16x32xf32, #tpu.memory_space<vmem>>, vector<16x32xf32>
    tpu.vector_store %arg9[%c0_36, %c0_37], %78 {strides = array<i32>} : memref<16x32xf32, #tpu.memory_space<vmem>>, vector<16x32xf32>,
    return
  }
  func.func @transform_0(%arg0: i32) -> (i32, i32) {
    %c0_i32 = arith.constant 0 : i32
    %c0_i32_0 = arith.constant 0 : i32
    return %arg0, %c0_i32 : i32, i32
  }
  func.func @transform_1(%arg0: i32) -> (i32, i32) {
    %c0_i32 = arith.constant 0 : i32
    %c0_i32_0 = arith.constant 0 : i32
    return %arg0, %c0_i32 : i32, i32
  }
  func.func @transform_2(%arg0: i32) -> (i32, i32) {
    %c0_i32 = arith.constant 0 : i32
    %c0_i32_0 = arith.constant 0 : i32
    %c0_i32_1 = arith.constant 0 : i32
    return %c0_i32, %c0_i32_0 : i32, i32
  }
  func.func @transform_3(%arg0: i32) -> (i32, i32) {
    %c0_i32 = arith.constant 0 : i32
    %c0_i32_0 = arith.constant 0 : i32
    %c0_i32_1 = arith.constant 0 : i32
    return %c0_i32, %c0_i32_0 : i32, i32
  }
  func.func @transform_4(%arg0: i32) -> (i32, i32) {
    %c0_i32 = arith.constant 0 : i32
    %c0_i32_0 = arith.constant 0 : i32
    %c0_i32_1 = arith.constant 0 : i32
    return %c0_i32, %c0_i32_0 : i32, i32
  }
  func.func @transform_5(%arg0: i32) -> (i32, i32) {
    %c0_i32 = arith.constant 0 : i32
    %c0_i32_0 = arith.constant 0 : i32
    %c0_i32_1 = arith.constant 0 : i32
    return %c0_i32, %c0_i32_0 : i32, i32
  }
  func.func @transform_6(%arg0: i32) -> (i32, i32) {
    %c0_i32 = arith.constant 0 : i32
    %c0_i32_0 = arith.constant 0 : i32
    %c0_i32_1 = arith.constant 0 : i32
    return %c0_i32, %c0_i32_0 : i32, i32
  }
  func.func @transform_7(%arg0: i32) -> (i32, i32) {
    %c0_i32 = arith.constant 0 : i32
    %c0_i32_0 = arith.constant 0 : i32
    %c0_i32_1 = arith.constant 0 : i32
    return %c0_i32, %c0_i32_0 : i32, i32
  }
  func.func @transform_8(%arg0: i32) -> (i32, i32) {
    %c0_i32 = arith.constant 0 : i32
    %c0_i32_0 = arith.constant 0 : i32
    return %arg0, %c0_i32 : i32, i32
  }
}

</mosaic_0001>

<llo_original>
// kernel: model_forward.41
$region0: #{model_forward.41}
  #allocation0 [shape = 'u32[]', space=smem, size = 0x4, offset = 0x4, fixed_abs, tag = 'smem constant byte address 0x4 - core index']
  #allocation1 [shape = 'u32[144,128]{1,0:T(1,128)}', space=vmem, size = 0x12000, scoped, tag = 'internal scratch']
  #allocation2 [shape = 'f32[16,96]{1,0:T(8,128)}', space=vmem, size = 0x2000, scoped, tag = 'scratch operand']
  %s0 = inlined_call_operand.vmem [shape: f32[16,32], index: 0, kind: input, shape index: {}]
  %s1 = inlined_call_operand.vmem [shape: bf16[32,96], index: 1, kind: input, shape index: {}]
  %s2 = inlined_call_operand.vmem [shape: f32[1,96], index: 2, kind: input, shape index: {}]
  %s3 = inlined_call_operand.vmem [shape: bf16[16,96], index: 3, kind: output, shape index: {}]
  %s4 = sld [smem:[#allocation0]]
  $region30: #{model_forward.41} parent=0
    _
  %s6 = ssub.s32 1, %s4
  %s7 = scalar_select 0, %s6, %s4
  // Predicated region
  $region2: #{model_forward.41} parent=0 // pred_check
    _
  $region3: #{model_forward.41} parent=0 // pred_check_branch
    %9 = sbr.rel (0) target = $region5
  $region4: #{model_forward.41} parent=0 // pred_region
    _
  $region5: #{model_forward.41} parent=0 // pred_fallthru
    _
  // Predicated region
  $region6: #{model_forward.41} parent=0 // pred_check
    _
  $region7: #{model_forward.41} parent=0 // pred_check_branch
    %11 = sbr.rel (0) target = $region9
  $region8: #{model_forward.41} parent=0 // pred_region
    _
  $region9: #{model_forward.41} parent=0 // pred_fallthru
    _
  // Predicated region
  $region10: #{model_forward.41} parent=0 // pred_check
    _
  $region11: #{model_forward.41} parent=0 // pred_check_branch
    %13 = sbr.rel (0) target = $region13
  $region12: #{model_forward.41} parent=0 // pred_region
    _
  $region13: #{model_forward.41} parent=0 // pred_fallthru
    _
  %p15 = scmp.eq.s32.totalorder 0, 0
  // Predicated region
  $region14: #{model_forward.41} parent=0 // pred_check
    %p16 = pneg %p15
  $region15: #{model_forward.41} parent=0 // pred_check_branch
    %18 = sbr.rel (%p16) target = $region17
  $region16: #{model_forward.41} parent=0 // pred_region
    %vm19 = vcmask 785408
    %20 = vst.msk [vmem:[#allocation2] sm:$0xff] %vm19, 0.0
    %21 = vst.msk [vmem:[#allocation2 + $0x8] sm:$0xff] %vm19, 0.0
  $region17: #{model_forward.41} parent=0 // pred_fallthru
    _
  %v22 = vld [vmem:[#allocation2] sm:$0xff]
  %v23 = vld [vmem:[#allocation2 + $0x8] sm:$0xff]
  %v24 = vld [vmem:[%s0] sm:$0xff]
  %v25 = vld [vmem:[%s0 + $0x8] sm:$0xff]
  %v26 = vpack.c.bf16 %v25, %v24
  %v27 = vld [vmem:[%s1] sm:$0xf]
  %v28 = vld [vmem:[%s1 + $0x4] sm:$0xf]
  %v29 = vld [vmem:[%s1 + $0x8] sm:$0xf]
  %v30 = vld [vmem:[%s1 + $0xc] sm:$0xf]
  %v35 = vunpack.c.l.b16 %v27
  %v36 = vunpack.c.l.b16 %v28
  %v37 = vunpack.c.l.b16 %v29
  %v38 = vunpack.c.l.b16 %v30
  %v39 = vpack.c.b16 %v36, %v35
  %v40 = vpack.c.b16 %v38, %v37
  %vm43 = vcmask 261120
  %v45 = vsel %vm43, %v26, 0
  %47 = vmatprep.subr.bf16.mxu0 0
  %48 = vmatpush1.bf16.msra.mxu0 %v39
  %49 = vmatprep.subr.bf16.mxu0 0
  %50 = vmatpush1.bf16.msra.mxu0 %v40
  %51 = vmatprep.subr.bf16.mxu0 0
  %52 = vmatpush1.bf16.msra.mxu0 0
  %53 = vmatprep.subr.bf16.mxu0 0
  %54 = vmatpush1.bf16.msra.mxu0 0
  %55 = vmatprep.subr.bf16.mxu0 0
  %56 = vmatpush1.bf16.msra.mxu0 0
  %57 = vmatprep.subr.bf16.mxu0 0
  %58 = vmatpush1.bf16.msra.mxu0 0
  %59 = vmatprep.subr.bf16.mxu0 0
  %60 = vmatpush1.bf16.msra.mxu0 0
  %61 = vmatprep.subr.bf16.mxu0 0
  %62 = vmatpush1.bf16.msra.mxu0 0
  %63 = vmatprep.subr.bf16.mxu0 0
  %64 = vmatpush1.bf16.msra.mxu0 0
  %65 = vmatprep.subr.bf16.mxu0 0
  %66 = vmatpush1.bf16.msra.mxu0 0
  %67 = vmatprep.subr.bf16.mxu0 0
  %68 = vmatpush1.bf16.msra.mxu0 0
  %69 = vmatprep.subr.bf16.mxu0 0
  %70 = vmatpush1.bf16.msra.mxu0 0
  %71 = vmatprep.subr.bf16.mxu0 0
  %72 = vmatpush1.bf16.msra.mxu0 0
  %73 = vmatprep.subr.bf16.mxu0 0
  %74 = vmatpush1.bf16.msra.mxu0 0
  %75 = vmatprep.subr.bf16.mxu0 0
  %76 = vmatpush1.bf16.msra.mxu0 0
  %77 = vmatprep.subr.bf16.mxu0 0
  %78 = vmatpush1.bf16.msra.mxu0 0
  %79 = vmatprep.mubr.bf16.mxu0 0
  %80 = vmatmul.mubr.bf16.gmra.mrb[0].mxu0 %v45
  %v81 = vpop.f32.mrb[0].mxu0
  %v82 = vadd.f32 0.0, %v81
  %v83 = vpop.f32.mrb[0].mxu0
  %v84 = vpop.f32.mrb[0].mxu0
  %v85 = vadd.f32 0.0, %v84
  %v86 = vpop.f32.mrb[0].mxu0
  %87 = vdwg.mxu0
  %v88 = vadd.f32 %v22, %v82
  %v89 = vadd.f32 %v23, %v85
  %vm90 = vcmask 785408
  %91 = vst.msk [vmem:[#allocation2] sm:$0xff] %vm90, %v88
  %92 = vst.msk [vmem:[#allocation2 + $0x8] sm:$0xff] %vm90, %v89
  // Predicated region
  $region18: #{model_forward.41} parent=0 // pred_check
    %p93 = pneg %p15
  $region19: #{model_forward.41} parent=0 // pred_check_branch
    %95 = sbr.rel (%p93) target = $region21
  $region20: #{model_forward.41} parent=0 // pred_region
    %v96 = vld [vmem:[#allocation2] sm:$0xff]
    %v97 = vld [vmem:[#allocation2 + $0x8] sm:$0xff]
    %v98 = vld [vmem:[%s2] sm:$0x1]
    %v100 = vlaneseq
    %v101 = vshrl.u32 %v100, 7
    %v102 = vsub.s32 0, %v101
    %v103 = vrot.slane %v98, %v102
    %v105 = vadd.f32 %v96, %v103
    %v106 = vadd.f32 %v97, %v103
    %v107 = vpack.c.bf16 %v106, %v105
    %v109 = vunpack.c.l.b16 %v107
    %v110 = vunpack.c.h.b16 %v107
    %v111 = vpack.c.b16 %v109, %v109
    %v112 = vpack.c.b16 %v110, %v110
    %vm115 = vcmask 781312
    %116 = vst.msk [vmem:[%s3] sm:$0xf] %vm115, %v111
    %117 = vst.msk [vmem:[%s3 + $0x4] sm:$0xf] %vm115, %v112
  $region21: #{model_forward.41} parent=0 // pred_fallthru
    _
  // Predicated region
  $region22: #{model_forward.41} parent=0 // pred_check
    _
  $region23: #{model_forward.41} parent=0 // pred_check_branch
    %119 = sbr.rel (0) target = $region25
  $region24: #{model_forward.41} parent=0 // pred_region
    _
  $region25: #{model_forward.41} parent=0 // pred_fallthru
    _
  // Predicated region
  $region26: #{model_forward.41} parent=0 // pred_check
    _
  $region27: #{model_forward.41} parent=0 // pred_check_branch
    %121 = sbr.rel (0) target = $region29
  $region28: #{model_forward.41} parent=0 // pred_region
    _
  $region29: #{model_forward.41} parent=0 // pred_fallthru
    _

// kernel: model_forward.43
$region0: #{model_forward.43}
  #allocation0 [shape = 'u32[]', space=smem, size = 0x4, offset = 0x4, fixed_abs, tag = 'smem constant byte address 0x4 - core index']
  #allocation1 [shape = 'u32[144,128]{1,0:T(1,128)}', space=vmem, size = 0x12000, scoped, tag = 'internal scratch']
  #allocation2 [shape = 'f32[32,64]{1,0:T(8,128)}', space=vmem, size = 0x4000, scoped, tag = 'scratch operand']
  %s0 = inlined_call_operand.vmem [shape: f32[32,16], index: 0, kind: input, shape index: {}]
  %s1 = inlined_call_operand.vmem [shape: bf16[16,64], index: 1, kind: input, shape index: {}]
  %s2 = inlined_call_operand.vmem [shape: f32[1,64], index: 2, kind: input, shape index: {}]
  %s3 = inlined_call_operand.vmem [shape: bf16[32,64], index: 3, kind: output, shape index: {}]
  %s4 = sld [smem:[#allocation0]]
  $region30: #{model_forward.43} parent=0
    _
  %s6 = ssub.s32 1, %s4
  %s7 = scalar_select 0, %s6, %s4
  // Predicated region
  $region2: #{model_forward.43} parent=0 // pred_check
    _
  $region3: #{model_forward.43} parent=0 // pred_check_branch
    %9 = sbr.rel (0) target = $region5
  $region4: #{model_forward.43} parent=0 // pred_region
    _
  $region5: #{model_forward.43} parent=0 // pred_fallthru
    _
  // Predicated region
  $region6: #{model_forward.43} parent=0 // pred_check
    _
  $region7: #{model_forward.43} parent=0 // pred_check_branch
    %11 = sbr.rel (0) target = $region9
  $region8: #{model_forward.43} parent=0 // pred_region
    _
  $region9: #{model_forward.43} parent=0 // pred_fallthru
    _
  // Predicated region
  $region10: #{model_forward.43} parent=0 // pred_check
    _
  $region11: #{model_forward.43} parent=0 // pred_check_branch
    %13 = sbr.rel (0) target = $region13
  $region12: #{model_forward.43} parent=0 // pred_region
    _
  $region13: #{model_forward.43} parent=0 // pred_fallthru
    _
  %p15 = scmp.eq.s32.totalorder 0, 0
  // Predicated region
  $region14: #{model_forward.43} parent=0 // pred_check
    %p16 = pneg %p15
  $region15: #{model_forward.43} parent=0 // pred_check_branch
    %18 = sbr.rel (%p16) target = $region17
  $region16: #{model_forward.43} parent=0 // pred_region
    %vm19 = vcmask 523264
    %20 = vst.msk [vmem:[#allocation2] sm:$0xff] %vm19, 0.0
    %21 = vst.msk [vmem:[#allocation2 + $0x8] sm:$0xff] %vm19, 0.0
    %22 = vst.msk [vmem:[#allocation2 + $0x10] sm:$0xff] %vm19, 0.0
    %23 = vst.msk [vmem:[#allocation2 + $0x18] sm:$0xff] %vm19, 0.0
  $region17: #{model_forward.43} parent=0 // pred_fallthru
    _
  %v24 = vld [vmem:[#allocation2] sm:$0xff]
  %v25 = vld [vmem:[#allocation2 + $0x8] sm:$0xff]
  %v26 = vld [vmem:[#allocation2 + $0x10] sm:$0xff]
  %v27 = vld [vmem:[#allocation2 + $0x18] sm:$0xff]
  %v28 = vld [vmem:[%s0] sm:$0xff]
  %v29 = vld [vmem:[%s0 + $0x8] sm:$0xff]
  %v30 = vld [vmem:[%s0 + $0x10] sm:$0xff]
  %v31 = vld [vmem:[%s0 + $0x18] sm:$0xff]
  %v32 = vpack.c.bf16 %v29, %v28
  %v33 = vpack.c.bf16 %v31, %v30
  %v34 = vld [vmem:[%s1] sm:$0xf]
  %v35 = vld [vmem:[%s1 + $0x4] sm:$0xf]
  %v38 = vunpack.c.l.b16 %v34
  %v39 = vunpack.c.l.b16 %v35
  %v40 = vpack.c.b16 %v39, %v38
  %vm42 = vcmask 130048
  %v44 = vsel %vm42, %v32, 0
  %v47 = vsel %vm42, %v33, 0
  %49 = vmatprep.subr.bf16.mxu0 0
  %50 = vmatpush1.bf16.msra.mxu0 %v40
  %51 = vmatprep.subr.bf16.mxu0 0
  %52 = vmatpush1.bf16.msra.mxu0 0
  %53 = vmatprep.subr.bf16.mxu0 0
  %54 = vmatpush1.bf16.msra.mxu0 0
  %55 = vmatprep.subr.bf16.mxu0 0
  %56 = vmatpush1.bf16.msra.mxu0 0
  %57 = vmatprep.subr.bf16.mxu0 0
  %58 = vmatpush1.bf16.msra.mxu0 0
  %59 = vmatprep.subr.bf16.mxu0 0
  %60 = vmatpush1.bf16.msra.mxu0 0
  %61 = vmatprep.subr.bf16.mxu0 0
  %62 = vmatpush1.bf16.msra.mxu0 0
  %63 = vmatprep.subr.bf16.mxu0 0
  %64 = vmatpush1.bf16.msra.mxu0 0
  %65 = vmatprep.subr.bf16.mxu0 0
  %66 = vmatpush1.bf16.msra.mxu0 0
  %67 = vmatprep.subr.bf16.mxu0 0
  %68 = vmatpush1.bf16.msra.mxu0 0
  %69 = vmatprep.subr.bf16.mxu0 0
  %70 = vmatpush1.bf16.msra.mxu0 0
  %71 = vmatprep.subr.bf16.mxu0 0
  %72 = vmatpush1.bf16.msra.mxu0 0
  %73 = vmatprep.subr.bf16.mxu0 0
  %74 = vmatpush1.bf16.msra.mxu0 0
  %75 = vmatprep.subr.bf16.mxu0 0
  %76 = vmatpush1.bf16.msra.mxu0 0
  %77 = vmatprep.subr.bf16.mxu0 0
  %78 = vmatpush1.bf16.msra.mxu0 0
  %79 = vmatprep.subr.bf16.mxu0 0
  %80 = vmatpush1.bf16.msra.mxu0 0
  %81 = vmatprep.mubr.bf16.mxu0 0
  %82 = vmatmul.mubr.bf16.gmra.mrb[0].mxu0 %v44
  %v83 = vpop.f32.mrb[0].mxu0
  %v84 = vadd.f32 0.0, %v83
  %v85 = vpop.f32.mrb[0].mxu0
  %v86 = vpop.f32.mrb[0].mxu0
  %v87 = vadd.f32 0.0, %v86
  %v88 = vpop.f32.mrb[0].mxu0
  %89 = vmatprep.mubr.bf16.mxu0 0
  %90 = vmatmul.mubr.bf16.gmra.mrb[0].mxu0 %v47
  %v91 = vpop.f32.mrb[0].mxu0
  %v92 = vadd.f32 0.0, %v91
  %v93 = vpop.f32.mrb[0].mxu0
  %v94 = vpop.f32.mrb[0].mxu0
  %v95 = vadd.f32 0.0, %v94
  %v96 = vpop.f32.mrb[0].mxu0
  %97 = vdwg.mxu0
  %v98 = vadd.f32 %v24, %v84
  %v99 = vadd.f32 %v25, %v87
  %v100 = vadd.f32 %v26, %v92
  %v101 = vadd.f32 %v27, %v95
  %vm102 = vcmask 523264
  %103 = vst.msk [vmem:[#allocation2] sm:$0xff] %vm102, %v98
  %104 = vst.msk [vmem:[#allocation2 + $0x8] sm:$0xff] %vm102, %v99
  %105 = vst.msk [vmem:[#allocation2 + $0x10] sm:$0xff] %vm102, %v100
  %106 = vst.msk [vmem:[#allocation2 + $0x18] sm:$0xff] %vm102, %v101
  // Predicated region
  $region18: #{model_forward.43} parent=0 // pred_check
    %p107 = pneg %p15
  $region19: #{model_forward.43} parent=0 // pred_check_branch
    %109 = sbr.rel (%p107) target = $region21
  $region20: #{model_forward.43} parent=0 // pred_region
    %v110 = vld [vmem:[#allocation2] sm:$0xff]
    %v111 = vld [vmem:[#allocation2 + $0x8] sm:$0xff]
    %v112 = vld [vmem:[#allocation2 + $0x10] sm:$0xff]
    %v113 = vld [vmem:[#allocation2 + $0x18] sm:$0xff]
    %v114 = vld [vmem:[%s2] sm:$0x1]
    %v116 = vlaneseq
    %v117 = vshrl.u32 %v116, 7
    %v118 = vsub.s32 0, %v117
    %v119 = vrot.slane %v114, %v118
    %v121 = vadd.f32 %v110, %v119
    %v122 = vadd.f32 %v111, %v119
    %v123 = vadd.f32 %v112, %v119
    %v124 = vadd.f32 %v113, %v119
    %v125 = vpack.c.bf16 %v122, %v121
    %v126 = vpack.c.bf16 %v124, %v123
    %v129 = vunpack.c.l.b16 %v125
    %v130 = vunpack.c.h.b16 %v125
    %v131 = vunpack.c.l.b16 %v126
    %v132 = vunpack.c.h.b16 %v126
    %v133 = vpack.c.b16 %v129, %v129
    %v134 = vpack.c.b16 %v130, %v130
    %v135 = vpack.c.b16 %v131, %v131
    %v136 = vpack.c.b16 %v132, %v132
    %vm141 = vcmask 519168
    %142 = vst.msk [vmem:[%s3] sm:$0xf] %vm141, %v133
    %143 = vst.msk [vmem:[%s3 + $0x4] sm:$0xf] %vm141, %v134
    %144 = vst.msk [vmem:[%s3 + $0x8] sm:$0xf] %vm141, %v135
    %145 = vst.msk [vmem:[%s3 + $0xc] sm:$0xf] %vm141, %v136
  $region21: #{model_forward.43} parent=0 // pred_fallthru
    _
  // Predicated region
  $region22: #{model_forward.43} parent=0 // pred_check
    _
  $region23: #{model_forward.43} parent=0 // pred_check_branch
    %147 = sbr.rel (0) target = $region25
  $region24: #{model_forward.43} parent=0 // pred_region
    _
  $region25: #{model_forward.43} parent=0 // pred_fallthru
    _
  // Predicated region
  $region26: #{model_forward.43} parent=0 // pred_check
    _
  $region27: #{model_forward.43} parent=0 // pred_check_branch
    %149 = sbr.rel (0) target = $region29
  $region28: #{model_forward.43} parent=0 // pred_region
    _
  $region29: #{model_forward.43} parent=0 // pred_fallthru
    _

// kernel: model_forward.42
$region0: #{model_forward.42}
  #allocation0 [shape = 'u32[]', space=smem, size = 0x4, offset = 0x4, fixed_abs, tag = 'smem constant byte address 0x4 - core index']
  #allocation1 [shape = 'u32[144,128]{1,0:T(1,128)}', space=vmem, size = 0x12000, scoped, tag = 'internal scratch']
  #allocation2 [shape = 'f32[4,8,1]{2,1,0:T(8,128)}', space=vmem, size = 0x4000, scoped, tag = 'scratch operand']
  #allocation3 [shape = 'f32[4,8,16]{2,1,0:T(8,128)}', space=vmem, size = 0x4000, scoped, tag = 'scratch operand']
  %s0 = inlined_call_operand.vmem [shape: bf16[4,8,16], index: 0, kind: input, shape index: {}]
  %s1 = inlined_call_operand.vmem [shape: bf16[4,8,16], index: 1, kind: input, shape index: {}]
  %s2 = inlined_call_operand.vmem [shape: bf16[4,8,16], index: 2, kind: input, shape index: {}]
  %s3 = inlined_call_operand.vmem [shape: f32[4,8,16], index: 3, kind: output, shape index: {}]
  %s4 = sld [smem:[#allocation0]]
  $region34: #{model_forward.42} parent=0
    _
  %s6 = ssub.s32 1, %s4
  %s7 = scalar_select 0, %s6, %s4
  // Predicated region
  $region2: #{model_forward.42} parent=0 // pred_check
    _
  $region3: #{model_forward.42} parent=0 // pred_check_branch
    %9 = sbr.rel (0) target = $region5
  $region4: #{model_forward.42} parent=0 // pred_region
    _
  $region5: #{model_forward.42} parent=0 // pred_fallthru
    _
  // Predicated region
  $region6: #{model_forward.42} parent=0 // pred_check
    _
  $region7: #{model_forward.42} parent=0 // pred_check_branch
    %11 = sbr.rel (0) target = $region9
  $region8: #{model_forward.42} parent=0 // pred_region
    _
  $region9: #{model_forward.42} parent=0 // pred_fallthru
    _
  // Predicated region
  $region10: #{model_forward.42} parent=0 // pred_check
    _
  $region11: #{model_forward.42} parent=0 // pred_check_branch
    %13 = sbr.rel (0) target = $region13
  $region12: #{model_forward.42} parent=0 // pred_region
    _
  $region13: #{model_forward.42} parent=0 // pred_fallthru
    _
  %p15 = scmp.eq.s32.totalorder 0, 0
  // Predicated region
  $region14: #{model_forward.42} parent=0 // pred_check
    %p16 = pneg %p15
  $region15: #{model_forward.42} parent=0 // pred_check_branch
    %18 = sbr.rel (%p16) target = $region17
  $region16: #{model_forward.42} parent=0 // pred_region
    %vm19 = vcmask 7168
    %20 = vst.msk [vmem:[#allocation2] sm:$0xff] %vm19, 0.0
    %21 = vst.msk [vmem:[#allocation2 + $0x8] sm:$0xff] %vm19, 0.0
    %22 = vst.msk [vmem:[#allocation2 + $0x10] sm:$0xff] %vm19, 0.0
    %23 = vst.msk [vmem:[#allocation2 + $0x18] sm:$0xff] %vm19, 0.0
    %vm24 = vcmask 130048
    %25 = vst.msk [vmem:[#allocation3] sm:$0xff] %vm24, 0.0
    %26 = vst.msk [vmem:[#allocation3 + $0x8] sm:$0xff] %vm24, 0.0
    %27 = vst.msk [vmem:[#allocation3 + $0x10] sm:$0xff] %vm24, 0.0
    %28 = vst.msk [vmem:[#allocation3 + $0x18] sm:$0xff] %vm24, 0.0
  $region17: #{model_forward.42} parent=0 // pred_fallthru
    _
  %p29 = scmp.lt.s32.totalorder 0, 0
  // Predicated region
  $region18: #{model_forward.42} parent=0 // pred_check
    %p30 = pneg %p29
  $region19: #{model_forward.42} parent=0 // pred_check_branch
    %32 = sbr.rel (%p30) target = $region21
  $region20: #{model_forward.42} parent=0 // pred_region
    %v33 = vld [vmem:[%s0] sm:$0xf]
    %v34 = vld [vmem:[%s0 + $0x4] sm:$0xf]
    %v35 = vld [vmem:[%s0 + $0x8] sm:$0xf]
    %v36 = vld [vmem:[%s0 + $0xc] sm:$0xf]
    %v37 = vunpack.c.l.bf16 %v33
    %v38 = vunpack.c.l.bf16 %v34
    %v39 = vunpack.c.l.bf16 %v35
    %v40 = vunpack.c.l.bf16 %v36
    %v41 = vmul.f32 %v37, %v37
    %v42 = vmul.f32 %v38, %v38
    %v43 = vmul.f32 %v39, %v39
    %v44 = vmul.f32 %v40, %v40
    %vm45 = vcmask 130048
    %v46 = vsel %vm45, %v41, 0.0
    %47 = vadd.xlane.f32.xlu0 %v46
    %v48 = vpop.xlane.xlu0 %47
    %v49 = vsel %vm45, %v42, 0.0
    %50 = vadd.xlane.f32.xlu0 %v49
    %v51 = vpop.xlane.xlu0 %50
    %v52 = vsel %vm45, %v43, 0.0
    %53 = vadd.xlane.f32.xlu0 %v52
    %v54 = vpop.xlane.xlu0 %53
    %v55 = vsel %vm45, %v44, 0.0
    %56 = vadd.xlane.f32.xlu0 %v55
    %v57 = vpop.xlane.xlu0 %56
    %v58 = vrsqrt.pop %v48
    %v59 = vmul.f32 %v48, %v58
    %vm60 = vcmp.eq.f32.partialorder %v48, inf
    %v61 = vsel %vm60, %v48, %v59
    %vm62 = vcmp.eq.f32.partialorder %v48, 0.0
    %v63 = vand.u32 %v48, 2147483648
    %v64 = vsel %vm62, %v63, %v61
    %v65 = vrsqrt.pop %v51
    %v66 = vmul.f32 %v51, %v65
    %vm67 = vcmp.eq.f32.partialorder %v51, inf
    %v68 = vsel %vm67, %v51, %v66
    %vm69 = vcmp.eq.f32.partialorder %v51, 0.0
    %v70 = vand.u32 %v51, 2147483648
    %v71 = vsel %vm69, %v70, %v68
    %v72 = vrsqrt.pop %v54
    %v73 = vmul.f32 %v54, %v72
    %vm74 = vcmp.eq.f32.partialorder %v54, inf
    %v75 = vsel %vm74, %v54, %v73
    %vm76 = vcmp.eq.f32.partialorder %v54, 0.0
    %v77 = vand.u32 %v54, 2147483648
    %v78 = vsel %vm76, %v77, %v75
    %v79 = vrsqrt.pop %v57
    %v80 = vmul.f32 %v57, %v79
    %vm81 = vcmp.eq.f32.partialorder %v57, inf
    %v82 = vsel %vm81, %v57, %v80
    %vm83 = vcmp.eq.f32.partialorder %v57, 0.0
    %v84 = vand.u32 %v57, 2147483648
    %v85 = vsel %vm83, %v84, %v82
    %v86 = vmax.f32 %v64, 1e-12
    %v87 = vmax.f32 %v71, 1e-12
    %v88 = vmax.f32 %v78, 1e-12
    %v89 = vmax.f32 %v85, 1e-12
    %v90 = vrcp.pop %v86
    %v91 = vmul.f32 %v37, %v90
    %v92 = vrcp.pop %v87
    %v93 = vmul.f32 %v38, %v92
    %v94 = vrcp.pop %v88
    %v95 = vmul.f32 %v39, %v94
    %v96 = vrcp.pop %v89
    %v97 = vmul.f32 %v40, %v96
    %v98 = vmul.f32 %v64, -0.6931472
    %v99 = vmul.f32 %v71, -0.6931472
    %v100 = vmul.f32 %v78, -0.6931472
    %v101 = vmul.f32 %v85, -0.6931472
    %v102 = vmul.f32 %v98, 1.442695
    %v103 = vpow.pop %v102
    %v104 = vmul.f32 %v99, 1.442695
    %v105 = vpow.pop %v104
    %v106 = vmul.f32 %v100, 1.442695
    %v107 = vpow.pop %v106
    %v108 = vmul.f32 %v101, 1.442695
    %v109 = vpow.pop %v108
    %v110 = vsub.f32 1.0, %v103
    %v111 = vsub.f32 1.0, %v105
    %v112 = vsub.f32 1.0, %v107
    %v113 = vsub.f32 1.0, %v109
    %v114 = vmul.f32 %v110, %v91
    %v115 = vmul.f32 %v111, %v93
    %v116 = vmul.f32 %v112, %v95
    %v117 = vmul.f32 %v113, %v97
    %v118 = vld [vmem:[%s1] sm:$0xf]
    %v119 = vld [vmem:[%s1 + $0x4] sm:$0xf]
    %v120 = vld [vmem:[%s1 + $0x8] sm:$0xf]
    %v121 = vld [vmem:[%s1 + $0xc] sm:$0xf]
    %v122 = vunpack.c.l.bf16 %v118
    %v123 = vunpack.c.l.bf16 %v119
    %v124 = vunpack.c.l.bf16 %v120
    %v125 = vunpack.c.l.bf16 %v121
    %v126 = vmul.f32 %v122, %v122
    %v127 = vmul.f32 %v123, %v123
    %v128 = vmul.f32 %v124, %v124
    %v129 = vmul.f32 %v125, %v125
    %v130 = vsel %vm45, %v126, 0.0
    %131 = vadd.xlane.f32.xlu0 %v130
    %v132 = vpop.xlane.xlu0 %131
    %v133 = vsel %vm45, %v127, 0.0
    %134 = vadd.xlane.f32.xlu0 %v133
    %v135 = vpop.xlane.xlu0 %134
    %v136 = vsel %vm45, %v128, 0.0
    %137 = vadd.xlane.f32.xlu0 %v136
    %v138 = vpop.xlane.xlu0 %137
    %v139 = vsel %vm45, %v129, 0.0
    %140 = vadd.xlane.f32.xlu0 %v139
    %v141 = vpop.xlane.xlu0 %140
    %v142 = vrsqrt.pop %v132
    %v143 = vmul.f32 %v132, %v142
    %vm144 = vcmp.eq.f32.partialorder %v132, inf
    %v145 = vsel %vm144, %v132, %v143
    %vm146 = vcmp.eq.f32.partialorder %v132, 0.0
    %v147 = vand.u32 %v132, 2147483648
    %v148 = vsel %vm146, %v147, %v145
    %v149 = vrsqrt.pop %v135
    %v150 = vmul.f32 %v135, %v149
    %vm151 = vcmp.eq.f32.partialorder %v135, inf
    %v152 = vsel %vm151, %v135, %v150
    %vm153 = vcmp.eq.f32.partialorder %v135, 0.0
    %v154 = vand.u32 %v135, 2147483648
    %v155 = vsel %vm153, %v154, %v152
    %v156 = vrsqrt.pop %v138
    %v157 = vmul.f32 %v138, %v156
    %vm158 = vcmp.eq.f32.partialorder %v138, inf
    %v159 = vsel %vm158, %v138, %v157
    %vm160 = vcmp.eq.f32.partialorder %v138, 0.0
    %v161 = vand.u32 %v138, 2147483648
    %v162 = vsel %vm160, %v161, %v159
    %v163 = vrsqrt.pop %v141
    %v164 = vmul.f32 %v141, %v163
    %vm165 = vcmp.eq.f32.partialorder %v141, inf
    %v166 = vsel %vm165, %v141, %v164
    %vm167 = vcmp.eq.f32.partialorder %v141, 0.0
    %v168 = vand.u32 %v141, 2147483648
    %v169 = vsel %vm167, %v168, %v166
    %v170 = vmax.f32 %v148, 1e-12
    %v171 = vmax.f32 %v155, 1e-12
    %v172 = vmax.f32 %v162, 1e-12
    %v173 = vmax.f32 %v169, 1e-12
    %v174 = vrcp.pop %v170
    %v175 = vmul.f32 %v122, %v174
    %v176 = vrcp.pop %v171
    %v177 = vmul.f32 %v123, %v176
    %v178 = vrcp.pop %v172
    %v179 = vmul.f32 %v124, %v178
    %v180 = vrcp.pop %v173
    %v181 = vmul.f32 %v125, %v180
    %v182 = vmul.f32 %v148, -0.6931472
    %v183 = vmul.f32 %v155, -0.6931472
    %v184 = vmul.f32 %v162, -0.6931472
    %v185 = vmul.f32 %v169, -0.6931472
    %v186 = vmul.f32 %v182, 1.442695
    %v187 = vpow.pop %v186
    %v188 = vmul.f32 %v183, 1.442695
    %v189 = vpow.pop %v188
    %v190 = vmul.f32 %v184, 1.442695
    %v191 = vpow.pop %v190
    %v192 = vmul.f32 %v185, 1.442695
    %v193 = vpow.pop %v192
    %v194 = vsub.f32 1.0, %v187
    %v195 = vsub.f32 1.0, %v189
    %v196 = vsub.f32 1.0, %v191
    %v197 = vsub.f32 1.0, %v193
    %v198 = vmul.f32 %v194, %v175
    %v199 = vmul.f32 %v195, %v177
    %v200 = vmul.f32 %v196, %v179
    %v201 = vmul.f32 %v197, %v181
    %v202 = vpack.c.bf16 %v114, %v114
    %v203 = vpack.c.bf16 %v115, %v115
    %v204 = vpack.c.bf16 %v116, %v116
    %v205 = vpack.c.bf16 %v117, %v117
    %v206 = vpack.c.bf16 %v198, %v198
    %v207 = vpack.c.bf16 %v199, %v199
    %v208 = vpack.c.bf16 %v200, %v200
    %v209 = vpack.c.bf16 %v201, %v201
    %v211 = vsel %vm45, %v202, 0
    %v214 = vsel %vm45, %v206, 0
    %216 = vmatprep.subr.bf16.mxu0 0
    %217 = vmatpush1.bf16.xpose.msra.mxu0 %v214
    %218 = vmatprep.subr.bf16.mxu0 0
    %219 = vmatpush1.bf16.xpose.msra.mxu0 0
    %220 = vmatprep.subr.bf16.mxu0 0
    %221 = vmatpush1.bf16.xpose.msra.mxu0 0
    %222 = vmatprep.subr.bf16.mxu0 0
    %223 = vmatpush1.bf16.xpose.msra.mxu0 0
    %224 = vmatprep.subr.bf16.mxu0 0
    %225 = vmatpush1.bf16.xpose.msra.mxu0 0
    %226 = vmatprep.subr.bf16.mxu0 0
    %227 = vmatpush1.bf16.xpose.msra.mxu0 0
    %228 = vmatprep.subr.bf16.mxu0 0
    %229 = vmatpush1.bf16.xpose.msra.mxu0 0
    %230 = vmatprep.subr.bf16.mxu0 0
    %231 = vmatpush1.bf16.xpose.msra.mxu0 0
    %232 = vmatprep.subr.bf16.mxu0 0
    %233 = vmatpush1.bf16.xpose.msra.mxu0 0
    %234 = vmatprep.subr.bf16.mxu0 0
    %235 = vmatpush1.bf16.xpose.msra.mxu0 0
    %236 = vmatprep.subr.bf16.mxu0 0
    %237 = vmatpush1.bf16.xpose.msra.mxu0 0
    %238 = vmatprep.subr.bf16.mxu0 0
    %239 = vmatpush1.bf16.xpose.msra.mxu0 0
    %240 = vmatprep.subr.bf16.mxu0 0
    %241 = vmatpush1.bf16.xpose.msra.mxu0 0
    %242 = vmatprep.subr.bf16.mxu0 0
    %243 = vmatpush1.bf16.xpose.msra.mxu0 0
    %244 = vmatprep.subr.bf16.mxu0 0
    %245 = vmatpush1.bf16.xpose.msra.mxu0 0
    %246 = vmatprep.subr.bf16.mxu0 0
    %247 = vmatpush1.bf16.xpose.msra.mxu0 0
    %248 = vmatprep.mubr.bf16.mxu0 0
    %249 = vmatmul.mubr.bf16.gmra.mrb[0].mxu0 %v211
    %v250 = vpop.f32.mrb[0].mxu0
    %v251 = vadd.f32 1.0, %v250
    %v252 = vpop.f32.mrb[0].mxu0
    %v253 = vpop.f32.mrb[0].mxu0
    %v254 = vpop.f32.mrb[0].mxu0
    %255 = vdwg.mxu0
    %v257 = vsel %vm45, %v203, 0
    %v260 = vsel %vm45, %v207, 0
    %262 = vmatprep.subr.bf16.mxu0 0
    %263 = vmatpush1.bf16.xpose.msra.mxu0 %v260
    %264 = vmatprep.subr.bf16.mxu0 0
    %265 = vmatpush1.bf16.xpose.msra.mxu0 0
    %266 = vmatprep.subr.bf16.mxu0 0
    %267 = vmatpush1.bf16.xpose.msra.mxu0 0
    %268 = vmatprep.subr.bf16.mxu0 0
    %269 = vmatpush1.bf16.xpose.msra.mxu0 0
    %270 = vmatprep.subr.bf16.mxu0 0
    %271 = vmatpush1.bf16.xpose.msra.mxu0 0
    %272 = vmatprep.subr.bf16.mxu0 0
    %273 = vmatpush1.bf16.xpose.msra.mxu0 0
    %274 = vmatprep.subr.bf16.mxu0 0
    %275 = vmatpush1.bf16.xpose.msra.mxu0 0
    %276 = vmatprep.subr.bf16.mxu0 0
    %277 = vmatpush1.bf16.xpose.msra.mxu0 0
    %278 = vmatprep.subr.bf16.mxu0 0
    %279 = vmatpush1.bf16.xpose.msra.mxu0 0
    %280 = vmatprep.subr.bf16.mxu0 0
    %281 = vmatpush1.bf16.xpose.msra.mxu0 0
    %282 = vmatprep.subr.bf16.mxu0 0
    %283 = vmatpush1.bf16.xpose.msra.mxu0 0
    %284 = vmatprep.subr.bf16.mxu0 0
    %285 = vmatpush1.bf16.xpose.msra.mxu0 0
    %286 = vmatprep.subr.bf16.mxu0 0
    %287 = vmatpush1.bf16.xpose.msra.mxu0 0
    %288 = vmatprep.subr.bf16.mxu0 0
    %289 = vmatpush1.bf16.xpose.msra.mxu0 0
    %290 = vmatprep.subr.bf16.mxu0 0
    %291 = vmatpush1.bf16.xpose.msra.mxu0 0
    %292 = vmatprep.subr.bf16.mxu0 0
    %293 = vmatpush1.bf16.xpose.msra.mxu0 0
    %294 = vmatprep.mubr.bf16.mxu0 0
    %295 = vmatmul.mubr.bf16.gmra.mrb[0].mxu0 %v257
    %v296 = vpop.f32.mrb[0].mxu0
    %v297 = vadd.f32 1.0, %v296
    %v298 = vpop.f32.mrb[0].mxu0
    %v299 = vpop.f32.mrb[0].mxu0
    %v300 = vpop.f32.mrb[0].mxu0
    %301 = vdwg.mxu0
    %v303 = vsel %vm45, %v204, 0
    %v306 = vsel %vm45, %v208, 0
    %308 = vmatprep.subr.bf16.mxu0 0
    %309 = vmatpush1.bf16.xpose.msra.mxu0 %v306
    %310 = vmatprep.subr.bf16.mxu0 0
    %311 = vmatpush1.bf16.xpose.msra.mxu0 0
    %312 = vmatprep.subr.bf16.mxu0 0
    %313 = vmatpush1.bf16.xpose.msra.mxu0 0
    %314 = vmatprep.subr.bf16.mxu0 0
    %315 = vmatpush1.bf16.xpose.msra.mxu0 0
    %316 = vmatprep.subr.bf16.mxu0 0
    %317 = vmatpush1.bf16.xpose.msra.mxu0 0
    %318 = vmatprep.subr.bf16.mxu0 0
    %319 = vmatpush1.bf16.xpose.msra.mxu0 0
    %320 = vmatprep.subr.bf16.mxu0 0
    %321 = vmatpush1.bf16.xpose.msra.mxu0 0
    %322 = vmatprep.subr.bf16.mxu0 0
    %323 = vmatpush1.bf16.xpose.msra.mxu0 0
    %324 = vmatprep.subr.bf16.mxu0 0
    %325 = vmatpush1.bf16.xpose.msra.mxu0 0
    %326 = vmatprep.subr.bf16.mxu0 0
    %327 = vmatpush1.bf16.xpose.msra.mxu0 0
    %328 = vmatprep.subr.bf16.mxu0 0
    %329 = vmatpush1.bf16.xpose.msra.mxu0 0
    %330 = vmatprep.subr.bf16.mxu0 0
    %331 = vmatpush1.bf16.xpose.msra.mxu0 0
    %332 = vmatprep.subr.bf16.mxu0 0
    %333 = vmatpush1.bf16.xpose.msra.mxu0 0
    %334 = vmatprep.subr.bf16.mxu0 0
    %335 = vmatpush1.bf16.xpose.msra.mxu0 0
    %336 = vmatprep.subr.bf16.mxu0 0
    %337 = vmatpush1.bf16.xpose.msra.mxu0 0
    %338 = vmatprep.subr.bf16.mxu0 0
    %339 = vmatpush1.bf16.xpose.msra.mxu0 0
    %340 = vmatprep.mubr.bf16.mxu0 0
    %341 = vmatmul.mubr.bf16.gmra.mrb[0].mxu0 %v303
    %v342 = vpop.f32.mrb[0].mxu0
    %v343 = vadd.f32 1.0, %v342
    %v344 = vpop.f32.mrb[0].mxu0
    %v345 = vpop.f32.mrb[0].mxu0
    %v346 = vpop.f32.mrb[0].mxu0
    %347 = vdwg.mxu0
    %v349 = vsel %vm45, %v205, 0
    %v352 = vsel %vm45, %v209, 0
    %354 = vmatprep.subr.bf16.mxu0 0
    %355 = vmatpush1.bf16.xpose.msra.mxu0 %v352
    %356 = vmatprep.subr.bf16.mxu0 0
    %357 = vmatpush1.bf16.xpose.msra.mxu0 0
    %358 = vmatprep.subr.bf16.mxu0 0
    %359 = vmatpush1.bf16.xpose.msra.mxu0 0
    %360 = vmatprep.subr.bf16.mxu0 0
    %361 = vmatpush1.bf16.xpose.msra.mxu0 0
    %362 = vmatprep.subr.bf16.mxu0 0
    %363 = vmatpush1.bf16.xpose.msra.mxu0 0
    %364 = vmatprep.subr.bf16.mxu0 0
    %365 = vmatpush1.bf16.xpose.msra.mxu0 0
    %366 = vmatprep.subr.bf16.mxu0 0
    %367 = vmatpush1.bf16.xpose.msra.mxu0 0
    %368 = vmatprep.subr.bf16.mxu0 0
    %369 = vmatpush1.bf16.xpose.msra.mxu0 0
    %370 = vmatprep.subr.bf16.mxu0 0
    %371 = vmatpush1.bf16.xpose.msra.mxu0 0
    %372 = vmatprep.subr.bf16.mxu0 0
    %373 = vmatpush1.bf16.xpose.msra.mxu0 0
    %374 = vmatprep.subr.bf16.mxu0 0
    %375 = vmatpush1.bf16.xpose.msra.mxu0 0
    %376 = vmatprep.subr.bf16.mxu0 0
    %377 = vmatpush1.bf16.xpose.msra.mxu0 0
    %378 = vmatprep.subr.bf16.mxu0 0
    %379 = vmatpush1.bf16.xpose.msra.mxu0 0
    %380 = vmatprep.subr.bf16.mxu0 0
    %381 = vmatpush1.bf16.xpose.msra.mxu0 0
    %382 = vmatprep.subr.bf16.mxu0 0
    %383 = vmatpush1.bf16.xpose.msra.mxu0 0
    %384 = vmatprep.subr.bf16.mxu0 0
    %385 = vmatpush1.bf16.xpose.msra.mxu0 0
    %386 = vmatprep.mubr.bf16.mxu0 0
    %387 = vmatmul.mubr.bf16.gmra.mrb[0].mxu0 %v349
    %v388 = vpop.f32.mrb[0].mxu0
    %v389 = vadd.f32 1.0, %v388
    %v390 = vpop.f32.mrb[0].mxu0
    %v391 = vpop.f32.mrb[0].mxu0
    %v392 = vpop.f32.mrb[0].mxu0
    %393 = vdwg.mxu0
    %v394 = vld [vmem:[#allocation2] sm:$0xff]
    %v395 = vld [vmem:[#allocation2 + $0x8] sm:$0xff]
    %v396 = vld [vmem:[#allocation2 + $0x10] sm:$0xff]
    %v397 = vld [vmem:[#allocation2 + $0x18] sm:$0xff]
    %vm398 = vcmask 64512
    %v399 = vsel %vm398, %v251, 0.0
    %400 = vadd.xlane.f32.xlu0 %v399
    %v401 = vpop.xlane.xlu0 %400
    %v402 = vsel %vm398, %v297, 0.0
    %403 = vadd.xlane.f32.xlu0 %v402
    %v404 = vpop.xlane.xlu0 %403
    %v405 = vsel %vm398, %v343, 0.0
    %406 = vadd.xlane.f32.xlu0 %v405
    %v407 = vpop.xlane.xlu0 %406
    %v408 = vsel %vm398, %v389, 0.0
    %409 = vadd.xlane.f32.xlu0 %v408
    %v410 = vpop.xlane.xlu0 %409
    %v411 = vadd.f32 %v394, %v401
    %v412 = vadd.f32 %v395, %v404
    %v413 = vadd.f32 %v396, %v407
    %v414 = vadd.f32 %v397, %v410
    %vm415 = vcmask 7168
    %416 = vst.msk [vmem:[#allocation2] sm:$0xff] %vm415, %v411
    %417 = vst.msk [vmem:[#allocation2 + $0x8] sm:$0xff] %vm415, %v412
    %418 = vst.msk [vmem:[#allocation2 + $0x10] sm:$0xff] %vm415, %v413
    %419 = vst.msk [vmem:[#allocation2 + $0x18] sm:$0xff] %vm415, %v414
    %v420 = vld [vmem:[#allocation3] sm:$0xff]
    %v421 = vld [vmem:[#allocation3 + $0x8] sm:$0xff]
    %v422 = vld [vmem:[#allocation3 + $0x10] sm:$0xff]
    %v423 = vld [vmem:[#allocation3 + $0x18] sm:$0xff]
    %v424 = vpack.c.bf16 %v251, %v251
    %v425 = vpack.c.bf16 %v297, %v297
    %v426 = vpack.c.bf16 %v343, %v343
    %v427 = vpack.c.bf16 %v389, %v389
    %v428 = vld [vmem:[%s2] sm:$0xf]
    %v429 = vld [vmem:[%s2 + $0x4] sm:$0xf]
    %v430 = vld [vmem:[%s2 + $0x8] sm:$0xf]
    %v431 = vld [vmem:[%s2 + $0xc] sm:$0xf]
    %v433 = vsel %vm398, %v424, 0
    %vm435 = vcmask 1043456
    %v437 = vsel %vm435, %v428, 0
    %439 = vmatprep.subr.bf16.mxu0 0
    %440 = vmatpush1.bf16.msra.mxu0 %v437
    %441 = vmatprep.subr.bf16.mxu0 0
    %442 = vmatpush1.bf16.msra.mxu0 0
    %443 = vmatprep.subr.bf16.mxu0 0
    %444 = vmatpush1.bf16.msra.mxu0 0
    %445 = vmatprep.subr.bf16.mxu0 0
    %446 = vmatpush1.bf16.msra.mxu0 0
    %447 = vmatprep.subr.bf16.mxu0 0
    %448 = vmatpush1.bf16.msra.mxu0 0
    %449 = vmatprep.subr.bf16.mxu0 0
    %450 = vmatpush1.bf16.msra.mxu0 0
    %451 = vmatprep.subr.bf16.mxu0 0
    %452 = vmatpush1.bf16.msra.mxu0 0
    %453 = vmatprep.subr.bf16.mxu0 0
    %454 = vmatpush1.bf16.msra.mxu0 0
    %455 = vmatprep.subr.bf16.mxu0 0
    %456 = vmatpush1.bf16.msra.mxu0 0
    %457 = vmatprep.subr.bf16.mxu0 0
    %458 = vmatpush1.bf16.msra.mxu0 0
    %459 = vmatprep.subr.bf16.mxu0 0
    %460 = vmatpush1.bf16.msra.mxu0 0
    %461 = vmatprep.subr.bf16.mxu0 0
    %462 = vmatpush1.bf16.msra.mxu0 0
    %463 = vmatprep.subr.bf16.mxu0 0
    %464 = vmatpush1.bf16.msra.mxu0 0
    %465 = vmatprep.subr.bf16.mxu0 0
    %466 = vmatpush1.bf16.msra.mxu0 0
    %467 = vmatprep.subr.bf16.mxu0 0
    %468 = vmatpush1.bf16.msra.mxu0 0
    %469 = vmatprep.subr.bf16.mxu0 0
    %470 = vmatpush1.bf16.msra.mxu0 0
    %471 = vmatprep.mubr.bf16.mxu0 0
    %472 = vmatmul.mubr.bf16.gmra.mrb[0].mxu0 %v433
    %v473 = vpop.f32.mrb[0].mxu0
    %v474 = vadd.f32 0.0, %v473
    %v475 = vpop.f32.mrb[0].mxu0
    %v476 = vpop.f32.mrb[0].mxu0
    %v477 = vpop.f32.mrb[0].mxu0
    %478 = vdwg.mxu0
    %v480 = vsel %vm398, %v425, 0
    %v483 = vsel %vm435, %v429, 0
    %485 = vmatprep.subr.bf16.mxu0 0
    %486 = vmatpush1.bf16.msra.mxu0 %v483
    %487 = vmatprep.subr.bf16.mxu0 0
    %488 = vmatpush1.bf16.msra.mxu0 0
    %489 = vmatprep.subr.bf16.mxu0 0
    %490 = vmatpush1.bf16.msra.mxu0 0
    %491 = vmatprep.subr.bf16.mxu0 0
    %492 = vmatpush1.bf16.msra.mxu0 0
    %493 = vmatprep.subr.bf16.mxu0 0
    %494 = vmatpush1.bf16.msra.mxu0 0
    %495 = vmatprep.subr.bf16.mxu0 0
    %496 = vmatpush1.bf16.msra.mxu0 0
    %497 = vmatprep.subr.bf16.mxu0 0
    %498 = vmatpush1.bf16.msra.mxu0 0
    %499 = vmatprep.subr.bf16.mxu0 0
    %500 = vmatpush1.bf16.msra.mxu0 0
    %501 = vmatprep.subr.bf16.mxu0 0
    %502 = vmatpush1.bf16.msra.mxu0 0
    %503 = vmatprep.subr.bf16.mxu0 0
    %504 = vmatpush1.bf16.msra.mxu0 0
    %505 = vmatprep.subr.bf16.mxu0 0
    %506 = vmatpush1.bf16.msra.mxu0 0
    %507 = vmatprep.subr.bf16.mxu0 0
    %508 = vmatpush1.bf16.msra.mxu0 0
    %509 = vmatprep.subr.bf16.mxu0 0
    %510 = vmatpush1.bf16.msra.mxu0 0
    %511 = vmatprep.subr.bf16.mxu0 0
    %512 = vmatpush1.bf16.msra.mxu0 0
    %513 = vmatprep.subr.bf16.mxu0 0
    %514 = vmatpush1.bf16.msra.mxu0 0
    %515 = vmatprep.subr.bf16.mxu0 0
    %516 = vmatpush1.bf16.msra.mxu0 0
    %517 = vmatprep.mubr.bf16.mxu0 0
    %518 = vmatmul.mubr.bf16.gmra.mrb[0].mxu0 %v480
    %v519 = vpop.f32.mrb[0].mxu0
    %v520 = vadd.f32 0.0, %v519
    %v521 = vpop.f32.mrb[0].mxu0
    %v522 = vpop.f32.mrb[0].mxu0
    %v523 = vpop.f32.mrb[0].mxu0
    %524 = vdwg.mxu0
    %v526 = vsel %vm398, %v426, 0
    %v529 = vsel %vm435, %v430, 0
    %531 = vmatprep.subr.bf16.mxu0 0
    %532 = vmatpush1.bf16.msra.mxu0 %v529
    %533 = vmatprep.subr.bf16.mxu0 0
    %534 = vmatpush1.bf16.msra.mxu0 0
    %535 = vmatprep.subr.bf16.mxu0 0
    %536 = vmatpush1.bf16.msra.mxu0 0
    %537 = vmatprep.subr.bf16.mxu0 0
    %538 = vmatpush1.bf16.msra.mxu0 0
    %539 = vmatprep.subr.bf16.mxu0 0
    %540 = vmatpush1.bf16.msra.mxu0 0
    %541 = vmatprep.subr.bf16.mxu0 0
    %542 = vmatpush1.bf16.msra.mxu0 0
    %543 = vmatprep.subr.bf16.mxu0 0
    %544 = vmatpush1.bf16.msra.mxu0 0
    %545 = vmatprep.subr.bf16.mxu0 0
    %546 = vmatpush1.bf16.msra.mxu0 0
    %547 = vmatprep.subr.bf16.mxu0 0
    %548 = vmatpush1.bf16.msra.mxu0 0
    %549 = vmatprep.subr.bf16.mxu0 0
    %550 = vmatpush1.bf16.msra.mxu0 0
    %551 = vmatprep.subr.bf16.mxu0 0
    %552 = vmatpush1.bf16.msra.mxu0 0
    %553 = vmatprep.subr.bf16.mxu0 0
    %554 = vmatpush1.bf16.msra.mxu0 0
    %555 = vmatprep.subr.bf16.mxu0 0
    %556 = vmatpush1.bf16.msra.mxu0 0
    %557 = vmatprep.subr.bf16.mxu0 0
    %558 = vmatpush1.bf16.msra.mxu0 0
    %559 = vmatprep.subr.bf16.mxu0 0
    %560 = vmatpush1.bf16.msra.mxu0 0
    %561 = vmatprep.subr.bf16.mxu0 0
    %562 = vmatpush1.bf16.msra.mxu0 0
    %563 = vmatprep.mubr.bf16.mxu0 0
    %564 = vmatmul.mubr.bf16.gmra.mrb[0].mxu0 %v526
    %v565 = vpop.f32.mrb[0].mxu0
    %v566 = vadd.f32 0.0, %v565
    %v567 = vpop.f32.mrb[0].mxu0
    %v568 = vpop.f32.mrb[0].mxu0
    %v569 = vpop.f32.mrb[0].mxu0
    %570 = vdwg.mxu0
    %v572 = vsel %vm398, %v427, 0
    %v575 = vsel %vm435, %v431, 0
    %577 = vmatprep.subr.bf16.mxu0 0
    %578 = vmatpush1.bf16.msra.mxu0 %v575
    %579 = vmatprep.subr.bf16.mxu0 0
    %580 = vmatpush1.bf16.msra.mxu0 0
    %581 = vmatprep.subr.bf16.mxu0 0
    %582 = vmatpush1.bf16.msra.mxu0 0
    %583 = vmatprep.subr.bf16.mxu0 0
    %584 = vmatpush1.bf16.msra.mxu0 0
    %585 = vmatprep.subr.bf16.mxu0 0
    %586 = vmatpush1.bf16.msra.mxu0 0
    %587 = vmatprep.subr.bf16.mxu0 0
    %588 = vmatpush1.bf16.msra.mxu0 0
    %589 = vmatprep.subr.bf16.mxu0 0
    %590 = vmatpush1.bf16.msra.mxu0 0
    %591 = vmatprep.subr.bf16.mxu0 0
    %592 = vmatpush1.bf16.msra.mxu0 0
    %593 = vmatprep.subr.bf16.mxu0 0
    %594 = vmatpush1.bf16.msra.mxu0 0
    %595 = vmatprep.subr.bf16.mxu0 0
    %596 = vmatpush1.bf16.msra.mxu0 0
    %597 = vmatprep.subr.bf16.mxu0 0
    %598 = vmatpush1.bf16.msra.mxu0 0
    %599 = vmatprep.subr.bf16.mxu0 0
    %600 = vmatpush1.bf16.msra.mxu0 0
    %601 = vmatprep.subr.bf16.mxu0 0
    %602 = vmatpush1.bf16.msra.mxu0 0
    %603 = vmatprep.subr.bf16.mxu0 0
    %604 = vmatpush1.bf16.msra.mxu0 0
    %605 = vmatprep.subr.bf16.mxu0 0
    %606 = vmatpush1.bf16.msra.mxu0 0
    %607 = vmatprep.subr.bf16.mxu0 0
    %608 = vmatpush1.bf16.msra.mxu0 0
    %609 = vmatprep.mubr.bf16.mxu0 0
    %610 = vmatmul.mubr.bf16.gmra.mrb[0].mxu0 %v572
    %v611 = vpop.f32.mrb[0].mxu0
    %v612 = vadd.f32 0.0, %v611
    %v613 = vpop.f32.mrb[0].mxu0
    %v614 = vpop.f32.mrb[0].mxu0
    %v615 = vpop.f32.mrb[0].mxu0
    %616 = vdwg.mxu0
    %v617 = vadd.f32 %v420, %v474
    %v618 = vadd.f32 %v421, %v520
    %v619 = vadd.f32 %v422, %v566
    %v620 = vadd.f32 %v423, %v612
    %621 = vst.msk [vmem:[#allocation3] sm:$0xff] %vm45, %v617
    %622 = vst.msk [vmem:[#allocation3 + $0x8] sm:$0xff] %vm45, %v618
    %623 = vst.msk [vmem:[#allocation3 + $0x10] sm:$0xff] %vm45, %v619
    %624 = vst.msk [vmem:[#allocation3 + $0x18] sm:$0xff] %vm45, %v620
  $region21: #{model_forward.42} parent=0 // pred_fallthru
    _
  %p625 = scmp.eq.s32.totalorder 0, 0
  // Predicated region
  $region22: #{model_forward.42} parent=0 // pred_check
    %p626 = pneg %p625
  $region23: #{model_forward.42} parent=0 // pred_check_branch
    %628 = sbr.rel (%p626) target = $region25
  $region24: #{model_forward.42} parent=0 // pred_region
    %v629 = vld [vmem:[%s0] sm:$0xf]
    %v630 = vld [vmem:[%s0 + $0x4] sm:$0xf]
    %v631 = vld [vmem:[%s0 + $0x8] sm:$0xf]
    %v632 = vld [vmem:[%s0 + $0xc] sm:$0xf]
    %v633 = vunpack.c.l.bf16 %v629
    %v634 = vunpack.c.l.bf16 %v630
    %v635 = vunpack.c.l.bf16 %v631
    %v636 = vunpack.c.l.bf16 %v632
    %v637 = vmul.f32 %v633, %v633
    %v638 = vmul.f32 %v634, %v634
    %v639 = vmul.f32 %v635, %v635
    %v640 = vmul.f32 %v636, %v636
    %vm641 = vcmask 130048
    %v642 = vsel %vm641, %v637, 0.0
    %643 = vadd.xlane.f32.xlu0 %v642
    %v644 = vpop.xlane.xlu0 %643
    %v645 = vsel %vm641, %v638, 0.0
    %646 = vadd.xlane.f32.xlu0 %v645
    %v647 = vpop.xlane.xlu0 %646
    %v648 = vsel %vm641, %v639, 0.0
    %649 = vadd.xlane.f32.xlu0 %v648
    %v650 = vpop.xlane.xlu0 %649
    %v651 = vsel %vm641, %v640, 0.0
    %652 = vadd.xlane.f32.xlu0 %v651
    %v653 = vpop.xlane.xlu0 %652
    %v654 = vrsqrt.pop %v644
    %v655 = vmul.f32 %v644, %v654
    %vm656 = vcmp.eq.f32.partialorder %v644, inf
    %v657 = vsel %vm656, %v644, %v655
    %vm658 = vcmp.eq.f32.partialorder %v644, 0.0
    %v659 = vand.u32 %v644, 2147483648
    %v660 = vsel %vm658, %v659, %v657
    %v661 = vrsqrt.pop %v647
    %v662 = vmul.f32 %v647, %v661
    %vm663 = vcmp.eq.f32.partialorder %v647, inf
    %v664 = vsel %vm663, %v647, %v662
    %vm665 = vcmp.eq.f32.partialorder %v647, 0.0
    %v666 = vand.u32 %v647, 2147483648
    %v667 = vsel %vm665, %v666, %v664
    %v668 = vrsqrt.pop %v650
    %v669 = vmul.f32 %v650, %v668
    %vm670 = vcmp.eq.f32.partialorder %v650, inf
    %v671 = vsel %vm670, %v650, %v669
    %vm672 = vcmp.eq.f32.partialorder %v650, 0.0
    %v673 = vand.u32 %v650, 2147483648
    %v674 = vsel %vm672, %v673, %v671
    %v675 = vrsqrt.pop %v653
    %v676 = vmul.f32 %v653, %v675
    %vm677 = vcmp.eq.f32.partialorder %v653, inf
    %v678 = vsel %vm677, %v653, %v676
    %vm679 = vcmp.eq.f32.partialorder %v653, 0.0
    %v680 = vand.u32 %v653, 2147483648
    %v681 = vsel %vm679, %v680, %v678
    %v682 = vmax.f32 %v660, 1e-12
    %v683 = vmax.f32 %v667, 1e-12
    %v684 = vmax.f32 %v674, 1e-12
    %v685 = vmax.f32 %v681, 1e-12
    %v686 = vrcp.pop %v682
    %v687 = vmul.f32 %v633, %v686
    %v688 = vrcp.pop %v683
    %v689 = vmul.f32 %v634, %v688
    %v690 = vrcp.pop %v684
    %v691 = vmul.f32 %v635, %v690
    %v692 = vrcp.pop %v685
    %v693 = vmul.f32 %v636, %v692
    %v694 = vmul.f32 %v660, -0.6931472
    %v695 = vmul.f32 %v667, -0.6931472
    %v696 = vmul.f32 %v674, -0.6931472
    %v697 = vmul.f32 %v681, -0.6931472
    %v698 = vmul.f32 %v694, 1.442695
    %v699 = vpow.pop %v698
    %v700 = vmul.f32 %v695, 1.442695
    %v701 = vpow.pop %v700
    %v702 = vmul.f32 %v696, 1.442695
    %v703 = vpow.pop %v702
    %v704 = vmul.f32 %v697, 1.442695
    %v705 = vpow.pop %v704
    %v706 = vsub.f32 1.0, %v699
    %v707 = vsub.f32 1.0, %v701
    %v708 = vsub.f32 1.0, %v703
    %v709 = vsub.f32 1.0, %v705
    %v710 = vmul.f32 %v706, %v687
    %v711 = vmul.f32 %v707, %v689
    %v712 = vmul.f32 %v708, %v691
    %v713 = vmul.f32 %v709, %v693
    %v714 = vld [vmem:[%s1] sm:$0xf]
    %v715 = vld [vmem:[%s1 + $0x4] sm:$0xf]
    %v716 = vld [vmem:[%s1 + $0x8] sm:$0xf]
    %v717 = vld [vmem:[%s1 + $0xc] sm:$0xf]
    %v718 = vunpack.c.l.bf16 %v714
    %v719 = vunpack.c.l.bf16 %v715
    %v720 = vunpack.c.l.bf16 %v716
    %v721 = vunpack.c.l.bf16 %v717
    %v722 = vmul.f32 %v718, %v718
    %v723 = vmul.f32 %v719, %v719
    %v724 = vmul.f32 %v720, %v720
    %v725 = vmul.f32 %v721, %v721
    %v726 = vsel %vm641, %v722, 0.0
    %727 = vadd.xlane.f32.xlu0 %v726
    %v728 = vpop.xlane.xlu0 %727
    %v729 = vsel %vm641, %v723, 0.0
    %730 = vadd.xlane.f32.xlu0 %v729
    %v731 = vpop.xlane.xlu0 %730
    %v732 = vsel %vm641, %v724, 0.0
    %733 = vadd.xlane.f32.xlu0 %v732
    %v734 = vpop.xlane.xlu0 %733
    %v735 = vsel %vm641, %v725, 0.0
    %736 = vadd.xlane.f32.xlu0 %v735
    %v737 = vpop.xlane.xlu0 %736
    %v738 = vrsqrt.pop %v728
    %v739 = vmul.f32 %v728, %v738
    %vm740 = vcmp.eq.f32.partialorder %v728, inf
    %v741 = vsel %vm740, %v728, %v739
    %vm742 = vcmp.eq.f32.partialorder %v728, 0.0
    %v743 = vand.u32 %v728, 2147483648
    %v744 = vsel %vm742, %v743, %v741
    %v745 = vrsqrt.pop %v731
    %v746 = vmul.f32 %v731, %v745
    %vm747 = vcmp.eq.f32.partialorder %v731, inf
    %v748 = vsel %vm747, %v731, %v746
    %vm749 = vcmp.eq.f32.partialorder %v731, 0.0
    %v750 = vand.u32 %v731, 2147483648
    %v751 = vsel %vm749, %v750, %v748
    %v752 = vrsqrt.pop %v734
    %v753 = vmul.f32 %v734, %v752
    %vm754 = vcmp.eq.f32.partialorder %v734, inf
    %v755 = vsel %vm754, %v734, %v753
    %vm756 = vcmp.eq.f32.partialorder %v734, 0.0
    %v757 = vand.u32 %v734, 2147483648
    %v758 = vsel %vm756, %v757, %v755
    %v759 = vrsqrt.pop %v737
    %v760 = vmul.f32 %v737, %v759
    %vm761 = vcmp.eq.f32.partialorder %v737, inf
    %v762 = vsel %vm761, %v737, %v760
    %vm763 = vcmp.eq.f32.partialorder %v737, 0.0
    %v764 = vand.u32 %v737, 2147483648
    %v765 = vsel %vm763, %v764, %v762
    %v766 = vmax.f32 %v744, 1e-12
    %v767 = vmax.f32 %v751, 1e-12
    %v768 = vmax.f32 %v758, 1e-12
    %v769 = vmax.f32 %v765, 1e-12
    %v770 = vrcp.pop %v766
    %v771 = vmul.f32 %v718, %v770
    %v772 = vrcp.pop %v767
    %v773 = vmul.f32 %v719, %v772
    %v774 = vrcp.pop %v768
    %v775 = vmul.f32 %v720, %v774
    %v776 = vrcp.pop %v769
    %v777 = vmul.f32 %v721, %v776
    %v778 = vmul.f32 %v744, -0.6931472
    %v779 = vmul.f32 %v751, -0.6931472
    %v780 = vmul.f32 %v758, -0.6931472
    %v781 = vmul.f32 %v765, -0.6931472
    %v782 = vmul.f32 %v778, 1.442695
    %v783 = vpow.pop %v782
    %v784 = vmul.f32 %v779, 1.442695
    %v785 = vpow.pop %v784
    %v786 = vmul.f32 %v780, 1.442695
    %v787 = vpow.pop %v786
    %v788 = vmul.f32 %v781, 1.442695
    %v789 = vpow.pop %v788
    %v790 = vsub.f32 1.0, %v783
    %v791 = vsub.f32 1.0, %v785
    %v792 = vsub.f32 1.0, %v787
    %v793 = vsub.f32 1.0, %v789
    %v794 = vmul.f32 %v790, %v771
    %v795 = vmul.f32 %v791, %v773
    %v796 = vmul.f32 %v792, %v775
    %v797 = vmul.f32 %v793, %v777
    %v798 = vpack.c.bf16 %v710, %v710
    %v799 = vpack.c.bf16 %v711, %v711
    %v800 = vpack.c.bf16 %v712, %v712
    %v801 = vpack.c.bf16 %v713, %v713
    %v802 = vpack.c.bf16 %v794, %v794
    %v803 = vpack.c.bf16 %v795, %v795
    %v804 = vpack.c.bf16 %v796, %v796
    %v805 = vpack.c.bf16 %v797, %v797
    %v807 = vsel %vm641, %v798, 0
    %v810 = vsel %vm641, %v802, 0
    %812 = vmatprep.subr.bf16.mxu0 0
    %813 = vmatpush1.bf16.xpose.msra.mxu0 %v810
    %814 = vmatprep.subr.bf16.mxu0 0
    %815 = vmatpush1.bf16.xpose.msra.mxu0 0
    %816 = vmatprep.subr.bf16.mxu0 0
    %817 = vmatpush1.bf16.xpose.msra.mxu0 0
    %818 = vmatprep.subr.bf16.mxu0 0
    %819 = vmatpush1.bf16.xpose.msra.mxu0 0
    %820 = vmatprep.subr.bf16.mxu0 0
    %821 = vmatpush1.bf16.xpose.msra.mxu0 0
    %822 = vmatprep.subr.bf16.mxu0 0
    %823 = vmatpush1.bf16.xpose.msra.mxu0 0
    %824 = vmatprep.subr.bf16.mxu0 0
    %825 = vmatpush1.bf16.xpose.msra.mxu0 0
    %826 = vmatprep.subr.bf16.mxu0 0
    %827 = vmatpush1.bf16.xpose.msra.mxu0 0
    %828 = vmatprep.subr.bf16.mxu0 0
    %829 = vmatpush1.bf16.xpose.msra.mxu0 0
    %830 = vmatprep.subr.bf16.mxu0 0
    %831 = vmatpush1.bf16.xpose.msra.mxu0 0
    %832 = vmatprep.subr.bf16.mxu0 0
    %833 = vmatpush1.bf16.xpose.msra.mxu0 0
    %834 = vmatprep.subr.bf16.mxu0 0
    %835 = vmatpush1.bf16.xpose.msra.mxu0 0
    %836 = vmatprep.subr.bf16.mxu0 0
    %837 = vmatpush1.bf16.xpose.msra.mxu0 0
    %838 = vmatprep.subr.bf16.mxu0 0
    %839 = vmatpush1.bf16.xpose.msra.mxu0 0
    %840 = vmatprep.subr.bf16.mxu0 0
    %841 = vmatpush1.bf16.xpose.msra.mxu0 0
    %842 = vmatprep.subr.bf16.mxu0 0
    %843 = vmatpush1.bf16.xpose.msra.mxu0 0
    %844 = vmatprep.mubr.bf16.mxu0 0
    %845 = vmatmul.mubr.bf16.gmra.mrb[0].mxu0 %v807
    %v846 = vpop.f32.mrb[0].mxu0
    %v847 = vadd.f32 1.0, %v846
    %v848 = vpop.f32.mrb[0].mxu0
    %v849 = vpop.f32.mrb[0].mxu0
    %v850 = vpop.f32.mrb[0].mxu0
    %851 = vdwg.mxu0
    %v853 = vsel %vm641, %v799, 0
    %v856 = vsel %vm641, %v803, 0
    %858 = vmatprep.subr.bf16.mxu0 0
    %859 = vmatpush1.bf16.xpose.msra.mxu0 %v856
    %860 = vmatprep.subr.bf16.mxu0 0
    %861 = vmatpush1.bf16.xpose.msra.mxu0 0
    %862 = vmatprep.subr.bf16.mxu0 0
    %863 = vmatpush1.bf16.xpose.msra.mxu0 0
    %864 = vmatprep.subr.bf16.mxu0 0
    %865 = vmatpush1.bf16.xpose.msra.mxu0 0
    %866 = vmatprep.subr.bf16.mxu0 0
    %867 = vmatpush1.bf16.xpose.msra.mxu0 0
    %868 = vmatprep.subr.bf16.mxu0 0
    %869 = vmatpush1.bf16.xpose.msra.mxu0 0
    %870 = vmatprep.subr.bf16.mxu0 0
    %871 = vmatpush1.bf16.xpose.msra.mxu0 0
    %872 = vmatprep.subr.bf16.mxu0 0
    %873 = vmatpush1.bf16.xpose.msra.mxu0 0
    %874 = vmatprep.subr.bf16.mxu0 0
    %875 = vmatpush1.bf16.xpose.msra.mxu0 0
    %876 = vmatprep.subr.bf16.mxu0 0
    %877 = vmatpush1.bf16.xpose.msra.mxu0 0
    %878 = vmatprep.subr.bf16.mxu0 0
    %879 = vmatpush1.bf16.xpose.msra.mxu0 0
    %880 = vmatprep.subr.bf16.mxu0 0
    %881 = vmatpush1.bf16.xpose.msra.mxu0 0
    %882 = vmatprep.subr.bf16.mxu0 0
    %883 = vmatpush1.bf16.xpose.msra.mxu0 0
    %884 = vmatprep.subr.bf16.mxu0 0
    %885 = vmatpush1.bf16.xpose.msra.mxu0 0
    %886 = vmatprep.subr.bf16.mxu0 0
    %887 = vmatpush1.bf16.xpose.msra.mxu0 0
    %888 = vmatprep.subr.bf16.mxu0 0
    %889 = vmatpush1.bf16.xpose.msra.mxu0 0
    %890 = vmatprep.mubr.bf16.mxu0 0
    %891 = vmatmul.mubr.bf16.gmra.mrb[0].mxu0 %v853
    %v892 = vpop.f32.mrb[0].mxu0
    %v893 = vadd.f32 1.0, %v892
    %v894 = vpop.f32.mrb[0].mxu0
    %v895 = vpop.f32.mrb[0].mxu0
    %v896 = vpop.f32.mrb[0].mxu0
    %897 = vdwg.mxu0
    %v899 = vsel %vm641, %v800, 0
    %v902 = vsel %vm641, %v804, 0
    %904 = vmatprep.subr.bf16.mxu0 0
    %905 = vmatpush1.bf16.xpose.msra.mxu0 %v902
    %906 = vmatprep.subr.bf16.mxu0 0
    %907 = vmatpush1.bf16.xpose.msra.mxu0 0
    %908 = vmatprep.subr.bf16.mxu0 0
    %909 = vmatpush1.bf16.xpose.msra.mxu0 0
    %910 = vmatprep.subr.bf16.mxu0 0
    %911 = vmatpush1.bf16.xpose.msra.mxu0 0
    %912 = vmatprep.subr.bf16.mxu0 0
    %913 = vmatpush1.bf16.xpose.msra.mxu0 0
    %914 = vmatprep.subr.bf16.mxu0 0
    %915 = vmatpush1.bf16.xpose.msra.mxu0 0
    %916 = vmatprep.subr.bf16.mxu0 0
    %917 = vmatpush1.bf16.xpose.msra.mxu0 0
    %918 = vmatprep.subr.bf16.mxu0 0
    %919 = vmatpush1.bf16.xpose.msra.mxu0 0
    %920 = vmatprep.subr.bf16.mxu0 0
    %921 = vmatpush1.bf16.xpose.msra.mxu0 0
    %922 = vmatprep.subr.bf16.mxu0 0
    %923 = vmatpush1.bf16.xpose.msra.mxu0 0
    %924 = vmatprep.subr.bf16.mxu0 0
    %925 = vmatpush1.bf16.xpose.msra.mxu0 0
    %926 = vmatprep.subr.bf16.mxu0 0
    %927 = vmatpush1.bf16.xpose.msra.mxu0 0
    %928 = vmatprep.subr.bf16.mxu0 0
    %929 = vmatpush1.bf16.xpose.msra.mxu0 0
    %930 = vmatprep.subr.bf16.mxu0 0
    %931 = vmatpush1.bf16.xpose.msra.mxu0 0
    %932 = vmatprep.subr.bf16.mxu0 0
    %933 = vmatpush1.bf16.xpose.msra.mxu0 0
    %934 = vmatprep.subr.bf16.mxu0 0
    %935 = vmatpush1.bf16.xpose.msra.mxu0 0
    %936 = vmatprep.mubr.bf16.mxu0 0
    %937 = vmatmul.mubr.bf16.gmra.mrb[0].mxu0 %v899
    %v938 = vpop.f32.mrb[0].mxu0
    %v939 = vadd.f32 1.0, %v938
    %v940 = vpop.f32.mrb[0].mxu0
    %v941 = vpop.f32.mrb[0].mxu0
    %v942 = vpop.f32.mrb[0].mxu0
    %943 = vdwg.mxu0
    %v945 = vsel %vm641, %v801, 0
    %v948 = vsel %vm641, %v805, 0
    %950 = vmatprep.subr.bf16.mxu0 0
    %951 = vmatpush1.bf16.xpose.msra.mxu0 %v948
    %952 = vmatprep.subr.bf16.mxu0 0
    %953 = vmatpush1.bf16.xpose.msra.mxu0 0
    %954 = vmatprep.subr.bf16.mxu0 0
    %955 = vmatpush1.bf16.xpose.msra.mxu0 0
    %956 = vmatprep.subr.bf16.mxu0 0
    %957 = vmatpush1.bf16.xpose.msra.mxu0 0
    %958 = vmatprep.subr.bf16.mxu0 0
    %959 = vmatpush1.bf16.xpose.msra.mxu0 0
    %960 = vmatprep.subr.bf16.mxu0 0
    %961 = vmatpush1.bf16.xpose.msra.mxu0 0
    %962 = vmatprep.subr.bf16.mxu0 0
    %963 = vmatpush1.bf16.xpose.msra.mxu0 0
    %964 = vmatprep.subr.bf16.mxu0 0
    %965 = vmatpush1.bf16.xpose.msra.mxu0 0
    %966 = vmatprep.subr.bf16.mxu0 0
    %967 = vmatpush1.bf16.xpose.msra.mxu0 0
    %968 = vmatprep.subr.bf16.mxu0 0
    %969 = vmatpush1.bf16.xpose.msra.mxu0 0
    %970 = vmatprep.subr.bf16.mxu0 0
    %971 = vmatpush1.bf16.xpose.msra.mxu0 0
    %972 = vmatprep.subr.bf16.mxu0 0
    %973 = vmatpush1.bf16.xpose.msra.mxu0 0
    %974 = vmatprep.subr.bf16.mxu0 0
    %975 = vmatpush1.bf16.xpose.msra.mxu0 0
    %976 = vmatprep.subr.bf16.mxu0 0
    %977 = vmatpush1.bf16.xpose.msra.mxu0 0
    %978 = vmatprep.subr.bf16.mxu0 0
    %979 = vmatpush1.bf16.xpose.msra.mxu0 0
    %980 = vmatprep.subr.bf16.mxu0 0
    %981 = vmatpush1.bf16.xpose.msra.mxu0 0
    %982 = vmatprep.mubr.bf16.mxu0 0
    %983 = vmatmul.mubr.bf16.gmra.mrb[0].mxu0 %v945
    %v984 = vpop.f32.mrb[0].mxu0
    %v985 = vadd.f32 1.0, %v984
    %v986 = vpop.f32.mrb[0].mxu0
    %v987 = vpop.f32.mrb[0].mxu0
    %v988 = vpop.f32.mrb[0].mxu0
    %989 = vdwg.mxu0
    %v990 = vlaneseq
    %v991 = vshrl.u32 %v990, 7
    %v992 = vlaneseq
    %v993 = vand.u32 %v992, 127
    %vm994 = vcmp.ge.s32.totalorder %v991, %v993
    %v995 = vsel %vm994, %v847, 0.0
    %v996 = vsel %vm994, %v893, 0.0
    %v997 = vsel %vm994, %v939, 0.0
    %v998 = vsel %vm994, %v985, 0.0
    %v999 = vld [vmem:[#allocation2] sm:$0xff]
    %v1000 = vld [vmem:[#allocation2 + $0x8] sm:$0xff]
    %v1001 = vld [vmem:[#allocation2 + $0x10] sm:$0xff]
    %v1002 = vld [vmem:[#allocation2 + $0x18] sm:$0xff]
    %vm1003 = vcmask 64512
    %v1004 = vsel %vm1003, %v995, 0.0
    %1005 = vadd.xlane.f32.xlu0 %v1004
    %v1006 = vpop.xlane.xlu0 %1005
    %v1007 = vsel %vm1003, %v996, 0.0
    %1008 = vadd.xlane.f32.xlu0 %v1007
    %v1009 = vpop.xlane.xlu0 %1008
    %v1010 = vsel %vm1003, %v997, 0.0
    %1011 = vadd.xlane.f32.xlu0 %v1010
    %v1012 = vpop.xlane.xlu0 %1011
    %v1013 = vsel %vm1003, %v998, 0.0
    %1014 = vadd.xlane.f32.xlu0 %v1013
    %v1015 = vpop.xlane.xlu0 %1014
    %v1016 = vadd.f32 %v999, %v1006
    %v1017 = vadd.f32 %v1000, %v1009
    %v1018 = vadd.f32 %v1001, %v1012
    %v1019 = vadd.f32 %v1002, %v1015
    %vm1020 = vcmask 7168
    %1021 = vst.msk [vmem:[#allocation2] sm:$0xff] %vm1020, %v1016
    %1022 = vst.msk [vmem:[#allocation2 + $0x8] sm:$0xff] %vm1020, %v1017
    %1023 = vst.msk [vmem:[#allocation2 + $0x10] sm:$0xff] %vm1020, %v1018
    %1024 = vst.msk [vmem:[#allocation2 + $0x18] sm:$0xff] %vm1020, %v1019
    %v1025 = vld [vmem:[#allocation3] sm:$0xff]
    %v1026 = vld [vmem:[#allocation3 + $0x8] sm:$0xff]
    %v1027 = vld [vmem:[#allocation3 + $0x10] sm:$0xff]
    %v1028 = vld [vmem:[#allocation3 + $0x18] sm:$0xff]
    %v1029 = vpack.c.bf16 %v995, %v995
    %v1030 = vpack.c.bf16 %v996, %v996
    %v1031 = vpack.c.bf16 %v997, %v997
    %v1032 = vpack.c.bf16 %v998, %v998
    %v1033 = vld [vmem:[%s2] sm:$0xf]
    %v1034 = vld [vmem:[%s2 + $0x4] sm:$0xf]
    %v1035 = vld [vmem:[%s2 + $0x8] sm:$0xf]
    %v1036 = vld [vmem:[%s2 + $0xc] sm:$0xf]
    %v1038 = vsel %vm1003, %v1029, 0
    %vm1040 = vcmask 1043456
    %v1042 = vsel %vm1040, %v1033, 0
    %1044 = vmatprep.subr.bf16.mxu0 0
    %1045 = vmatpush1.bf16.msra.mxu0 %v1042
    %1046 = vmatprep.subr.bf16.mxu0 0
    %1047 = vmatpush1.bf16.msra.mxu0 0
    %1048 = vmatprep.subr.bf16.mxu0 0
    %1049 = vmatpush1.bf16.msra.mxu0 0
    %1050 = vmatprep.subr.bf16.mxu0 0
    %1051 = vmatpush1.bf16.msra.mxu0 0
    %1052 = vmatprep.subr.bf16.mxu0 0
    %1053 = vmatpush1.bf16.msra.mxu0 0
    %1054 = vmatprep.subr.bf16.mxu0 0
    %1055 = vmatpush1.bf16.msra.mxu0 0
    %1056 = vmatprep.subr.bf16.mxu0 0
    %1057 = vmatpush1.bf16.msra.mxu0 0
    %1058 = vmatprep.subr.bf16.mxu0 0
    %1059 = vmatpush1.bf16.msra.mxu0 0
    %1060 = vmatprep.subr.bf16.mxu0 0
    %1061 = vmatpush1.bf16.msra.mxu0 0
    %1062 = vmatprep.subr.bf16.mxu0 0
    %1063 = vmatpush1.bf16.msra.mxu0 0
    %1064 = vmatprep.subr.bf16.mxu0 0
    %1065 = vmatpush1.bf16.msra.mxu0 0
    %1066 = vmatprep.subr.bf16.mxu0 0
    %1067 = vmatpush1.bf16.msra.mxu0 0
    %1068 = vmatprep.subr.bf16.mxu0 0
    %1069 = vmatpush1.bf16.msra.mxu0 0
    %1070 = vmatprep.subr.bf16.mxu0 0
    %1071 = vmatpush1.bf16.msra.mxu0 0
    %1072 = vmatprep.subr.bf16.mxu0 0
    %1073 = vmatpush1.bf16.msra.mxu0 0
    %1074 = vmatprep.subr.bf16.mxu0 0
    %1075 = vmatpush1.bf16.msra.mxu0 0
    %1076 = vmatprep.mubr.bf16.mxu0 0
    %1077 = vmatmul.mubr.bf16.gmra.mrb[0].mxu0 %v1038
    %v1078 = vpop.f32.mrb[0].mxu0
    %v1079 = vadd.f32 0.0, %v1078
    %v1080 = vpop.f32.mrb[0].mxu0
    %v1081 = vpop.f32.mrb[0].mxu0
    %v1082 = vpop.f32.mrb[0].mxu0
    %1083 = vdwg.mxu0
    %v1085 = vsel %vm1003, %v1030, 0
    %v1088 = vsel %vm1040, %v1034, 0
    %1090 = vmatprep.subr.bf16.mxu0 0
    %1091 = vmatpush1.bf16.msra.mxu0 %v1088
    %1092 = vmatprep.subr.bf16.mxu0 0
    %1093 = vmatpush1.bf16.msra.mxu0 0
    %1094 = vmatprep.subr.bf16.mxu0 0
    %1095 = vmatpush1.bf16.msra.mxu0 0
    %1096 = vmatprep.subr.bf16.mxu0 0
    %1097 = vmatpush1.bf16.msra.mxu0 0
    %1098 = vmatprep.subr.bf16.mxu0 0
    %1099 = vmatpush1.bf16.msra.mxu0 0
    %1100 = vmatprep.subr.bf16.mxu0 0
    %1101 = vmatpush1.bf16.msra.mxu0 0
    %1102 = vmatprep.subr.bf16.mxu0 0
    %1103 = vmatpush1.bf16.msra.mxu0 0
    %1104 = vmatprep.subr.bf16.mxu0 0
    %1105 = vmatpush1.bf16.msra.mxu0 0
    %1106 = vmatprep.subr.bf16.mxu0 0
    %1107 = vmatpush1.bf16.msra.mxu0 0
    %1108 = vmatprep.subr.bf16.mxu0 0
    %1109 = vmatpush1.bf16.msra.mxu0 0
    %1110 = vmatprep.subr.bf16.mxu0 0
    %1111 = vmatpush1.bf16.msra.mxu0 0
    %1112 = vmatprep.subr.bf16.mxu0 0
    %1113 = vmatpush1.bf16.msra.mxu0 0
    %1114 = vmatprep.subr.bf16.mxu0 0
    %1115 = vmatpush1.bf16.msra.mxu0 0
    %1116 = vmatprep.subr.bf16.mxu0 0
    %1117 = vmatpush1.bf16.msra.mxu0 0
    %1118 = vmatprep.subr.bf16.mxu0 0
    %1119 = vmatpush1.bf16.msra.mxu0 0
    %1120 = vmatprep.subr.bf16.mxu0 0
    %1121 = vmatpush1.bf16.msra.mxu0 0
    %1122 = vmatprep.mubr.bf16.mxu0 0
    %1123 = vmatmul.mubr.bf16.gmra.mrb[0].mxu0 %v1085
    %v1124 = vpop.f32.mrb[0].mxu0
    %v1125 = vadd.f32 0.0, %v1124
    %v1126 = vpop.f32.mrb[0].mxu0
    %v1127 = vpop.f32.mrb[0].mxu0
    %v1128 = vpop.f32.mrb[0].mxu0
    %1129 = vdwg.mxu0
    %v1131 = vsel %vm1003, %v1031, 0
    %v1134 = vsel %vm1040, %v1035, 0
    %1136 = vmatprep.subr.bf16.mxu0 0
    %1137 = vmatpush1.bf16.msra.mxu0 %v1134
    %1138 = vmatprep.subr.bf16.mxu0 0
    %1139 = vmatpush1.bf16.msra.mxu0 0
    %1140 = vmatprep.subr.bf16.mxu0 0
    %1141 = vmatpush1.bf16.msra.mxu0 0
    %1142 = vmatprep.subr.bf16.mxu0 0
    %1143 = vmatpush1.bf16.msra.mxu0 0
    %1144 = vmatprep.subr.bf16.mxu0 0
    %1145 = vmatpush1.bf16.msra.mxu0 0
    %1146 = vmatprep.subr.bf16.mxu0 0
    %1147 = vmatpush1.bf16.msra.mxu0 0
    %1148 = vmatprep.subr.bf16.mxu0 0
    %1149 = vmatpush1.bf16.msra.mxu0 0
    %1150 = vmatprep.subr.bf16.mxu0 0
    %1151 = vmatpush1.bf16.msra.mxu0 0
    %1152 = vmatprep.subr.bf16.mxu0 0
    %1153 = vmatpush1.bf16.msra.mxu0 0
    %1154 = vmatprep.subr.bf16.mxu0 0
    %1155 = vmatpush1.bf16.msra.mxu0 0
    %1156 = vmatprep.subr.bf16.mxu0 0
    %1157 = vmatpush1.bf16.msra.mxu0 0
    %1158 = vmatprep.subr.bf16.mxu0 0
    %1159 = vmatpush1.bf16.msra.mxu0 0
    %1160 = vmatprep.subr.bf16.mxu0 0
    %1161 = vmatpush1.bf16.msra.mxu0 0
    %1162 = vmatprep.subr.bf16.mxu0 0
    %1163 = vmatpush1.bf16.msra.mxu0 0
    %1164 = vmatprep.subr.bf16.mxu0 0
    %1165 = vmatpush1.bf16.msra.mxu0 0
    %1166 = vmatprep.subr.bf16.mxu0 0
    %1167 = vmatpush1.bf16.msra.mxu0 0
    %1168 = vmatprep.mubr.bf16.mxu0 0
    %1169 = vmatmul.mubr.bf16.gmra.mrb[0].mxu0 %v1131
    %v1170 = vpop.f32.mrb[0].mxu0
    %v1171 = vadd.f32 0.0, %v1170
    %v1172 = vpop.f32.mrb[0].mxu0
    %v1173 = vpop.f32.mrb[0].mxu0
    %v1174 = vpop.f32.mrb[0].mxu0
    %1175 = vdwg.mxu0
    %v1177 = vsel %vm1003, %v1032, 0
    %v1180 = vsel %vm1040, %v1036, 0
    %1182 = vmatprep.subr.bf16.mxu0 0
    %1183 = vmatpush1.bf16.msra.mxu0 %v1180
    %1184 = vmatprep.subr.bf16.mxu0 0
    %1185 = vmatpush1.bf16.msra.mxu0 0
    %1186 = vmatprep.subr.bf16.mxu0 0
    %1187 = vmatpush1.bf16.msra.mxu0 0
    %1188 = vmatprep.subr.bf16.mxu0 0
    %1189 = vmatpush1.bf16.msra.mxu0 0
    %1190 = vmatprep.subr.bf16.mxu0 0
    %1191 = vmatpush1.bf16.msra.mxu0 0
    %1192 = vmatprep.subr.bf16.mxu0 0
    %1193 = vmatpush1.bf16.msra.mxu0 0
    %1194 = vmatprep.subr.bf16.mxu0 0
    %1195 = vmatpush1.bf16.msra.mxu0 0
    %1196 = vmatprep.subr.bf16.mxu0 0
    %1197 = vmatpush1.bf16.msra.mxu0 0
    %1198 = vmatprep.subr.bf16.mxu0 0
    %1199 = vmatpush1.bf16.msra.mxu0 0
    %1200 = vmatprep.subr.bf16.mxu0 0
    %1201 = vmatpush1.bf16.msra.mxu0 0
    %1202 = vmatprep.subr.bf16.mxu0 0
    %1203 = vmatpush1.bf16.msra.mxu0 0
    %1204 = vmatprep.subr.bf16.mxu0 0
    %1205 = vmatpush1.bf16.msra.mxu0 0
    %1206 = vmatprep.subr.bf16.mxu0 0
    %1207 = vmatpush1.bf16.msra.mxu0 0
    %1208 = vmatprep.subr.bf16.mxu0 0
    %1209 = vmatpush1.bf16.msra.mxu0 0
    %1210 = vmatprep.subr.bf16.mxu0 0
    %1211 = vmatpush1.bf16.msra.mxu0 0
    %1212 = vmatprep.subr.bf16.mxu0 0
    %1213 = vmatpush1.bf16.msra.mxu0 0
    %1214 = vmatprep.mubr.bf16.mxu0 0
    %1215 = vmatmul.mubr.bf16.gmra.mrb[0].mxu0 %v1177
    %v1216 = vpop.f32.mrb[0].mxu0
    %v1217 = vadd.f32 0.0, %v1216
    %v1218 = vpop.f32.mrb[0].mxu0
    %v1219 = vpop.f32.mrb[0].mxu0
    %v1220 = vpop.f32.mrb[0].mxu0
    %1221 = vdwg.mxu0
    %v1222 = vadd.f32 %v1025, %v1079
    %v1223 = vadd.f32 %v1026, %v1125
    %v1224 = vadd.f32 %v1027, %v1171
    %v1225 = vadd.f32 %v1028, %v1217
    %1226 = vst.msk [vmem:[#allocation3] sm:$0xff] %vm641, %v1222
    %1227 = vst.msk [vmem:[#allocation3 + $0x8] sm:$0xff] %vm641, %v1223
    %1228 = vst.msk [vmem:[#allocation3 + $0x10] sm:$0xff] %vm641, %v1224
    %1229 = vst.msk [vmem:[#allocation3 + $0x18] sm:$0xff] %vm641, %v1225
    %v1230 = vld [vmem:[#allocation3] sm:$0xff]
    %v1231 = vld [vmem:[#allocation3 + $0x8] sm:$0xff]
    %v1232 = vld [vmem:[#allocation3 + $0x10] sm:$0xff]
    %v1233 = vld [vmem:[#allocation3 + $0x18] sm:$0xff]
    %v1234 = vld [vmem:[#allocation2] sm:$0xff]
    %v1235 = vld [vmem:[#allocation2 + $0x8] sm:$0xff]
    %v1236 = vld [vmem:[#allocation2 + $0x10] sm:$0xff]
    %v1237 = vld [vmem:[#allocation2 + $0x18] sm:$0xff]
    %v1238 = vrcp.pop %v1234
    %v1239 = vrcp.pop %v1235
    %v1240 = vrcp.pop %v1236
    %v1241 = vrcp.pop %v1237
    %1243 = vset.pattern.permute.xlu0 0
    %1244 = vperm.xlu0 %1243, %v1238
    %v1245 = vpop.permute.xlu0 %1244
    %1248 = vset.pattern.permute.xlu0 0
    %1249 = vperm.xlu0 %1248, %v1239
    %v1250 = vpop.permute.xlu0 %1249
    %1253 = vset.pattern.permute.xlu0 0
    %1254 = vperm.xlu0 %1253, %v1240
    %v1255 = vpop.permute.xlu0 %1254
    %1258 = vset.pattern.permute.xlu0 0
    %1259 = vperm.xlu0 %1258, %v1241
    %v1260 = vpop.permute.xlu0 %1259
    %v1262 = vmul.f32 %v1230, %v1245
    %v1263 = vmul.f32 %v1231, %v1250
    %v1264 = vmul.f32 %v1232, %v1255
    %v1265 = vmul.f32 %v1233, %v1260
    %1266 = vst.msk [vmem:[%s3] sm:$0xff] %vm641, %v1262
    %1267 = vst.msk [vmem:[%s3 + $0x8] sm:$0xff] %vm641, %v1263
    %1268 = vst.msk [vmem:[%s3 + $0x10] sm:$0xff] %vm641, %v1264
    %1269 = vst.msk [vmem:[%s3 + $0x18] sm:$0xff] %vm641, %v1265
  $region25: #{model_forward.42} parent=0 // pred_fallthru
    _
  // Predicated region
  $region26: #{model_forward.42} parent=0 // pred_check
    _
  $region27: #{model_forward.42} parent=0 // pred_check_branch
    %1271 = sbr.rel (0) target = $region29
  $region28: #{model_forward.42} parent=0 // pred_region
    _
  $region29: #{model_forward.42} parent=0 // pred_fallthru
    _
  // Predicated region
  $region30: #{model_forward.42} parent=0 // pred_check
    _
  $region31: #{model_forward.42} parent=0 // pred_check_branch
    %1273 = sbr.rel (0) target = $region33
  $region32: #{model_forward.42} parent=0 // pred_region
    _
  $region33: #{model_forward.42} parent=0 // pred_fallthru
    _

// kernel: model_forward.81
$region0: #{model_forward.81}
  #allocation0 [shape = 'u32[]', space=smem, size = 0x4, offset = 0x4, fixed_abs, tag = 'smem constant byte address 0x4 - core index']
  #allocation1 [shape = 'u32[144,128]{1,0:T(1,128)}', space=vmem, size = 0x12000, scoped, tag = 'internal scratch']
  #allocation2 [shape = 'f32[16,32]{1,0:T(8,128)}', space=vmem, size = 0x2000, scoped, tag = 'scratch operand']
  %s0 = inlined_call_operand.vmem [shape: f32[16,32], index: 0, kind: input, shape index: {}]
  %s1 = inlined_call_operand.vmem [shape: bf16[32,32], index: 1, kind: input, shape index: {}]
  %s2 = inlined_call_operand.vmem [shape: f32[1,32], index: 2, kind: input, shape index: {}]
  %s3 = inlined_call_operand.hbm [shape: f32[16,32], index: 3, kind: output, shape index: {}]
  %s4 = sld [smem:[#allocation0]]
  $region30: #{model_forward.81} parent=0
    _
  %s6 = ssub.s32 1, %s4
  %s7 = scalar_select 0, %s6, %s4
  $region1: #{model_forward.81} parent=0
    #allocation3 [shape = 'u8[8192]{0}', space=vmem, size = 0x2000, scoped, tag = 'output window, operand 0, single buffered']
    #allocation4 [shape = 's32[1]{0}', space=sflag, size = 0x4, scoped, tag = 'scoped memory for model_forward.81']
    %8 = vsyncpa [#allocation4], 0
    // Predicated region
    $region2: #{model_forward.81} parent=1 // pred_check
      _
    $region3: #{model_forward.81} parent=1 // pred_check_branch
      %10 = sbr.rel (0) target = $region5
    $region4: #{model_forward.81} parent=1 // pred_region
      _
    $region5: #{model_forward.81} parent=1 // pred_fallthru
      _
    // Predicated region
    $region6: #{model_forward.81} parent=1 // pred_check
      _
    $region7: #{model_forward.81} parent=1 // pred_check_branch
      %12 = sbr.rel (0) target = $region9
    $region8: #{model_forward.81} parent=1 // pred_region
      _
    $region9: #{model_forward.81} parent=1 // pred_fallthru
      _
    // Predicated region
    $region10: #{model_forward.81} parent=1 // pred_check
      _
    $region11: #{model_forward.81} parent=1 // pred_check_branch
      %14 = sbr.rel (0) target = $region13
    $region12: #{model_forward.81} parent=1 // pred_region
      _
    $region13: #{model_forward.81} parent=1 // pred_fallthru
      _
    %p16 = scmp.eq.s32.totalorder 0, 0
    // Predicated region
    $region14: #{model_forward.81} parent=1 // pred_check
      %p17 = pneg %p16
    $region15: #{model_forward.81} parent=1 // pred_check_branch
      %19 = sbr.rel (%p17) target = $region17
    $region16: #{model_forward.81} parent=1 // pred_region
      %vm20 = vcmask 261120
      %21 = vst.msk [vmem:[#allocation2] sm:$0xff] %vm20, 0.0
      %22 = vst.msk [vmem:[#allocation2 + $0x8] sm:$0xff] %vm20, 0.0
    $region17: #{model_forward.81} parent=1 // pred_fallthru
      _
    %v23 = vld [vmem:[#allocation2] sm:$0xff]
    %v24 = vld [vmem:[#allocation2 + $0x8] sm:$0xff]
    %v25 = vld [vmem:[%s0] sm:$0xff]
    %v26 = vld [vmem:[%s0 + $0x8] sm:$0xff]
    %v27 = vpack.c.bf16 %v26, %v25
    %v28 = vld [vmem:[%s1] sm:$0xf]
    %v29 = vld [vmem:[%s1 + $0x4] sm:$0xf]
    %v30 = vld [vmem:[%s1 + $0x8] sm:$0xf]
    %v31 = vld [vmem:[%s1 + $0xc] sm:$0xf]
    %v36 = vunpack.c.l.b16 %v28
    %v37 = vunpack.c.l.b16 %v29
    %v38 = vunpack.c.l.b16 %v30
    %v39 = vunpack.c.l.b16 %v31
    %v40 = vpack.c.b16 %v37, %v36
    %v41 = vpack.c.b16 %v39, %v38
    %vm44 = vcmask 261120
    %v46 = vsel %vm44, %v27, 0
    %48 = vmatprep.subr.bf16.mxu0 0
    %49 = vmatpush1.bf16.msra.mxu0 %v40
    %50 = vmatprep.subr.bf16.mxu0 0
    %51 = vmatpush1.bf16.msra.mxu0 %v41
    %52 = vmatprep.subr.bf16.mxu0 0
    %53 = vmatpush1.bf16.msra.mxu0 0
    %54 = vmatprep.subr.bf16.mxu0 0
    %55 = vmatpush1.bf16.msra.mxu0 0
    %56 = vmatprep.subr.bf16.mxu0 0
    %57 = vmatpush1.bf16.msra.mxu0 0
    %58 = vmatprep.subr.bf16.mxu0 0
    %59 = vmatpush1.bf16.msra.mxu0 0
    %60 = vmatprep.subr.bf16.mxu0 0
    %61 = vmatpush1.bf16.msra.mxu0 0
    %62 = vmatprep.subr.bf16.mxu0 0
    %63 = vmatpush1.bf16.msra.mxu0 0
    %64 = vmatprep.subr.bf16.mxu0 0
    %65 = vmatpush1.bf16.msra.mxu0 0
    %66 = vmatprep.subr.bf16.mxu0 0
    %67 = vmatpush1.bf16.msra.mxu0 0
    %68 = vmatprep.subr.bf16.mxu0 0
    %69 = vmatpush1.bf16.msra.mxu0 0
    %70 = vmatprep.subr.bf16.mxu0 0
    %71 = vmatpush1.bf16.msra.mxu0 0
    %72 = vmatprep.subr.bf16.mxu0 0
    %73 = vmatpush1.bf16.msra.mxu0 0
    %74 = vmatprep.subr.bf16.mxu0 0
    %75 = vmatpush1.bf16.msra.mxu0 0
    %76 = vmatprep.subr.bf16.mxu0 0
    %77 = vmatpush1.bf16.msra.mxu0 0
    %78 = vmatprep.subr.bf16.mxu0 0
    %79 = vmatpush1.bf16.msra.mxu0 0
    %80 = vmatprep.mubr.bf16.mxu0 0
    %81 = vmatmul.mubr.bf16.gmra.mrb[0].mxu0 %v46
    %v82 = vpop.f32.mrb[0].mxu0
    %v83 = vadd.f32 0.0, %v82
    %v84 = vpop.f32.mrb[0].mxu0
    %v85 = vpop.f32.mrb[0].mxu0
    %v86 = vadd.f32 0.0, %v85
    %v87 = vpop.f32.mrb[0].mxu0
    %88 = vdwg.mxu0
    %v89 = vadd.f32 %v23, %v83
    %v90 = vadd.f32 %v24, %v86
    %91 = vst.msk [vmem:[#allocation2] sm:$0xff] %vm44, %v89
    %92 = vst.msk [vmem:[#allocation2 + $0x8] sm:$0xff] %vm44, %v90
    // Predicated region
    $region18: #{model_forward.81} parent=1 // pred_check
      %p93 = pneg %p16
    $region19: #{model_forward.81} parent=1 // pred_check_branch
      %95 = sbr.rel (%p93) target = $region21
    $region20: #{model_forward.81} parent=1 // pred_region
      %v96 = vld [vmem:[#allocation2] sm:$0xff]
      %v97 = vld [vmem:[#allocation2 + $0x8] sm:$0xff]
      %v98 = vld [vmem:[%s2] sm:$0x1]
      %v100 = vlaneseq
      %v101 = vshrl.u32 %v100, 7
      %v102 = vsub.s32 0, %v101
      %v103 = vrot.slane %v98, %v102
      %v105 = vadd.f32 %v96, %v103
      %v106 = vadd.f32 %v97, %v103
      %107 = vst.msk [vmem:[#allocation3] sm:$0xff] %vm44, %v105
      %108 = vst.msk [vmem:[#allocation3 + $0x8] sm:$0xff] %vm44, %v106
    $region21: #{model_forward.81} parent=1 // pred_fallthru
      _
    // Predicated region
    $region22: #{model_forward.81} parent=1 // pred_check
      _
    $region23: #{model_forward.81} parent=1 // pred_check_branch
      %110 = sbr.rel (0) target = $region25
    $region24: #{model_forward.81} parent=1 // pred_region
      %s112 = ssub.s32 256, 256
      %113 = vsyncadd [#allocation4], %s112
      %s114 = sshll.u32 [#allocation3], 4
      %s115 = int_to_ptr.vmem [resolvable:$true] %s114
      %120 = dma.vmem_to_hbm [thread:$0]  %s115, 256, %s3, [#allocation4], 128, 128, 8
    $region25: #{model_forward.81} parent=1 // pred_fallthru
      _
    // Predicated region
    $region26: #{model_forward.81} parent=1 // pred_check
      _
    $region27: #{model_forward.81} parent=1 // pred_check_branch
      %122 = sbr.rel (0) target = $region29
    $region28: #{model_forward.81} parent=1 // pred_region
      %123 = dma.done [#allocation4], 256
    $region29: #{model_forward.81} parent=1 // pred_fallthru
      _
    %124 = vsyncpa [#allocation4], 1

// kernel: model_forward.45
$region0: #{model_forward.45}
  #allocation0 [shape = 'u32[]', space=smem, size = 0x4, offset = 0x4, fixed_abs, tag = 'smem constant byte address 0x4 - core index']
  #allocation1 [shape = 'u32[144,128]{1,0:T(1,128)}', space=vmem, size = 0x12000, scoped, tag = 'internal scratch']
  %s0 = inlined_call_operand.vmem [shape: f32[16,32], index: 0, kind: input, shape index: {}]
  %s1 = inlined_call_operand.vmem [shape: f32[16,32], index: 1, kind: input, shape index: {}]
  %s2 = inlined_call_operand.vmem [shape: bf16[32,32], index: 2, kind: input, shape index: {}]
  %s3 = inlined_call_operand.vmem [shape: f32[1,32], index: 3, kind: input, shape index: {}]
  %s4 = inlined_call_operand.vmem [shape: bf16[32,32], index: 4, kind: input, shape index: {}]
  %s5 = inlined_call_operand.vmem [shape: f32[1,32], index: 5, kind: input, shape index: {}]
  %s6 = inlined_call_operand.vmem [shape: f32[1,32], index: 6, kind: input, shape index: {}]
  %s7 = inlined_call_operand.vmem [shape: f32[1,32], index: 7, kind: input, shape index: {}]
  %s8 = inlined_call_operand.vmem [shape: f32[16,32], index: 8, kind: output, shape index: {}]
  %s9 = sld [smem:[#allocation0]]
  $region42: #{model_forward.45} parent=0
    _
  %s11 = ssub.s32 1, %s9
  %s12 = scalar_select 0, %s11, %s9
  // Predicated region
  $region2: #{model_forward.45} parent=0 // pred_check
    _
  $region3: #{model_forward.45} parent=0 // pred_check_branch
    %14 = sbr.rel (0) target = $region5
  $region4: #{model_forward.45} parent=0 // pred_region
    _
  $region5: #{model_forward.45} parent=0 // pred_fallthru
    _
  // Predicated region
  $region6: #{model_forward.45} parent=0 // pred_check
    _
  $region7: #{model_forward.45} parent=0 // pred_check_branch
    %16 = sbr.rel (0) target = $region9
  $region8: #{model_forward.45} parent=0 // pred_region
    _
  $region9: #{model_forward.45} parent=0 // pred_fallthru
    _
  // Predicated region
  $region10: #{model_forward.45} parent=0 // pred_check
    _
  $region11: #{model_forward.45} parent=0 // pred_check_branch
    %18 = sbr.rel (0) target = $region13
  $region12: #{model_forward.45} parent=0 // pred_region
    _
  $region13: #{model_forward.45} parent=0 // pred_fallthru
    _
  // Predicated region
  $region14: #{model_forward.45} parent=0 // pred_check
    _
  $region15: #{model_forward.45} parent=0 // pred_check_branch
    %20 = sbr.rel (0) target = $region17
  $region16: #{model_forward.45} parent=0 // pred_region
    _
  $region17: #{model_forward.45} parent=0 // pred_fallthru
    _
  // Predicated region
  $region18: #{model_forward.45} parent=0 // pred_check
    _
  $region19: #{model_forward.45} parent=0 // pred_check_branch
    %22 = sbr.rel (0) target = $region21
  $region20: #{model_forward.45} parent=0 // pred_region
    _
  $region21: #{model_forward.45} parent=0 // pred_fallthru
    _
  // Predicated region
  $region22: #{model_forward.45} parent=0 // pred_check
    _
  $region23: #{model_forward.45} parent=0 // pred_check_branch
    %24 = sbr.rel (0) target = $region25
  $region24: #{model_forward.45} parent=0 // pred_region
    _
  $region25: #{model_forward.45} parent=0 // pred_fallthru
    _
  // Predicated region
  $region26: #{model_forward.45} parent=0 // pred_check
    _
  $region27: #{model_forward.45} parent=0 // pred_check_branch
    %26 = sbr.rel (0) target = $region29
  $region28: #{model_forward.45} parent=0 // pred_region
    _
  $region29: #{model_forward.45} parent=0 // pred_fallthru
    _
  // Predicated region
  $region30: #{model_forward.45} parent=0 // pred_check
    _
  $region31: #{model_forward.45} parent=0 // pred_check_branch
    %28 = sbr.rel (0) target = $region33
  $region32: #{model_forward.45} parent=0 // pred_region
    _
  $region33: #{model_forward.45} parent=0 // pred_fallthru
    _
  %v30 = vld [vmem:[%s0] sm:$0xff]
  %v31 = vld [vmem:[%s0 + $0x8] sm:$0xff]
  %v32 = vpack.c.bf16 %v31, %v30
  %v33 = vld [vmem:[%s2] sm:$0xf]
  %v34 = vld [vmem:[%s2 + $0x4] sm:$0xf]
  %v35 = vld [vmem:[%s2 + $0x8] sm:$0xf]
  %v36 = vld [vmem:[%s2 + $0xc] sm:$0xf]
  %v37 = vld [vmem:[%s3] sm:$0x1]
  %v39 = vlaneseq
  %v40 = vshrl.u32 %v39, 7
  %v41 = vsub.s32 0, %v40
  %v42 = vrot.slane %v37, %v41
  %v48 = vunpack.c.l.b16 %v33
  %v49 = vunpack.c.l.b16 %v34
  %v50 = vunpack.c.l.b16 %v35
  %v51 = vunpack.c.l.b16 %v36
  %v52 = vpack.c.b16 %v49, %v48
  %v53 = vpack.c.b16 %v51, %v50
  %vm56 = vcmask 261120
  %v58 = vsel %vm56, %v32, 0
  %60 = vmatprep.subr.bf16.mxu0 0
  %61 = vmatpush1.bf16.msra.mxu0 %v52
  %62 = vmatprep.subr.bf16.mxu0 0
  %63 = vmatpush1.bf16.msra.mxu0 %v53
  %64 = vmatprep.subr.bf16.mxu0 0
  %65 = vmatpush1.bf16.msra.mxu0 0
  %66 = vmatprep.subr.bf16.mxu0 0
  %67 = vmatpush1.bf16.msra.mxu0 0
  %68 = vmatprep.subr.bf16.mxu0 0
  %69 = vmatpush1.bf16.msra.mxu0 0
  %70 = vmatprep.subr.bf16.mxu0 0
  %71 = vmatpush1.bf16.msra.mxu0 0
  %72 = vmatprep.subr.bf16.mxu0 0
  %73 = vmatpush1.bf16.msra.mxu0 0
  %74 = vmatprep.subr.bf16.mxu0 0
  %75 = vmatpush1.bf16.msra.mxu0 0
  %76 = vmatprep.subr.bf16.mxu0 0
  %77 = vmatpush1.bf16.msra.mxu0 0
  %78 = vmatprep.subr.bf16.mxu0 0
  %79 = vmatpush1.bf16.msra.mxu0 0
  %80 = vmatprep.subr.bf16.mxu0 0
  %81 = vmatpush1.bf16.msra.mxu0 0
  %82 = vmatprep.subr.bf16.mxu0 0
  %83 = vmatpush1.bf16.msra.mxu0 0
  %84 = vmatprep.subr.bf16.mxu0 0
  %85 = vmatpush1.bf16.msra.mxu0 0
  %86 = vmatprep.subr.bf16.mxu0 0
  %87 = vmatpush1.bf16.msra.mxu0 0
  %88 = vmatprep.subr.bf16.mxu0 0
  %89 = vmatpush1.bf16.msra.mxu0 0
  %90 = vmatprep.subr.bf16.mxu0 0
  %91 = vmatpush1.bf16.msra.mxu0 0
  %92 = vmatprep.mubr.bf16.mxu0 0
  %93 = vmatmul.mubr.bf16.gmra.mrb[0].mxu0 %v58
  %v94 = vpop.f32.mrb[0].mxu0
  %v95 = vadd.f32 %v42, %v94
  %v96 = vpop.f32.mrb[0].mxu0
  %v97 = vpop.f32.mrb[0].mxu0
  %v98 = vadd.f32 %v42, %v97
  %v99 = vpop.f32.mrb[0].mxu0
  %100 = vdwg.mxu0
  %v101 = vmul.f32 %v95, 0.5
  %v102 = vmul.f32 %v98, 0.5
  %v103 = vmul.f32 %v95, 0.70710677
  %v104 = vmul.f32 %v98, 0.70710677
  %v105 = vand.u32 2147483647, %v103
  %v106 = vand.u32 2147483647, %v104
  %v107 = vmul.f32 %v105, 0.3275911
  %v108 = vmul.f32 %v106, 0.3275911
  %v109 = vadd.f32 %v107, 1.0
  %v110 = vadd.f32 %v108, 1.0
  %v111 = vrcp.pop %v109
  %v112 = vmul.f32 1.0, %v111
  %v113 = vrcp.pop %v110
  %v114 = vmul.f32 1.0, %v113
  %v115 = vmul.f32 %v112, 1.0614054
  %v116 = vmul.f32 %v114, 1.0614054
  %v117 = vadd.f32 %v115, -1.4531521
  %v118 = vadd.f32 %v116, -1.4531521
  %v119 = vmul.f32 %v112, %v117
  %v120 = vmul.f32 %v114, %v118
  %v121 = vadd.f32 %v119, 1.4214138
  %v122 = vadd.f32 %v120, 1.4214138
  %v123 = vmul.f32 %v112, %v121
  %v124 = vmul.f32 %v114, %v122
  %v125 = vadd.f32 %v123, -0.28449672
  %v126 = vadd.f32 %v124, -0.28449672
  %v127 = vmul.f32 %v112, %v125
  %v128 = vmul.f32 %v114, %v126
  %v129 = vadd.f32 %v127, 0.2548296
  %v130 = vadd.f32 %v128, 0.2548296
  %v131 = vmul.f32 %v112, %v129
  %v132 = vmul.f32 %v114, %v130
  %v133 = vsub.f32 0.0, %v105
  %v134 = vsub.f32 0.0, %v106
  %v135 = vmul.f32 %v133, %v105
  %v136 = vmul.f32 %v134, %v106
  %v137 = vmul.f32 %v135, 1.442695
  %v138 = vpow.pop %v137
  %v139 = vmul.f32 %v136, 1.442695
  %v140 = vpow.pop %v139
  %v141 = vmul.f32 %v131, %v138
  %v142 = vmul.f32 %v132, %v140
  %v143 = vsub.f32 1.0, %v141
  %v144 = vsub.f32 1.0, %v142
  %vm145 = vcmp.ge.f32.partialorder %v103, 0.0
  %vm146 = vcmp.ge.f32.partialorder %v104, 0.0
  %v147 = vsub.f32 0.0, %v143
  %v148 = vsub.f32 0.0, %v144
  %v149 = vsel %vm145, %v143, %v147
  %v150 = vsel %vm146, %v144, %v148
  %v151 = vadd.f32 %v149, 1.0
  %v152 = vadd.f32 %v150, 1.0
  %v153 = vmul.f32 %v101, %v151
  %v154 = vmul.f32 %v102, %v152
  %v155 = vpack.c.bf16 %v154, %v153
  %v156 = vld [vmem:[%s4] sm:$0xf]
  %v157 = vld [vmem:[%s4 + $0x4] sm:$0xf]
  %v158 = vld [vmem:[%s4 + $0x8] sm:$0xf]
  %v159 = vld [vmem:[%s4 + $0xc] sm:$0xf]
  %v160 = vld [vmem:[%s5] sm:$0x1]
  %v162 = vlaneseq
  %v163 = vshrl.u32 %v162, 7
  %v164 = vsub.s32 0, %v163
  %v165 = vrot.slane %v160, %v164
  %v171 = vunpack.c.l.b16 %v156
  %v172 = vunpack.c.l.b16 %v157
  %v173 = vunpack.c.l.b16 %v158
  %v174 = vunpack.c.l.b16 %v159
  %v175 = vpack.c.b16 %v172, %v171
  %v176 = vpack.c.b16 %v174, %v173
  %v180 = vsel %vm56, %v155, 0
  %182 = vmatprep.subr.bf16.mxu0 0
  %183 = vmatpush1.bf16.msra.mxu0 %v175
  %184 = vmatprep.subr.bf16.mxu0 0
  %185 = vmatpush1.bf16.msra.mxu0 %v176
  %186 = vmatprep.subr.bf16.mxu0 0
  %187 = vmatpush1.bf16.msra.mxu0 0
  %188 = vmatprep.subr.bf16.mxu0 0
  %189 = vmatpush1.bf16.msra.mxu0 0
  %190 = vmatprep.subr.bf16.mxu0 0
  %191 = vmatpush1.bf16.msra.mxu0 0
  %192 = vmatprep.subr.bf16.mxu0 0
  %193 = vmatpush1.bf16.msra.mxu0 0
  %194 = vmatprep.subr.bf16.mxu0 0
  %195 = vmatpush1.bf16.msra.mxu0 0
  %196 = vmatprep.subr.bf16.mxu0 0
  %197 = vmatpush1.bf16.msra.mxu0 0
  %198 = vmatprep.subr.bf16.mxu0 0
  %199 = vmatpush1.bf16.msra.mxu0 0
  %200 = vmatprep.subr.bf16.mxu0 0
  %201 = vmatpush1.bf16.msra.mxu0 0
  %202 = vmatprep.subr.bf16.mxu0 0
  %203 = vmatpush1.bf16.msra.mxu0 0
  %204 = vmatprep.subr.bf16.mxu0 0
  %205 = vmatpush1.bf16.msra.mxu0 0
  %206 = vmatprep.subr.bf16.mxu0 0
  %207 = vmatpush1.bf16.msra.mxu0 0
  %208 = vmatprep.subr.bf16.mxu0 0
  %209 = vmatpush1.bf16.msra.mxu0 0
  %210 = vmatprep.subr.bf16.mxu0 0
  %211 = vmatpush1.bf16.msra.mxu0 0
  %212 = vmatprep.subr.bf16.mxu0 0
  %213 = vmatpush1.bf16.msra.mxu0 0
  %214 = vmatprep.mubr.bf16.mxu0 0
  %215 = vmatmul.mubr.bf16.gmra.mrb[0].mxu0 %v180
  %v216 = vpop.f32.mrb[0].mxu0
  %v217 = vadd.f32 %v165, %v216
  %v218 = vpop.f32.mrb[0].mxu0
  %v219 = vpop.f32.mrb[0].mxu0
  %v220 = vadd.f32 %v165, %v219
  %v221 = vpop.f32.mrb[0].mxu0
  %222 = vdwg.mxu0
  %v223 = vsel %vm56, %v217, 0.0
  %224 = vadd.xlane.f32.xlu0 %v223
  %v225 = vpop.xlane.xlu0 %224
  %v226 = vsel %vm56, %v220, 0.0
  %227 = vadd.xlane.f32.xlu0 %v226
  %v228 = vpop.xlane.xlu0 %227
  %v229 = vrcp.pop 32.0
  %v230 = vmul.f32 %v225, %v229
  %v231 = vmul.f32 %v228, %v229
  %v232 = vsub.f32 %v217, %v230
  %v233 = vsub.f32 %v220, %v231
  %v234 = vmul.f32 %v232, %v232
  %v235 = vmul.f32 %v233, %v233
  %v236 = vsel %vm56, %v234, 0.0
  %237 = vadd.xlane.f32.xlu0 %v236
  %v238 = vpop.xlane.xlu0 %237
  %v239 = vsel %vm56, %v235, 0.0
  %240 = vadd.xlane.f32.xlu0 %v239
  %v241 = vpop.xlane.xlu0 %240
  %v242 = vmul.f32 %v238, %v229
  %v243 = vmul.f32 %v241, %v229
  %v244 = vadd.f32 %v242, 1e-05
  %v245 = vadd.f32 %v243, 1e-05
  %v246 = vrsqrt.pop %v244
  %v247 = vrsqrt.pop %v245
  %v248 = vmul.f32 %v232, %v246
  %v249 = vmul.f32 %v233, %v247
  %v250 = vld [vmem:[%s6] sm:$0x1]
  %v252 = vlaneseq
  %v253 = vshrl.u32 %v252, 7
  %v254 = vsub.s32 0, %v253
  %v255 = vrot.slane %v250, %v254
  %v257 = vmul.f32 %v248, %v255
  %v258 = vmul.f32 %v249, %v255
  %v259 = vld [vmem:[%s7] sm:$0x1]
  %v261 = vlaneseq
  %v262 = vshrl.u32 %v261, 7
  %v263 = vsub.s32 0, %v262
  %v264 = vrot.slane %v259, %v263
  %v266 = vadd.f32 %v257, %v264
  %v267 = vadd.f32 %v258, %v264
  %v268 = vld [vmem:[%s1] sm:$0xff]
  %v269 = vld [vmem:[%s1 + $0x8] sm:$0xff]
  %v270 = vadd.f32 %v266, %v268
  %v271 = vadd.f32 %v267, %v269
  %272 = vst.msk [vmem:[%s8] sm:$0xff] %vm56, %v270
  %273 = vst.msk [vmem:[%s8 + $0x8] sm:$0xff] %vm56, %v271
  // Predicated region
  $region34: #{model_forward.45} parent=0 // pred_check
    _
  $region35: #{model_forward.45} parent=0 // pred_check_branch
    %275 = sbr.rel (0) target = $region37
  $region36: #{model_forward.45} parent=0 // pred_region
    _
  $region37: #{model_forward.45} parent=0 // pred_fallthru
    _
  // Predicated region
  $region38: #{model_forward.45} parent=0 // pred_check
    _
  $region39: #{model_forward.45} parent=0 // pred_check_branch
    %277 = sbr.rel (0) target = $region41
  $region40: #{model_forward.45} parent=0 // pred_region
    _
  $region41: #{model_forward.45} parent=0 // pred_fallthru
    _

// kernel: model_forward.44
$region0: #{model_forward.44}
  #allocation0 [shape = 'u32[]', space=smem, size = 0x4, offset = 0x4, fixed_abs, tag = 'smem constant byte address 0x4 - core index']
  #allocation1 [shape = 'u32[144,128]{1,0:T(1,128)}', space=vmem, size = 0x12000, scoped, tag = 'internal scratch']
  #allocation2 [shape = 'f32[4,16]{1,0:T(4,128)}', space=vmem, size = 0x800, scoped, tag = 'scratch operand']
  #allocation3 [shape = 'f32[4,16]{1,0:T(4,128)}', space=vmem, size = 0x800, scoped, tag = 'scratch operand']
  %s0 = inlined_call_operand.vmem [shape: bf16[8,4,64], index: 0, kind: input, shape index: {}]
  %s1 = inlined_call_operand.vmem [shape: f32[8,4,16], index: 1, kind: input, shape index: {}]
  %s2 = inlined_call_operand.vmem [shape: bf16[16,64], index: 2, kind: input, shape index: {}]
  %s3 = inlined_call_operand.vmem [shape: f32[8,4,16], index: 3, kind: output, shape index: {}]
  %s4 = sld [smem:[#allocation0]]
  $region26: #{model_forward.44} parent=0
    _
  %s6 = ssub.s32 1, %s4
  %s7 = scalar_select 0, %s6, %s4
  // Predicated region
  $region2: #{model_forward.44} parent=0 // pred_check
    _
  $region3: #{model_forward.44} parent=0 // pred_check_branch
    %9 = sbr.rel (0) target = $region5
  $region4: #{model_forward.44} parent=0 // pred_region
    _
  $region5: #{model_forward.44} parent=0 // pred_fallthru
    _
  // Predicated region
  $region6: #{model_forward.44} parent=0 // pred_check
    _
  $region7: #{model_forward.44} parent=0 // pred_check_branch
    %11 = sbr.rel (0) target = $region9
  $region8: #{model_forward.44} parent=0 // pred_region
    _
  $region9: #{model_forward.44} parent=0 // pred_fallthru
    _
  // Predicated region
  $region10: #{model_forward.44} parent=0 // pred_check
    _
  $region11: #{model_forward.44} parent=0 // pred_check_branch
    %13 = sbr.rel (0) target = $region13
  $region12: #{model_forward.44} parent=0 // pred_region
    _
  $region13: #{model_forward.44} parent=0 // pred_fallthru
    _
  %p15 = scmp.eq.s32.totalorder 0, 0
  // Predicated region
  $region14: #{model_forward.44} parent=0 // pred_check
    %p16 = pneg %p15
  $region15: #{model_forward.44} parent=0 // pred_check_branch
    %18 = sbr.rel (%p16) target = $region17
  $region16: #{model_forward.44} parent=0 // pred_region
    %vm19 = vcmask 125952
    %20 = vst.msk [vmem:[#allocation2] sm:$0xf] %vm19, 0.0
    %21 = vst.msk [vmem:[#allocation3] sm:$0xf] %vm19, 0.0
  $region17: #{model_forward.44} parent=0 // pred_fallthru
    _
  %v22 = vld [vmem:[%s2] sm:$0xf]
  %v23 = vld [vmem:[%s2 + $0x4] sm:$0xf]
  %v24 = vld [vmem:[%s0] sm:$0x3]
  %v25 = vunpack.c.l.bf16 %v24
  %v26 = vld [vmem:[#allocation2] sm:$0xf]
  %v27 = vpack.c.bf16 %v26, %v26
  %v30 = vunpack.c.l.b16 %v22
  %v31 = vunpack.c.l.b16 %v23
  %v32 = vpack.c.b16 %v31, %v30
  %vm34 = vcmask 130048
  %v36 = vsel %vm34, %v27, 0
  %38 = vmatprep.subr.bf16.mxu0 0
  %39 = vmatpush1.bf16.msra.mxu0 %v32
  %40 = vmatprep.subr.bf16.mxu0 0
  %41 = vmatpush1.bf16.msra.mxu0 0
  %42 = vmatprep.subr.bf16.mxu0 0
  %43 = vmatpush1.bf16.msra.mxu0 0
  %44 = vmatprep.subr.bf16.mxu0 0
  %45 = vmatpush1.bf16.msra.mxu0 0
  %46 = vmatprep.subr.bf16.mxu0 0
  %47 = vmatpush1.bf16.msra.mxu0 0
  %48 = vmatprep.subr.bf16.mxu0 0
  %49 = vmatpush1.bf16.msra.mxu0 0
  %50 = vmatprep.subr.bf16.mxu0 0
  %51 = vmatpush1.bf16.msra.mxu0 0
  %52 = vmatprep.subr.bf16.mxu0 0
  %53 = vmatpush1.bf16.msra.mxu0 0
  %54 = vmatprep.subr.bf16.mxu0 0
  %55 = vmatpush1.bf16.msra.mxu0 0
  %56 = vmatprep.subr.bf16.mxu0 0
  %57 = vmatpush1.bf16.msra.mxu0 0
  %58 = vmatprep.subr.bf16.mxu0 0
  %59 = vmatpush1.bf16.msra.mxu0 0
  %60 = vmatprep.subr.bf16.mxu0 0
  %61 = vmatpush1.bf16.msra.mxu0 0
  %62 = vmatprep.subr.bf16.mxu0 0
  %63 = vmatpush1.bf16.msra.mxu0 0
  %64 = vmatprep.subr.bf16.mxu0 0
  %65 = vmatpush1.bf16.msra.mxu0 0
  %66 = vmatprep.subr.bf16.mxu0 0
  %67 = vmatpush1.bf16.msra.mxu0 0
  %68 = vmatprep.subr.bf16.mxu0 0
  %69 = vmatpush1.bf16.msra.mxu0 0
  %70 = vmatprep.mubr.bf16.mxu0 0
  %71 = vmatmul.mubr.bf16.gmra.mrb[0].mxu0 %v36
  %v72 = vpop.f32.mrb[0].mxu0
  %v73 = vadd.f32 0.0, %v72
  %v74 = vpop.f32.mrb[0].mxu0
  %v75 = vpop.f32.mrb[0].mxu0
  %v76 = vpop.f32.mrb[0].mxu0
  %77 = vdwg.mxu0
  %v78 = vadd.f32 %v25, %v73
  %79 = vrot.lane.b32.xlu0 %v32, 112
  %v80 = vpop.permute.xlu0 %79
  %82 = vmatprep.subr.bf16.mxu0 0
  %83 = vmatpush1.bf16.msra.mxu0 %v80
  %84 = vmatprep.subr.bf16.mxu0 0
  %85 = vmatpush1.bf16.msra.mxu0 0
  %86 = vmatprep.subr.bf16.mxu0 0
  %87 = vmatpush1.bf16.msra.mxu0 0
  %88 = vmatprep.subr.bf16.mxu0 0
  %89 = vmatpush1.bf16.msra.mxu0 0
  %90 = vmatprep.subr.bf16.mxu0 0
  %91 = vmatpush1.bf16.msra.mxu0 0
  %92 = vmatprep.subr.bf16.mxu0 0
  %93 = vmatpush1.bf16.msra.mxu0 0
  %94 = vmatprep.subr.bf16.mxu0 0
  %95 = vmatpush1.bf16.msra.mxu0 0
  %96 = vmatprep.subr.bf16.mxu0 0
  %97 = vmatpush1.bf16.msra.mxu0 0
  %98 = vmatprep.subr.bf16.mxu0 0
  %99 = vmatpush1.bf16.msra.mxu0 0
  %100 = vmatprep.subr.bf16.mxu0 0
  %101 = vmatpush1.bf16.msra.mxu0 0
  %102 = vmatprep.subr.bf16.mxu0 0
  %103 = vmatpush1.bf16.msra.mxu0 0
  %104 = vmatprep.subr.bf16.mxu0 0
  %105 = vmatpush1.bf16.msra.mxu0 0
  %106 = vmatprep.subr.bf16.mxu0 0
  %107 = vmatpush1.bf16.msra.mxu0 0
  %108 = vmatprep.subr.bf16.mxu0 0
  %109 = vmatpush1.bf16.msra.mxu0 0
  %110 = vmatprep.subr.bf16.mxu0 0
  %111 = vmatpush1.bf16.msra.mxu0 0
  %112 = vmatprep.subr.bf16.mxu0 0
  %113 = vmatpush1.bf16.msra.mxu0 0
  %114 = vmatprep.mubr.bf16.mxu0 0
  %115 = vmatmul.mubr.bf16.gmra.mrb[0].mxu0 %v36
  %v116 = vpop.f32.mrb[0].mxu0
  %v117 = vadd.f32 0.0, %v116
  %v118 = vpop.f32.mrb[0].mxu0
  %v119 = vpop.f32.mrb[0].mxu0
  %v120 = vpop.f32.mrb[0].mxu0
  %121 = vdwg.mxu0
  %123 = vrot.lane.b32.xlu0 %v117, 16
  %v124 = vpop.permute.xlu0 %123
  %v126 = vadd.f32 %v25, %v124
  %127 = vrot.lane.b32.xlu0 %v32, 96
  %v128 = vpop.permute.xlu0 %127
  %130 = vmatprep.subr.bf16.mxu0 0
  %131 = vmatpush1.bf16.msra.mxu0 %v128
  %132 = vmatprep.subr.bf16.mxu0 0
  %133 = vmatpush1.bf16.msra.mxu0 0
  %134 = vmatprep.subr.bf16.mxu0 0
  %135 = vmatpush1.bf16.msra.mxu0 0
  %136 = vmatprep.subr.bf16.mxu0 0
  %137 = vmatpush1.bf16.msra.mxu0 0
  %138 = vmatprep.subr.bf16.mxu0 0
  %139 = vmatpush1.bf16.msra.mxu0 0
  %140 = vmatprep.subr.bf16.mxu0 0
  %141 = vmatpush1.bf16.msra.mxu0 0
  %142 = vmatprep.subr.bf16.mxu0 0
  %143 = vmatpush1.bf16.msra.mxu0 0
  %144 = vmatprep.subr.bf16.mxu0 0
  %145 = vmatpush1.bf16.msra.mxu0 0
  %146 = vmatprep.subr.bf16.mxu0 0
  %147 = vmatpush1.bf16.msra.mxu0 0
  %148 = vmatprep.subr.bf16.mxu0 0
  %149 = vmatpush1.bf16.msra.mxu0 0
  %150 = vmatprep.subr.bf16.mxu0 0
  %151 = vmatpush1.bf16.msra.mxu0 0
  %152 = vmatprep.subr.bf16.mxu0 0
  %153 = vmatpush1.bf16.msra.mxu0 0
  %154 = vmatprep.subr.bf16.mxu0 0
  %155 = vmatpush1.bf16.msra.mxu0 0
  %156 = vmatprep.subr.bf16.mxu0 0
  %157 = vmatpush1.bf16.msra.mxu0 0
  %158 = vmatprep.subr.bf16.mxu0 0
  %159 = vmatpush1.bf16.msra.mxu0 0
  %160 = vmatprep.subr.bf16.mxu0 0
  %161 = vmatpush1.bf16.msra.mxu0 0
  %162 = vmatprep.mubr.bf16.mxu0 0
  %163 = vmatmul.mubr.bf16.gmra.mrb[0].mxu0 %v36
  %v164 = vpop.f32.mrb[0].mxu0
  %v165 = vadd.f32 0.0, %v164
  %v166 = vpop.f32.mrb[0].mxu0
  %v167 = vpop.f32.mrb[0].mxu0
  %v168 = vpop.f32.mrb[0].mxu0
  %169 = vdwg.mxu0
  %171 = vrot.lane.b32.xlu0 %v165, 32
  %v172 = vpop.permute.xlu0 %171
  %v174 = vadd.f32 %v25, %v172
  %175 = vrot.lane.b32.xlu0 %v32, 80
  %v176 = vpop.permute.xlu0 %175
  %178 = vmatprep.subr.bf16.mxu0 0
  %179 = vmatpush1.bf16.msra.mxu0 %v176
  %180 = vmatprep.subr.bf16.mxu0 0
  %181 = vmatpush1.bf16.msra.mxu0 0
  %182 = vmatprep.subr.bf16.mxu0 0
  %183 = vmatpush1.bf16.msra.mxu0 0
  %184 = vmatprep.subr.bf16.mxu0 0
  %185 = vmatpush1.bf16.msra.mxu0 0
  %186 = vmatprep.subr.bf16.mxu0 0
  %187 = vmatpush1.bf16.msra.mxu0 0
  %188 = vmatprep.subr.bf16.mxu0 0
  %189 = vmatpush1.bf16.msra.mxu0 0
  %190 = vmatprep.subr.bf16.mxu0 0
  %191 = vmatpush1.bf16.msra.mxu0 0
  %192 = vmatprep.subr.bf16.mxu0 0
  %193 = vmatpush1.bf16.msra.mxu0 0
  %194 = vmatprep.subr.bf16.mxu0 0
  %195 = vmatpush1.bf16.msra.mxu0 0
  %196 = vmatprep.subr.bf16.mxu0 0
  %197 = vmatpush1.bf16.msra.mxu0 0
  %198 = vmatprep.subr.bf16.mxu0 0
  %199 = vmatpush1.bf16.msra.mxu0 0
  %200 = vmatprep.subr.bf16.mxu0 0
  %201 = vmatpush1.bf16.msra.mxu0 0
  %202 = vmatprep.subr.bf16.mxu0 0
  %203 = vmatpush1.bf16.msra.mxu0 0
  %204 = vmatprep.subr.bf16.mxu0 0
  %205 = vmatpush1.bf16.msra.mxu0 0
  %206 = vmatprep.subr.bf16.mxu0 0
  %207 = vmatpush1.bf16.msra.mxu0 0
  %208 = vmatprep.subr.bf16.mxu0 0
  %209 = vmatpush1.bf16.msra.mxu0 0
  %210 = vmatprep.mubr.bf16.mxu0 0
  %211 = vmatmul.mubr.bf16.gmra.mrb[0].mxu0 %v36
  %v212 = vpop.f32.mrb[0].mxu0
  %v213 = vadd.f32 0.0, %v212
  %v214 = vpop.f32.mrb[0].mxu0
  %v215 = vpop.f32.mrb[0].mxu0
  %v216 = vpop.f32.mrb[0].mxu0
  %217 = vdwg.mxu0
  %219 = vrot.lane.b32.xlu0 %v213, 48
  %v220 = vpop.permute.xlu0 %219
  %v222 = vadd.f32 %v25, %v220
  %v223 = vmul.f32 %v78, 0.5
  %v224 = vtanh.pop %v223
  %v225 = vadd.f32 %v224, 1.0
  %v226 = vmul.f32 %v225, 0.5
  %v227 = vmul.f32 %v126, 0.5
  %v228 = vtanh.pop %v227
  %v229 = vadd.f32 %v228, 1.0
  %v230 = vmul.f32 %v229, 0.5
  %v231 = vtanh.pop %v174
  %v232 = vmul.f32 %v222, 0.5
  %v233 = vtanh.pop %v232
  %v234 = vadd.f32 %v233, 1.0
  %v235 = vmul.f32 %v234, 0.5
  %v236 = vld [vmem:[#allocation3] sm:$0xf]
  %238 = vrot.lane.b32.xlu0 %v236, 16
  %v239 = vpop.permute.xlu0 %238
  %v241 = vmul.f32 %v230, %v239
  %243 = vrot.lane.b32.xlu0 %v231, 96
  %v244 = vpop.permute.xlu0 %243
  %v246 = vmul.f32 %v226, %v244
  %248 = vrot.lane.b32.xlu0 %v246, 16
  %v249 = vpop.permute.xlu0 %248
  %v251 = vadd.f32 %v241, %v249
  %v252 = vtanh.pop %v251
  %254 = vrot.lane.b32.xlu0 %v252, 32
  %v255 = vpop.permute.xlu0 %254
  %v257 = vmul.f32 %v235, %v255
  %259 = vrot.lane.b32.xlu0 %v251, 112
  %v260 = vpop.permute.xlu0 %259
  %vm262 = vcmask 125952
  %263 = vst.msk [vmem:[#allocation3] sm:$0xf] %vm262, %v260
  %265 = vrot.lane.b32.xlu0 %v257, 80
  %v266 = vpop.permute.xlu0 %265
  %268 = vst.msk [vmem:[#allocation2] sm:$0xf] %vm262, %v266
  %v269 = vld [vmem:[%s1] sm:$0xf]
  %v270 = vadd.f32 %v269, %v266
  %271 = vst.msk [vmem:[%s3] sm:$0xf] %vm262, %v270
  %s272 = scalar_lea.vmem %s0, 2
  %v273 = vld [vmem:[%s272] sm:$0x3]
  %v274 = vunpack.c.l.bf16 %v273
  %v275 = vld [vmem:[#allocation2] sm:$0xf]
  %v276 = vpack.c.bf16 %v275, %v275
  %v278 = vsel %vm34, %v276, 0
  %280 = vmatprep.subr.bf16.mxu0 0
  %281 = vmatpush1.bf16.msra.mxu0 %v32
  %282 = vmatprep.subr.bf16.mxu0 0
  %283 = vmatpush1.bf16.msra.mxu0 0
  %284 = vmatprep.subr.bf16.mxu0 0
  %285 = vmatpush1.bf16.msra.mxu0 0
  %286 = vmatprep.subr.bf16.mxu0 0
  %287 = vmatpush1.bf16.msra.mxu0 0
  %288 = vmatprep.subr.bf16.mxu0 0
  %289 = vmatpush1.bf16.msra.mxu0 0
  %290 = vmatprep.subr.bf16.mxu0 0
  %291 = vmatpush1.bf16.msra.mxu0 0
  %292 = vmatprep.subr.bf16.mxu0 0
  %293 = vmatpush1.bf16.msra.mxu0 0
  %294 = vmatprep.subr.bf16.mxu0 0
  %295 = vmatpush1.bf16.msra.mxu0 0
  %296 = vmatprep.subr.bf16.mxu0 0
  %297 = vmatpush1.bf16.msra.mxu0 0
  %298 = vmatprep.subr.bf16.mxu0 0
  %299 = vmatpush1.bf16.msra.mxu0 0
  %300 = vmatprep.subr.bf16.mxu0 0
  %301 = vmatpush1.bf16.msra.mxu0 0
  %302 = vmatprep.subr.bf16.mxu0 0
  %303 = vmatpush1.bf16.msra.mxu0 0
  %304 = vmatprep.subr.bf16.mxu0 0
  %305 = vmatpush1.bf16.msra.mxu0 0
  %306 = vmatprep.subr.bf16.mxu0 0
  %307 = vmatpush1.bf16.msra.mxu0 0
  %308 = vmatprep.subr.bf16.mxu0 0
  %309 = vmatpush1.bf16.msra.mxu0 0
  %310 = vmatprep.subr.bf16.mxu0 0
  %311 = vmatpush1.bf16.msra.mxu0 0
  %312 = vmatprep.mubr.bf16.mxu0 0
  %313 = vmatmul.mubr.bf16.gmra.mrb[0].mxu0 %v278
  %v314 = vpop.f32.mrb[0].mxu0
  %v315 = vadd.f32 0.0, %v314
  %v316 = vpop.f32.mrb[0].mxu0
  %v317 = vpop.f32.mrb[0].mxu0
  %v318 = vpop.f32.mrb[0].mxu0
  %319 = vdwg.mxu0
  %v320 = vadd.f32 %v274, %v315
  %321 = vmatprep.subr.bf16.mxu0 0
  %322 = vmatpush1.bf16.msra.mxu0 %v80
  %323 = vmatprep.subr.bf16.mxu0 0
  %324 = vmatpush1.bf16.msra.mxu0 0
  %325 = vmatprep.subr.bf16.mxu0 0
  %326 = vmatpush1.bf16.msra.mxu0 0
  %327 = vmatprep.subr.bf16.mxu0 0
  %328 = vmatpush1.bf16.msra.mxu0 0
  %329 = vmatprep.subr.bf16.mxu0 0
  %330 = vmatpush1.bf16.msra.mxu0 0
  %331 = vmatprep.subr.bf16.mxu0 0
  %332 = vmatpush1.bf16.msra.mxu0 0
  %333 = vmatprep.subr.bf16.mxu0 0
  %334 = vmatpush1.bf16.msra.mxu0 0
  %335 = vmatprep.subr.bf16.mxu0 0
  %336 = vmatpush1.bf16.msra.mxu0 0
  %337 = vmatprep.subr.bf16.mxu0 0
  %338 = vmatpush1.bf16.msra.mxu0 0
  %339 = vmatprep.subr.bf16.mxu0 0
  %340 = vmatpush1.bf16.msra.mxu0 0
  %341 = vmatprep.subr.bf16.mxu0 0
  %342 = vmatpush1.bf16.msra.mxu0 0
  %343 = vmatprep.subr.bf16.mxu0 0
  %344 = vmatpush1.bf16.msra.mxu0 0
  %345 = vmatprep.subr.bf16.mxu0 0
  %346 = vmatpush1.bf16.msra.mxu0 0
  %347 = vmatprep.subr.bf16.mxu0 0
  %348 = vmatpush1.bf16.msra.mxu0 0
  %349 = vmatprep.subr.bf16.mxu0 0
  %350 = vmatpush1.bf16.msra.mxu0 0
  %351 = vmatprep.subr.bf16.mxu0 0
  %352 = vmatpush1.bf16.msra.mxu0 0
  %353 = vmatprep.mubr.bf16.mxu0 0
  %354 = vmatmul.mubr.bf16.gmra.mrb[0].mxu0 %v278
  %v355 = vpop.f32.mrb[0].mxu0
  %v356 = vadd.f32 0.0, %v355
  %v357 = vpop.f32.mrb[0].mxu0
  %v358 = vpop.f32.mrb[0].mxu0
  %v359 = vpop.f32.mrb[0].mxu0
  %360 = vdwg.mxu0
  %362 = vrot.lane.b32.xlu0 %v356, 16
  %v363 = vpop.permute.xlu0 %362
  %v365 = vadd.f32 %v274, %v363
  %366 = vmatprep.subr.bf16.mxu0 0
  %367 = vmatpush1.bf16.msra.mxu0 %v128
  %368 = vmatprep.subr.bf16.mxu0 0
  %369 = vmatpush1.bf16.msra.mxu0 0
  %370 = vmatprep.subr.bf16.mxu0 0
  %371 = vmatpush1.bf16.msra.mxu0 0
  %372 = vmatprep.subr.bf16.mxu0 0
  %373 = vmatpush1.bf16.msra.mxu0 0
  %374 = vmatprep.subr.bf16.mxu0 0
  %375 = vmatpush1.bf16.msra.mxu0 0
  %376 = vmatprep.subr.bf16.mxu0 0
  %377 = vmatpush1.bf16.msra.mxu0 0
  %378 = vmatprep.subr.bf16.mxu0 0
  %379 = vmatpush1.bf16.msra.mxu0 0
  %380 = vmatprep.subr.bf16.mxu0 0
  %381 = vmatpush1.bf16.msra.mxu0 0
  %382 = vmatprep.subr.bf16.mxu0 0
  %383 = vmatpush1.bf16.msra.mxu0 0
  %384 = vmatprep.subr.bf16.mxu0 0
  %385 = vmatpush1.bf16.msra.mxu0 0
  %386 = vmatprep.subr.bf16.mxu0 0
  %387 = vmatpush1.bf16.msra.mxu0 0
  %388 = vmatprep.subr.bf16.mxu0 0
  %389 = vmatpush1.bf16.msra.mxu0 0
  %390 = vmatprep.subr.bf16.mxu0 0
  %391 = vmatpush1.bf16.msra.mxu0 0
  %392 = vmatprep.subr.bf16.mxu0 0
  %393 = vmatpush1.bf16.msra.mxu0 0
  %394 = vmatprep.subr.bf16.mxu0 0
  %395 = vmatpush1.bf16.msra.mxu0 0
  %396 = vmatprep.subr.bf16.mxu0 0
  %397 = vmatpush1.bf16.msra.mxu0 0
  %398 = vmatprep.mubr.bf16.mxu0 0
  %399 = vmatmul.mubr.bf16.gmra.mrb[0].mxu0 %v278
  %v400 = vpop.f32.mrb[0].mxu0
  %v401 = vadd.f32 0.0, %v400
  %v402 = vpop.f32.mrb[0].mxu0
  %v403 = vpop.f32.mrb[0].mxu0
  %v404 = vpop.f32.mrb[0].mxu0
  %405 = vdwg.mxu0
  %407 = vrot.lane.b32.xlu0 %v401, 32
  %v408 = vpop.permute.xlu0 %407
  %v410 = vadd.f32 %v274, %v408
  %411 = vmatprep.subr.bf16.mxu0 0
  %412 = vmatpush1.bf16.msra.mxu0 %v176
  %413 = vmatprep.subr.bf16.mxu0 0
  %414 = vmatpush1.bf16.msra.mxu0 0
  %415 = vmatprep.subr.bf16.mxu0 0
  %416 = vmatpush1.bf16.msra.mxu0 0
  %417 = vmatprep.subr.bf16.mxu0 0
  %418 = vmatpush1.bf16.msra.mxu0 0
  %419 = vmatprep.subr.bf16.mxu0 0
  %420 = vmatpush1.bf16.msra.mxu0 0
  %421 = vmatprep.subr.bf16.mxu0 0
  %422 = vmatpush1.bf16.msra.mxu0 0
  %423 = vmatprep.subr.bf16.mxu0 0
  %424 = vmatpush1.bf16.msra.mxu0 0
  %425 = vmatprep.subr.bf16.mxu0 0
  %426 = vmatpush1.bf16.msra.mxu0 0
  %427 = vmatprep.subr.bf16.mxu0 0
  %428 = vmatpush1.bf16.msra.mxu0 0
  %429 = vmatprep.subr.bf16.mxu0 0
  %430 = vmatpush1.bf16.msra.mxu0 0
  %431 = vmatprep.subr.bf16.mxu0 0
  %432 = vmatpush1.bf16.msra.mxu0 0
  %433 = vmatprep.subr.bf16.mxu0 0
  %434 = vmatpush1.bf16.msra.mxu0 0
  %435 = vmatprep.subr.bf16.mxu0 0
  %436 = vmatpush1.bf16.msra.mxu0 0
  %437 = vmatprep.subr.bf16.mxu0 0
  %438 = vmatpush1.bf16.msra.mxu0 0
  %439 = vmatprep.subr.bf16.mxu0 0
  %440 = vmatpush1.bf16.msra.mxu0 0
  %441 = vmatprep.subr.bf16.mxu0 0
  %442 = vmatpush1.bf16.msra.mxu0 0
  %443 = vmatprep.mubr.bf16.mxu0 0
  %444 = vmatmul.mubr.bf16.gmra.mrb[0].mxu0 %v278
  %v445 = vpop.f32.mrb[0].mxu0
  %v446 = vadd.f32 0.0, %v445
  %v447 = vpop.f32.mrb[0].mxu0
  %v448 = vpop.f32.mrb[0].mxu0
  %v449 = vpop.f32.mrb[0].mxu0
  %450 = vdwg.mxu0
  %452 = vrot.lane.b32.xlu0 %v446, 48
  %v453 = vpop.permute.xlu0 %452
  %v455 = vadd.f32 %v274, %v453
  %v456 = vmul.f32 %v320, 0.5
  %v457 = vtanh.pop %v456
  %v458 = vadd.f32 %v457, 1.0
  %v459 = vmul.f32 %v458, 0.5
  %v460 = vmul.f32 %v365, 0.5
  %v461 = vtanh.pop %v460
  %v462 = vadd.f32 %v461, 1.0
  %v463 = vmul.f32 %v462, 0.5
  %v464 = vtanh.pop %v410
  %v465 = vmul.f32 %v455, 0.5
  %v466 = vtanh.pop %v465
  %v467 = vadd.f32 %v466, 1.0
  %v468 = vmul.f32 %v467, 0.5
  %v469 = vld [vmem:[#allocation3] sm:$0xf]
  %471 = vrot.lane.b32.xlu0 %v469, 16
  %v472 = vpop.permute.xlu0 %471
  %v474 = vmul.f32 %v463, %v472
  %476 = vrot.lane.b32.xlu0 %v464, 96
  %v477 = vpop.permute.xlu0 %476
  %v479 = vmul.f32 %v459, %v477
  %481 = vrot.lane.b32.xlu0 %v479, 16
  %v482 = vpop.permute.xlu0 %481
  %v484 = vadd.f32 %v474, %v482
  %v485 = vtanh.pop %v484
  %487 = vrot.lane.b32.xlu0 %v485, 32
  %v488 = vpop.permute.xlu0 %487
  %v490 = vmul.f32 %v468, %v488
  %492 = vrot.lane.b32.xlu0 %v484, 112
  %v493 = vpop.permute.xlu0 %492
  %495 = vst.msk [vmem:[#allocation3] sm:$0xf] %vm262, %v493
  %497 = vrot.lane.b32.xlu0 %v490, 80
  %v498 = vpop.permute.xlu0 %497
  %500 = vst.msk [vmem:[#allocation2] sm:$0xf] %vm262, %v498
  %s501 = scalar_lea.vmem %s1, 4
  %v502 = vld [vmem:[%s501] sm:$0xf]
  %v503 = vadd.f32 %v502, %v498
  %s504 = scalar_lea.vmem %s3, 4
  %505 = vst.msk [vmem:[%s504] sm:$0xf] %vm262, %v503
  %s506 = scalar_lea.vmem %s0, 4
  %v507 = vld [vmem:[%s506] sm:$0x3]
  %v508 = vunpack.c.l.bf16 %v507
  %v509 = vld [vmem:[#allocation2] sm:$0xf]
  %v510 = vpack.c.bf16 %v509, %v509
  %v512 = vsel %vm34, %v510, 0
  %514 = vmatprep.subr.bf16.mxu0 0
  %515 = vmatpush1.bf16.msra.mxu0 %v32
  %516 = vmatprep.subr.bf16.mxu0 0
  %517 = vmatpush1.bf16.msra.mxu0 0
  %518 = vmatprep.subr.bf16.mxu0 0
  %519 = vmatpush1.bf16.msra.mxu0 0
  %520 = vmatprep.subr.bf16.mxu0 0
  %521 = vmatpush1.bf16.msra.mxu0 0
  %522 = vmatprep.subr.bf16.mxu0 0
  %523 = vmatpush1.bf16.msra.mxu0 0
  %524 = vmatprep.subr.bf16.mxu0 0
  %525 = vmatpush1.bf16.msra.mxu0 0
  %526 = vmatprep.subr.bf16.mxu0 0
  %527 = vmatpush1.bf16.msra.mxu0 0
  %528 = vmatprep.subr.bf16.mxu0 0
  %529 = vmatpush1.bf16.msra.mxu0 0
  %530 = vmatprep.subr.bf16.mxu0 0
  %531 = vmatpush1.bf16.msra.mxu0 0
  %532 = vmatprep.subr.bf16.mxu0 0
  %533 = vmatpush1.bf16.msra.mxu0 0
  %534 = vmatprep.subr.bf16.mxu0 0
  %535 = vmatpush1.bf16.msra.mxu0 0
  %536 = vmatprep.subr.bf16.mxu0 0
  %537 = vmatpush1.bf16.msra.mxu0 0
  %538 = vmatprep.subr.bf16.mxu0 0
  %539 = vmatpush1.bf16.msra.mxu0 0
  %540 = vmatprep.subr.bf16.mxu0 0
  %541 = vmatpush1.bf16.msra.mxu0 0
  %542 = vmatprep.subr.bf16.mxu0 0
  %543 = vmatpush1.bf16.msra.mxu0 0
  %544 = vmatprep.subr.bf16.mxu0 0
  %545 = vmatpush1.bf16.msra.mxu0 0
  %546 = vmatprep.mubr.bf16.mxu0 0
  %547 = vmatmul.mubr.bf16.gmra.mrb[0].mxu0 %v512
  %v548 = vpop.f32.mrb[0].mxu0
  %v549 = vadd.f32 0.0, %v548
  %v550 = vpop.f32.mrb[0].mxu0
  %v551 = vpop.f32.mrb[0].mxu0
  %v552 = vpop.f32.mrb[0].mxu0
  %553 = vdwg.mxu0
  %v554 = vadd.f32 %v508, %v549
  %555 = vmatprep.subr.bf16.mxu0 0
  %556 = vmatpush1.bf16.msra.mxu0 %v80
  %557 = vmatprep.subr.bf16.mxu0 0
  %558 = vmatpush1.bf16.msra.mxu0 0
  %559 = vmatprep.subr.bf16.mxu0 0
  %560 = vmatpush1.bf16.msra.mxu0 0
  %561 = vmatprep.subr.bf16.mxu0 0
  %562 = vmatpush1.bf16.msra.mxu0 0
  %563 = vmatprep.subr.bf16.mxu0 0
  %564 = vmatpush1.bf16.msra.mxu0 0
  %565 = vmatprep.subr.bf16.mxu0 0
  %566 = vmatpush1.bf16.msra.mxu0 0
  %567 = vmatprep.subr.bf16.mxu0 0
  %568 = vmatpush1.bf16.msra.mxu0 0
  %569 = vmatprep.subr.bf16.mxu0 0
  %570 = vmatpush1.bf16.msra.mxu0 0
  %571 = vmatprep.subr.bf16.mxu0 0
  %572 = vmatpush1.bf16.msra.mxu0 0
  %573 = vmatprep.subr.bf16.mxu0 0
  %574 = vmatpush1.bf16.msra.mxu0 0
  %575 = vmatprep.subr.bf16.mxu0 0
  %576 = vmatpush1.bf16.msra.mxu0 0
  %577 = vmatprep.subr.bf16.mxu0 0
  %578 = vmatpush1.bf16.msra.mxu0 0
  %579 = vmatprep.subr.bf16.mxu0 0
  %580 = vmatpush1.bf16.msra.mxu0 0
  %581 = vmatprep.subr.bf16.mxu0 0
  %582 = vmatpush1.bf16.msra.mxu0 0
  %583 = vmatprep.subr.bf16.mxu0 0
  %584 = vmatpush1.bf16.msra.mxu0 0
  %585 = vmatprep.subr.bf16.mxu0 0
  %586 = vmatpush1.bf16.msra.mxu0 0
  %587 = vmatprep.mubr.bf16.mxu0 0
  %588 = vmatmul.mubr.bf16.gmra.mrb[0].mxu0 %v512
  %v589 = vpop.f32.mrb[0].mxu0
  %v590 = vadd.f32 0.0, %v589
  %v591 = vpop.f32.mrb[0].mxu0
  %v592 = vpop.f32.mrb[0].mxu0
  %v593 = vpop.f32.mrb[0].mxu0
  %594 = vdwg.mxu0
  %596 = vrot.lane.b32.xlu0 %v590, 16
  %v597 = vpop.permute.xlu0 %596
  %v599 = vadd.f32 %v508, %v597
  %600 = vmatprep.subr.bf16.mxu0 0
  %601 = vmatpush1.bf16.msra.mxu0 %v128
  %602 = vmatprep.subr.bf16.mxu0 0
  %603 = vmatpush1.bf16.msra.mxu0 0
  %604 = vmatprep.subr.bf16.mxu0 0
  %605 = vmatpush1.bf16.msra.mxu0 0
  %606 = vmatprep.subr.bf16.mxu0 0
  %607 = vmatpush1.bf16.msra.mxu0 0
  %608 = vmatprep.subr.bf16.mxu0 0
  %609 = vmatpush1.bf16.msra.mxu0 0
  %610 = vmatprep.subr.bf16.mxu0 0
  %611 = vmatpush1.bf16.msra.mxu0 0
  %612 = vmatprep.subr.bf16.mxu0 0
  %613 = vmatpush1.bf16.msra.mxu0 0
  %614 = vmatprep.subr.bf16.mxu0 0
  %615 = vmatpush1.bf16.msra.mxu0 0
  %616 = vmatprep.subr.bf16.mxu0 0
  %617 = vmatpush1.bf16.msra.mxu0 0
  %618 = vmatprep.subr.bf16.mxu0 0
  %619 = vmatpush1.bf16.msra.mxu0 0
  %620 = vmatprep.subr.bf16.mxu0 0
  %621 = vmatpush1.bf16.msra.mxu0 0
  %622 = vmatprep.subr.bf16.mxu0 0
  %623 = vmatpush1.bf16.msra.mxu0 0
  %624 = vmatprep.subr.bf16.mxu0 0
  %625 = vmatpush1.bf16.msra.mxu0 0
  %626 = vmatprep.subr.bf16.mxu0 0
  %627 = vmatpush1.bf16.msra.mxu0 0
  %628 = vmatprep.subr.bf16.mxu0 0
  %629 = vmatpush1.bf16.msra.mxu0 0
  %630 = vmatprep.subr.bf16.mxu0 0
  %631 = vmatpush1.bf16.msra.mxu0 0
  %632 = vmatprep.mubr.bf16.mxu0 0
  %633 = vmatmul.mubr.bf16.gmra.mrb[0].mxu0 %v512
  %v634 = vpop.f32.mrb[0].mxu0
  %v635 = vadd.f32 0.0, %v634
  %v636 = vpop.f32.mrb[0].mxu0
  %v637 = vpop.f32.mrb[0].mxu0
  %v638 = vpop.f32.mrb[0].mxu0
  %639 = vdwg.mxu0
  %641 = vrot.lane.b32.xlu0 %v635, 32
  %v642 = vpop.permute.xlu0 %641
  %v644 = vadd.f32 %v508, %v642
  %645 = vmatprep.subr.bf16.mxu0 0
  %646 = vmatpush1.bf16.msra.mxu0 %v176
  %647 = vmatprep.subr.bf16.mxu0 0
  %648 = vmatpush1.bf16.msra.mxu0 0
  %649 = vmatprep.subr.bf16.mxu0 0
  %650 = vmatpush1.bf16.msra.mxu0 0
  %651 = vmatprep.subr.bf16.mxu0 0
  %652 = vmatpush1.bf16.msra.mxu0 0
  %653 = vmatprep.subr.bf16.mxu0 0
  %654 = vmatpush1.bf16.msra.mxu0 0
  %655 = vmatprep.subr.bf16.mxu0 0
  %656 = vmatpush1.bf16.msra.mxu0 0
  %657 = vmatprep.subr.bf16.mxu0 0
  %658 = vmatpush1.bf16.msra.mxu0 0
  %659 = vmatprep.subr.bf16.mxu0 0
  %660 = vmatpush1.bf16.msra.mxu0 0
  %661 = vmatprep.subr.bf16.mxu0 0
  %662 = vmatpush1.bf16.msra.mxu0 0
  %663 = vmatprep.subr.bf16.mxu0 0
  %664 = vmatpush1.bf16.msra.mxu0 0
  %665 = vmatprep.subr.bf16.mxu0 0
  %666 = vmatpush1.bf16.msra.mxu0 0
  %667 = vmatprep.subr.bf16.mxu0 0
  %668 = vmatpush1.bf16.msra.mxu0 0
  %669 = vmatprep.subr.bf16.mxu0 0
  %670 = vmatpush1.bf16.msra.mxu0 0
  %671 = vmatprep.subr.bf16.mxu0 0
  %672 = vmatpush1.bf16.msra.mxu0 0
  %673 = vmatprep.subr.bf16.mxu0 0
  %674 = vmatpush1.bf16.msra.mxu0 0
  %675 = vmatprep.subr.bf16.mxu0 0
  %676 = vmatpush1.bf16.msra.mxu0 0
  %677 = vmatprep.mubr.bf16.mxu0 0
  %678 = vmatmul.mubr.bf16.gmra.mrb[0].mxu0 %v512
  %v679 = vpop.f32.mrb[0].mxu0
  %v680 = vadd.f32 0.0, %v679
  %v681 = vpop.f32.mrb[0].mxu0
  %v682 = vpop.f32.mrb[0].mxu0
  %v683 = vpop.f32.mrb[0].mxu0
  %684 = vdwg.mxu0
  %686 = vrot.lane.b32.xlu0 %v680, 48
  %v687 = vpop.permute.xlu0 %686
  %v689 = vadd.f32 %v508, %v687
  %v690 = vmul.f32 %v554, 0.5
  %v691 = vtanh.pop %v690
  %v692 = vadd.f32 %v691, 1.0
  %v693 = vmul.f32 %v692, 0.5
  %v694 = vmul.f32 %v599, 0.5
  %v695 = vtanh.pop %v694
  %v696 = vadd.f32 %v695, 1.0
  %v697 = vmul.f32 %v696, 0.5
  %v698 = vtanh.pop %v644
  %v699 = vmul.f32 %v689, 0.5
  %v700 = vtanh.pop %v699
  %v701 = vadd.f32 %v700, 1.0
  %v702 = vmul.f32 %v701, 0.5
  %v703 = vld [vmem:[#allocation3] sm:$0xf]
  %705 = vrot.lane.b32.xlu0 %v703, 16
  %v706 = vpop.permute.xlu0 %705
  %v708 = vmul.f32 %v697, %v706
  %710 = vrot.lane.b32.xlu0 %v698, 96
  %v711 = vpop.permute.xlu0 %710
  %v713 = vmul.f32 %v693, %v711
  %715 = vrot.lane.b32.xlu0 %v713, 16
  %v716 = vpop.permute.xlu0 %715
  %v718 = vadd.f32 %v708, %v716
  %v719 = vtanh.pop %v718
  %721 = vrot.lane.b32.xlu0 %v719, 32
  %v722 = vpop.permute.xlu0 %721
  %v724 = vmul.f32 %v702, %v722
  %726 = vrot.lane.b32.xlu0 %v718, 112
  %v727 = vpop.permute.xlu0 %726
  %729 = vst.msk [vmem:[#allocation3] sm:$0xf] %vm262, %v727
  %731 = vrot.lane.b32.xlu0 %v724, 80
  %v732 = vpop.permute.xlu0 %731
  %734 = vst.msk [vmem:[#allocation2] sm:$0xf] %vm262, %v732
  %s735 = scalar_lea.vmem %s1, 8
  %v736 = vld [vmem:[%s735] sm:$0xf]
  %v737 = vadd.f32 %v736, %v732
  %s738 = scalar_lea.vmem %s3, 8
  %739 = vst.msk [vmem:[%s738] sm:$0xf] %vm262, %v737
  %s740 = scalar_lea.vmem %s0, 6
  %v741 = vld [vmem:[%s740] sm:$0x3]
  %v742 = vunpack.c.l.bf16 %v741
  %v743 = vld [vmem:[#allocation2] sm:$0xf]
  %v744 = vpack.c.bf16 %v743, %v743
  %v746 = vsel %vm34, %v744, 0
  %748 = vmatprep.subr.bf16.mxu0 0
  %749 = vmatpush1.bf16.msra.mxu0 %v32
  %750 = vmatprep.subr.bf16.mxu0 0
  %751 = vmatpush1.bf16.msra.mxu0 0
  %752 = vmatprep.subr.bf16.mxu0 0
  %753 = vmatpush1.bf16.msra.mxu0 0
  %754 = vmatprep.subr.bf16.mxu0 0
  %755 = vmatpush1.bf16.msra.mxu0 0
  %756 = vmatprep.subr.bf16.mxu0 0
  %757 = vmatpush1.bf16.msra.mxu0 0
  %758 = vmatprep.subr.bf16.mxu0 0
  %759 = vmatpush1.bf16.msra.mxu0 0
  %760 = vmatprep.subr.bf16.mxu0 0
  %761 = vmatpush1.bf16.msra.mxu0 0
  %762 = vmatprep.subr.bf16.mxu0 0
  %763 = vmatpush1.bf16.msra.mxu0 0
  %764 = vmatprep.subr.bf16.mxu0 0
  %765 = vmatpush1.bf16.msra.mxu0 0
  %766 = vmatprep.subr.bf16.mxu0 0
  %767 = vmatpush1.bf16.msra.mxu0 0
  %768 = vmatprep.subr.bf16.mxu0 0
  %769 = vmatpush1.bf16.msra.mxu0 0
  %770 = vmatprep.subr.bf16.mxu0 0
  %771 = vmatpush1.bf16.msra.mxu0 0
  %772 = vmatprep.subr.bf16.mxu0 0
  %773 = vmatpush1.bf16.msra.mxu0 0
  %774 = vmatprep.subr.bf16.mxu0 0
  %775 = vmatpush1.bf16.msra.mxu0 0
  %776 = vmatprep.subr.bf16.mxu0 0
  %777 = vmatpush1.bf16.msra.mxu0 0
  %778 = vmatprep.subr.bf16.mxu0 0
  %779 = vmatpush1.bf16.msra.mxu0 0
  %780 = vmatprep.mubr.bf16.mxu0 0
  %781 = vmatmul.mubr.bf16.gmra.mrb[0].mxu0 %v746
  %v782 = vpop.f32.mrb[0].mxu0
  %v783 = vadd.f32 0.0, %v782
  %v784 = vpop.f32.mrb[0].mxu0
  %v785 = vpop.f32.mrb[0].mxu0
  %v786 = vpop.f32.mrb[0].mxu0
  %787 = vdwg.mxu0
  %v788 = vadd.f32 %v742, %v783
  %789 = vmatprep.subr.bf16.mxu0 0
  %790 = vmatpush1.bf16.msra.mxu0 %v80
  %791 = vmatprep.subr.bf16.mxu0 0
  %792 = vmatpush1.bf16.msra.mxu0 0
  %793 = vmatprep.subr.bf16.mxu0 0
  %794 = vmatpush1.bf16.msra.mxu0 0
  %795 = vmatprep.subr.bf16.mxu0 0
  %796 = vmatpush1.bf16.msra.mxu0 0
  %797 = vmatprep.subr.bf16.mxu0 0
  %798 = vmatpush1.bf16.msra.mxu0 0
  %799 = vmatprep.subr.bf16.mxu0 0
  %800 = vmatpush1.bf16.msra.mxu0 0
  %801 = vmatprep.subr.bf16.mxu0 0
  %802 = vmatpush1.bf16.msra.mxu0 0
  %803 = vmatprep.subr.bf16.mxu0 0
  %804 = vmatpush1.bf16.msra.mxu0 0
  %805 = vmatprep.subr.bf16.mxu0 0
  %806 = vmatpush1.bf16.msra.mxu0 0
  %807 = vmatprep.subr.bf16.mxu0 0
  %808 = vmatpush1.bf16.msra.mxu0 0
  %809 = vmatprep.subr.bf16.mxu0 0
  %810 = vmatpush1.bf16.msra.mxu0 0
  %811 = vmatprep.subr.bf16.mxu0 0
  %812 = vmatpush1.bf16.msra.mxu0 0
  %813 = vmatprep.subr.bf16.mxu0 0
  %814 = vmatpush1.bf16.msra.mxu0 0
  %815 = vmatprep.subr.bf16.mxu0 0
  %816 = vmatpush1.bf16.msra.mxu0 0
  %817 = vmatprep.subr.bf16.mxu0 0
  %818 = vmatpush1.bf16.msra.mxu0 0
  %819 = vmatprep.subr.bf16.mxu0 0
  %820 = vmatpush1.bf16.msra.mxu0 0
  %821 = vmatprep.mubr.bf16.mxu0 0
  %822 = vmatmul.mubr.bf16.gmra.mrb[0].mxu0 %v746
  %v823 = vpop.f32.mrb[0].mxu0
  %v824 = vadd.f32 0.0, %v823
  %v825 = vpop.f32.mrb[0].mxu0
  %v826 = vpop.f32.mrb[0].mxu0
  %v827 = vpop.f32.mrb[0].mxu0
  %828 = vdwg.mxu0
  %830 = vrot.lane.b32.xlu0 %v824, 16
  %v831 = vpop.permute.xlu0 %830
  %v833 = vadd.f32 %v742, %v831
  %834 = vmatprep.subr.bf16.mxu0 0
  %835 = vmatpush1.bf16.msra.mxu0 %v128
  %836 = vmatprep.subr.bf16.mxu0 0
  %837 = vmatpush1.bf16.msra.mxu0 0
  %838 = vmatprep.subr.bf16.mxu0 0
  %839 = vmatpush1.bf16.msra.mxu0 0
  %840 = vmatprep.subr.bf16.mxu0 0
  %841 = vmatpush1.bf16.msra.mxu0 0
  %842 = vmatprep.subr.bf16.mxu0 0
  %843 = vmatpush1.bf16.msra.mxu0 0
  %844 = vmatprep.subr.bf16.mxu0 0
  %845 = vmatpush1.bf16.msra.mxu0 0
  %846 = vmatprep.subr.bf16.mxu0 0
  %847 = vmatpush1.bf16.msra.mxu0 0
  %848 = vmatprep.subr.bf16.mxu0 0
  %849 = vmatpush1.bf16.msra.mxu0 0
  %850 = vmatprep.subr.bf16.mxu0 0
  %851 = vmatpush1.bf16.msra.mxu0 0
  %852 = vmatprep.subr.bf16.mxu0 0
  %853 = vmatpush1.bf16.msra.mxu0 0
  %854 = vmatprep.subr.bf16.mxu0 0
  %855 = vmatpush1.bf16.msra.mxu0 0
  %856 = vmatprep.subr.bf16.mxu0 0
  %857 = vmatpush1.bf16.msra.mxu0 0
  %858 = vmatprep.subr.bf16.mxu0 0
  %859 = vmatpush1.bf16.msra.mxu0 0
  %860 = vmatprep.subr.bf16.mxu0 0
  %861 = vmatpush1.bf16.msra.mxu0 0
  %862 = vmatprep.subr.bf16.mxu0 0
  %863 = vmatpush1.bf16.msra.mxu0 0
  %864 = vmatprep.subr.bf16.mxu0 0
  %865 = vmatpush1.bf16.msra.mxu0 0
  %866 = vmatprep.mubr.bf16.mxu0 0
  %867 = vmatmul.mubr.bf16.gmra.mrb[0].mxu0 %v746
  %v868 = vpop.f32.mrb[0].mxu0
  %v869 = vadd.f32 0.0, %v868
  %v870 = vpop.f32.mrb[0].mxu0
  %v871 = vpop.f32.mrb[0].mxu0
  %v872 = vpop.f32.mrb[0].mxu0
  %873 = vdwg.mxu0
  %875 = vrot.lane.b32.xlu0 %v869, 32
  %v876 = vpop.permute.xlu0 %875
  %v878 = vadd.f32 %v742, %v876
  %879 = vmatprep.subr.bf16.mxu0 0
  %880 = vmatpush1.bf16.msra.mxu0 %v176
  %881 = vmatprep.subr.bf16.mxu0 0
  %882 = vmatpush1.bf16.msra.mxu0 0
  %883 = vmatprep.subr.bf16.mxu0 0
  %884 = vmatpush1.bf16.msra.mxu0 0
  %885 = vmatprep.subr.bf16.mxu0 0
  %886 = vmatpush1.bf16.msra.mxu0 0
  %887 = vmatprep.subr.bf16.mxu0 0
  %888 = vmatpush1.bf16.msra.mxu0 0
  %889 = vmatprep.subr.bf16.mxu0 0
  %890 = vmatpush1.bf16.msra.mxu0 0
  %891 = vmatprep.subr.bf16.mxu0 0
  %892 = vmatpush1.bf16.msra.mxu0 0
  %893 = vmatprep.subr.bf16.mxu0 0
  %894 = vmatpush1.bf16.msra.mxu0 0
  %895 = vmatprep.subr.bf16.mxu0 0
  %896 = vmatpush1.bf16.msra.mxu0 0
  %897 = vmatprep.subr.bf16.mxu0 0
  %898 = vmatpush1.bf16.msra.mxu0 0
  %899 = vmatprep.subr.bf16.mxu0 0
  %900 = vmatpush1.bf16.msra.mxu0 0
  %901 = vmatprep.subr.bf16.mxu0 0
  %902 = vmatpush1.bf16.msra.mxu0 0
  %903 = vmatprep.subr.bf16.mxu0 0
  %904 = vmatpush1.bf16.msra.mxu0 0
  %905 = vmatprep.subr.bf16.mxu0 0
  %906 = vmatpush1.bf16.msra.mxu0 0
  %907 = vmatprep.subr.bf16.mxu0 0
  %908 = vmatpush1.bf16.msra.mxu0 0
  %909 = vmatprep.subr.bf16.mxu0 0
  %910 = vmatpush1.bf16.msra.mxu0 0
  %911 = vmatprep.mubr.bf16.mxu0 0
  %912 = vmatmul.mubr.bf16.gmra.mrb[0].mxu0 %v746
  %v913 = vpop.f32.mrb[0].mxu0
  %v914 = vadd.f32 0.0, %v913
  %v915 = vpop.f32.mrb[0].mxu0
  %v916 = vpop.f32.mrb[0].mxu0
  %v917 = vpop.f32.mrb[0].mxu0
  %918 = vdwg.mxu0
  %920 = vrot.lane.b32.xlu0 %v914, 48
  %v921 = vpop.permute.xlu0 %920
  %v923 = vadd.f32 %v742, %v921
  %v924 = vmul.f32 %v788, 0.5
  %v925 = vtanh.pop %v924
  %v926 = vadd.f32 %v925, 1.0
  %v927 = vmul.f32 %v926, 0.5
  %v928 = vmul.f32 %v833, 0.5
  %v929 = vtanh.pop %v928
  %v930 = vadd.f32 %v929, 1.0
  %v931 = vmul.f32 %v930, 0.5
  %v932 = vtanh.pop %v878
  %v933 = vmul.f32 %v923, 0.5
  %v934 = vtanh.pop %v933
  %v935 = vadd.f32 %v934, 1.0
  %v936 = vmul.f32 %v935, 0.5
  %v937 = vld [vmem:[#allocation3] sm:$0xf]
  %939 = vrot.lane.b32.xlu0 %v937, 16
  %v940 = vpop.permute.xlu0 %939
  %v942 = vmul.f32 %v931, %v940
  %944 = vrot.lane.b32.xlu0 %v932, 96
  %v945 = vpop.permute.xlu0 %944
  %v947 = vmul.f32 %v927, %v945
  %949 = vrot.lane.b32.xlu0 %v947, 16
  %v950 = vpop.permute.xlu0 %949
  %v952 = vadd.f32 %v942, %v950
  %v953 = vtanh.pop %v952
  %955 = vrot.lane.b32.xlu0 %v953, 32
  %v956 = vpop.permute.xlu0 %955
  %v958 = vmul.f32 %v936, %v956
  %960 = vrot.lane.b32.xlu0 %v952, 112
  %v961 = vpop.permute.xlu0 %960
  %963 = vst.msk [vmem:[#allocation3] sm:$0xf] %vm262, %v961
  %965 = vrot.lane.b32.xlu0 %v958, 80
  %v966 = vpop.permute.xlu0 %965
  %968 = vst.msk [vmem:[#allocation2] sm:$0xf] %vm262, %v966
  %s969 = scalar_lea.vmem %s1, 12
  %v970 = vld [vmem:[%s969] sm:$0xf]
  %v971 = vadd.f32 %v970, %v966
  %s972 = scalar_lea.vmem %s3, 12
  %973 = vst.msk [vmem:[%s972] sm:$0xf] %vm262, %v971
  %s974 = scalar_lea.vmem %s0, 8
  %v975 = vld [vmem:[%s974] sm:$0x3]
  %v976 = vunpack.c.l.bf16 %v975
  %v977 = vld [vmem:[#allocation2] sm:$0xf]
  %v978 = vpack.c.bf16 %v977, %v977
  %v980 = vsel %vm34, %v978, 0
  %982 = vmatprep.subr.bf16.mxu0 0
  %983 = vmatpush1.bf16.msra.mxu0 %v32
  %984 = vmatprep.subr.bf16.mxu0 0
  %985 = vmatpush1.bf16.msra.mxu0 0
  %986 = vmatprep.subr.bf16.mxu0 0
  %987 = vmatpush1.bf16.msra.mxu0 0
  %988 = vmatprep.subr.bf16.mxu0 0
  %989 = vmatpush1.bf16.msra.mxu0 0
  %990 = vmatprep.subr.bf16.mxu0 0
  %991 = vmatpush1.bf16.msra.mxu0 0
  %992 = vmatprep.subr.bf16.mxu0 0
  %993 = vmatpush1.bf16.msra.mxu0 0
  %994 = vmatprep.subr.bf16.mxu0 0
  %995 = vmatpush1.bf16.msra.mxu0 0
  %996 = vmatprep.subr.bf16.mxu0 0
  %997 = vmatpush1.bf16.msra.mxu0 0
  %998 = vmatprep.subr.bf16.mxu0 0
  %999 = vmatpush1.bf16.msra.mxu0 0
  %1000 = vmatprep.subr.bf16.mxu0 0
  %1001 = vmatpush1.bf16.msra.mxu0 0
  %1002 = vmatprep.subr.bf16.mxu0 0
  %1003 = vmatpush1.bf16.msra.mxu0 0
  %1004 = vmatprep.subr.bf16.mxu0 0
  %1005 = vmatpush1.bf16.msra.mxu0 0
  %1006 = vmatprep.subr.bf16.mxu0 0
  %1007 = vmatpush1.bf16.msra.mxu0 0
  %1008 = vmatprep.subr.bf16.mxu0 0
  %1009 = vmatpush1.bf16.msra.mxu0 0
  %1010 = vmatprep.subr.bf16.mxu0 0
  %1011 = vmatpush1.bf16.msra.mxu0 0
  %1012 = vmatprep.subr.bf16.mxu0 0
  %1013 = vmatpush1.bf16.msra.mxu0 0
  %1014 = vmatprep.mubr.bf16.mxu0 0
  %1015 = vmatmul.mubr.bf16.gmra.mrb[0].mxu0 %v980
  %v1016 = vpop.f32.mrb[0].mxu0
  %v1017 = vadd.f32 0.0, %v1016
  %v1018 = vpop.f32.mrb[0].mxu0
  %v1019 = vpop.f32.mrb[0].mxu0
  %v1020 = vpop.f32.mrb[0].mxu0
  %1021 = vdwg.mxu0
  %v1022 = vadd.f32 %v976, %v1017
  %1023 = vmatprep.subr.bf16.mxu0 0
  %1024 = vmatpush1.bf16.msra.mxu0 %v80
  %1025 = vmatprep.subr.bf16.mxu0 0
  %1026 = vmatpush1.bf16.msra.mxu0 0
  %1027 = vmatprep.subr.bf16.mxu0 0
  %1028 = vmatpush1.bf16.msra.mxu0 0
  %1029 = vmatprep.subr.bf16.mxu0 0
  %1030 = vmatpush1.bf16.msra.mxu0 0
  %1031 = vmatprep.subr.bf16.mxu0 0
  %1032 = vmatpush1.bf16.msra.mxu0 0
  %1033 = vmatprep.subr.bf16.mxu0 0
  %1034 = vmatpush1.bf16.msra.mxu0 0
  %1035 = vmatprep.subr.bf16.mxu0 0
  %1036 = vmatpush1.bf16.msra.mxu0 0
  %1037 = vmatprep.subr.bf16.mxu0 0
  %1038 = vmatpush1.bf16.msra.mxu0 0
  %1039 = vmatprep.subr.bf16.mxu0 0
  %1040 = vmatpush1.bf16.msra.mxu0 0
  %1041 = vmatprep.subr.bf16.mxu0 0
  %1042 = vmatpush1.bf16.msra.mxu0 0
  %1043 = vmatprep.subr.bf16.mxu0 0
  %1044 = vmatpush1.bf16.msra.mxu0 0
  %1045 = vmatprep.subr.bf16.mxu0 0
  %1046 = vmatpush1.bf16.msra.mxu0 0
  %1047 = vmatprep.subr.bf16.mxu0 0
  %1048 = vmatpush1.bf16.msra.mxu0 0
  %1049 = vmatprep.subr.bf16.mxu0 0
  %1050 = vmatpush1.bf16.msra.mxu0 0
  %1051 = vmatprep.subr.bf16.mxu0 0
  %1052 = vmatpush1.bf16.msra.mxu0 0
  %1053 = vmatprep.subr.bf16.mxu0 0
  %1054 = vmatpush1.bf16.msra.mxu0 0
  %1055 = vmatprep.mubr.bf16.mxu0 0
  %1056 = vmatmul.mubr.bf16.gmra.mrb[0].mxu0 %v980
  %v1057 = vpop.f32.mrb[0].mxu0
  %v1058 = vadd.f32 0.0, %v1057
  %v1059 = vpop.f32.mrb[0].mxu0
  %v1060 = vpop.f32.mrb[0].mxu0
  %v1061 = vpop.f32.mrb[0].mxu0
  %1062 = vdwg.mxu0
  %1064 = vrot.lane.b32.xlu0 %v1058, 16
  %v1065 = vpop.permute.xlu0 %1064
  %v1067 = vadd.f32 %v976, %v1065
  %1068 = vmatprep.subr.bf16.mxu0 0
  %1069 = vmatpush1.bf16.msra.mxu0 %v128
  %1070 = vmatprep.subr.bf16.mxu0 0
  %1071 = vmatpush1.bf16.msra.mxu0 0
  %1072 = vmatprep.subr.bf16.mxu0 0
  %1073 = vmatpush1.bf16.msra.mxu0 0
  %1074 = vmatprep.subr.bf16.mxu0 0
  %1075 = vmatpush1.bf16.msra.mxu0 0
  %1076 = vmatprep.subr.bf16.mxu0 0
  %1077 = vmatpush1.bf16.msra.mxu0 0
  %1078 = vmatprep.subr.bf16.mxu0 0
  %1079 = vmatpush1.bf16.msra.mxu0 0
  %1080 = vmatprep.subr.bf16.mxu0 0
  %1081 = vmatpush1.bf16.msra.mxu0 0
  %1082 = vmatprep.subr.bf16.mxu0 0
  %1083 = vmatpush1.bf16.msra.mxu0 0
  %1084 = vmatprep.subr.bf16.mxu0 0
  %1085 = vmatpush1.bf16.msra.mxu0 0
  %1086 = vmatprep.subr.bf16.mxu0 0
  %1087 = vmatpush1.bf16.msra.mxu0 0
  %1088 = vmatprep.subr.bf16.mxu0 0
  %1089 = vmatpush1.bf16.msra.mxu0 0
  %1090 = vmatprep.subr.bf16.mxu0 0
  %1091 = vmatpush1.bf16.msra.mxu0 0
  %1092 = vmatprep.subr.bf16.mxu0 0
  %1093 = vmatpush1.bf16.msra.mxu0 0
  %1094 = vmatprep.subr.bf16.mxu0 0
  %1095 = vmatpush1.bf16.msra.mxu0 0
  %1096 = vmatprep.subr.bf16.mxu0 0
  %1097 = vmatpush1.bf16.msra.mxu0 0
  %1098 = vmatprep.subr.bf16.mxu0 0
  %1099 = vmatpush1.bf16.msra.mxu0 0
  %1100 = vmatprep.mubr.bf16.mxu0 0
  %1101 = vmatmul.mubr.bf16.gmra.mrb[0].mxu0 %v980
  %v1102 = vpop.f32.mrb[0].mxu0
  %v1103 = vadd.f32 0.0, %v1102
  %v1104 = vpop.f32.mrb[0].mxu0
  %v1105 = vpop.f32.mrb[0].mxu0
  %v1106 = vpop.f32.mrb[0].mxu0
  %1107 = vdwg.mxu0
  %1109 = vrot.lane.b32.xlu0 %v1103, 32
  %v1110 = vpop.permute.xlu0 %1109
  %v1112 = vadd.f32 %v976, %v1110
  %1113 = vmatprep.subr.bf16.mxu0 0
  %1114 = vmatpush1.bf16.msra.mxu0 %v176
  %1115 = vmatprep.subr.bf16.mxu0 0
  %1116 = vmatpush1.bf16.msra.mxu0 0
  %1117 = vmatprep.subr.bf16.mxu0 0
  %1118 = vmatpush1.bf16.msra.mxu0 0
  %1119 = vmatprep.subr.bf16.mxu0 0
  %1120 = vmatpush1.bf16.msra.mxu0 0
  %1121 = vmatprep.subr.bf16.mxu0 0
  %1122 = vmatpush1.bf16.msra.mxu0 0
  %1123 = vmatprep.subr.bf16.mxu0 0
  %1124 = vmatpush1.bf16.msra.mxu0 0
  %1125 = vmatprep.subr.bf16.mxu0 0
  %1126 = vmatpush1.bf16.msra.mxu0 0
  %1127 = vmatprep.subr.bf16.mxu0 0
  %1128 = vmatpush1.bf16.msra.mxu0 0
  %1129 = vmatprep.subr.bf16.mxu0 0
  %1130 = vmatpush1.bf16.msra.mxu0 0
  %1131 = vmatprep.subr.bf16.mxu0 0
  %1132 = vmatpush1.bf16.msra.mxu0 0
  %1133 = vmatprep.subr.bf16.mxu0 0
  %1134 = vmatpush1.bf16.msra.mxu0 0
  %1135 = vmatprep.subr.bf16.mxu0 0
  %1136 = vmatpush1.bf16.msra.mxu0 0
  %1137 = vmatprep.subr.bf16.mxu0 0
  %1138 = vmatpush1.bf16.msra.mxu0 0
  %1139 = vmatprep.subr.bf16.mxu0 0
  %1140 = vmatpush1.bf16.msra.mxu0 0
  %1141 = vmatprep.subr.bf16.mxu0 0
  %1142 = vmatpush1.bf16.msra.mxu0 0
  %1143 = vmatprep.subr.bf16.mxu0 0
  %1144 = vmatpush1.bf16.msra.mxu0 0
  %1145 = vmatprep.mubr.bf16.mxu0 0
  %1146 = vmatmul.mubr.bf16.gmra.mrb[0].mxu0 %v980
  %v1147 = vpop.f32.mrb[0].mxu0
  %v1148 = vadd.f32 0.0, %v1147
  %v1149 = vpop.f32.mrb[0].mxu0
  %v1150 = vpop.f32.mrb[0].mxu0
  %v1151 = vpop.f32.mrb[0].mxu0
  %1152 = vdwg.mxu0
  %1154 = vrot.lane.b32.xlu0 %v1148, 48
  %v1155 = vpop.permute.xlu0 %1154
  %v1157 = vadd.f32 %v976, %v1155
  %v1158 = vmul.f32 %v1022, 0.5
  %v1159 = vtanh.pop %v1158
  %v1160 = vadd.f32 %v1159, 1.0
  %v1161 = vmul.f32 %v1160, 0.5
  %v1162 = vmul.f32 %v1067, 0.5
  %v1163 = vtanh.pop %v1162
  %v1164 = vadd.f32 %v1163, 1.0
  %v1165 = vmul.f32 %v1164, 0.5
  %v1166 = vtanh.pop %v1112
  %v1167 = vmul.f32 %v1157, 0.5
  %v1168 = vtanh.pop %v1167
  %v1169 = vadd.f32 %v1168, 1.0
  %v1170 = vmul.f32 %v1169, 0.5
  %v1171 = vld [vmem:[#allocation3] sm:$0xf]
  %1173 = vrot.lane.b32.xlu0 %v1171, 16
  %v1174 = vpop.permute.xlu0 %1173
  %v1176 = vmul.f32 %v1165, %v1174
  %1178 = vrot.lane.b32.xlu0 %v1166, 96
  %v1179 = vpop.permute.xlu0 %1178
  %v1181 = vmul.f32 %v1161, %v1179
  %1183 = vrot.lane.b32.xlu0 %v1181, 16
  %v1184 = vpop.permute.xlu0 %1183
  %v1186 = vadd.f32 %v1176, %v1184
  %v1187 = vtanh.pop %v1186
  %1189 = vrot.lane.b32.xlu0 %v1187, 32
  %v1190 = vpop.permute.xlu0 %1189
  %v1192 = vmul.f32 %v1170, %v1190
  %1194 = vrot.lane.b32.xlu0 %v1186, 112
  %v1195 = vpop.permute.xlu0 %1194
  %1197 = vst.msk [vmem:[#allocation3] sm:$0xf] %vm262, %v1195
  %1199 = vrot.lane.b32.xlu0 %v1192, 80
  %v1200 = vpop.permute.xlu0 %1199
  %1202 = vst.msk [vmem:[#allocation2] sm:$0xf] %vm262, %v1200
  %s1203 = scalar_lea.vmem %s1, 16
  %v1204 = vld [vmem:[%s1203] sm:$0xf]
  %v1205 = vadd.f32 %v1204, %v1200
  %s1206 = scalar_lea.vmem %s3, 16
  %1207 = vst.msk [vmem:[%s1206] sm:$0xf] %vm262, %v1205
  %s1208 = scalar_lea.vmem %s0, 10
  %v1209 = vld [vmem:[%s1208] sm:$0x3]
  %v1210 = vunpack.c.l.bf16 %v1209
  %v1211 = vld [vmem:[#allocation2] sm:$0xf]
  %v1212 = vpack.c.bf16 %v1211, %v1211
  %v1214 = vsel %vm34, %v1212, 0
  %1216 = vmatprep.subr.bf16.mxu0 0
  %1217 = vmatpush1.bf16.msra.mxu0 %v32
  %1218 = vmatprep.subr.bf16.mxu0 0
  %1219 = vmatpush1.bf16.msra.mxu0 0
  %1220 = vmatprep.subr.bf16.mxu0 0
  %1221 = vmatpush1.bf16.msra.mxu0 0
  %1222 = vmatprep.subr.bf16.mxu0 0
  %1223 = vmatpush1.bf16.msra.mxu0 0
  %1224 = vmatprep.subr.bf16.mxu0 0
  %1225 = vmatpush1.bf16.msra.mxu0 0
  %1226 = vmatprep.subr.bf16.mxu0 0
  %1227 = vmatpush1.bf16.msra.mxu0 0
  %1228 = vmatprep.subr.bf16.mxu0 0
  %1229 = vmatpush1.bf16.msra.mxu0 0
  %1230 = vmatprep.subr.bf16.mxu0 0
  %1231 = vmatpush1.bf16.msra.mxu0 0
  %1232 = vmatprep.subr.bf16.mxu0 0
  %1233 = vmatpush1.bf16.msra.mxu0 0
  %1234 = vmatprep.subr.bf16.mxu0 0
  %1235 = vmatpush1.bf16.msra.mxu0 0
  %1236 = vmatprep.subr.bf16.mxu0 0
  %1237 = vmatpush1.bf16.msra.mxu0 0
  %1238 = vmatprep.subr.bf16.mxu0 0
  %1239 = vmatpush1.bf16.msra.mxu0 0
  %1240 = vmatprep.subr.bf16.mxu0 0
  %1241 = vmatpush1.bf16.msra.mxu0 0
  %1242 = vmatprep.subr.bf16.mxu0 0
  %1243 = vmatpush1.bf16.msra.mxu0 0
  %1244 = vmatprep.subr.bf16.mxu0 0
  %1245 = vmatpush1.bf16.msra.mxu0 0
  %1246 = vmatprep.subr.bf16.mxu0 0
  %1247 = vmatpush1.bf16.msra.mxu0 0
  %1248 = vmatprep.mubr.bf16.mxu0 0
  %1249 = vmatmul.mubr.bf16.gmra.mrb[0].mxu0 %v1214
  %v1250 = vpop.f32.mrb[0].mxu0
  %v1251 = vadd.f32 0.0, %v1250
  %v1252 = vpop.f32.mrb[0].mxu0
  %v1253 = vpop.f32.mrb[0].mxu0
  %v1254 = vpop.f32.mrb[0].mxu0
  %1255 = vdwg.mxu0
  %v1256 = vadd.f32 %v1210, %v1251
  %1257 = vmatprep.subr.bf16.mxu0 0
  %1258 = vmatpush1.bf16.msra.mxu0 %v80
  %1259 = vmatprep.subr.bf16.mxu0 0
  %1260 = vmatpush1.bf16.msra.mxu0 0
  %1261 = vmatprep.subr.bf16.mxu0 0
  %1262 = vmatpush1.bf16.msra.mxu0 0
  %1263 = vmatprep.subr.bf16.mxu0 0
  %1264 = vmatpush1.bf16.msra.mxu0 0
  %1265 = vmatprep.subr.bf16.mxu0 0
  %1266 = vmatpush1.bf16.msra.mxu0 0
  %1267 = vmatprep.subr.bf16.mxu0 0
  %1268 = vmatpush1.bf16.msra.mxu0 0
  %1269 = vmatprep.subr.bf16.mxu0 0
  %1270 = vmatpush1.bf16.msra.mxu0 0
  %1271 = vmatprep.subr.bf16.mxu0 0
  %1272 = vmatpush1.bf16.msra.mxu0 0
  %1273 = vmatprep.subr.bf16.mxu0 0
  %1274 = vmatpush1.bf16.msra.mxu0 0
  %1275 = vmatprep.subr.bf16.mxu0 0
  %1276 = vmatpush1.bf16.msra.mxu0 0
  %1277 = vmatprep.subr.bf16.mxu0 0
  %1278 = vmatpush1.bf16.msra.mxu0 0
  %1279 = vmatprep.subr.bf16.mxu0 0
  %1280 = vmatpush1.bf16.msra.mxu0 0
  %1281 = vmatprep.subr.bf16.mxu0 0
  %1282 = vmatpush1.bf16.msra.mxu0 0
  %1283 = vmatprep.subr.bf16.mxu0 0
  %1284 = vmatpush1.bf16.msra.mxu0 0
  %1285 = vmatprep.subr.bf16.mxu0 0
  %1286 = vmatpush1.bf16.msra.mxu0 0
  %1287 = vmatprep.subr.bf16.mxu0 0
  %1288 = vmatpush1.bf16.msra.mxu0 0
  %1289 = vmatprep.mubr.bf16.mxu0 0
  %1290 = vmatmul.mubr.bf16.gmra.mrb[0].mxu0 %v1214
  %v1291 = vpop.f32.mrb[0].mxu0
  %v1292 = vadd.f32 0.0, %v1291
  %v1293 = vpop.f32.mrb[0].mxu0
  %v1294 = vpop.f32.mrb[0].mxu0
  %v1295 = vpop.f32.mrb[0].mxu0
  %1296 = vdwg.mxu0
  %1298 = vrot.lane.b32.xlu0 %v1292, 16
  %v1299 = vpop.permute.xlu0 %1298
  %v1301 = vadd.f32 %v1210, %v1299
  %1302 = vmatprep.subr.bf16.mxu0 0
  %1303 = vmatpush1.bf16.msra.mxu0 %v128
  %1304 = vmatprep.subr.bf16.mxu0 0
  %1305 = vmatpush1.bf16.msra.mxu0 0
  %1306 = vmatprep.subr.bf16.mxu0 0
  %1307 = vmatpush1.bf16.msra.mxu0 0
  %1308 = vmatprep.subr.bf16.mxu0 0
  %1309 = vmatpush1.bf16.msra.mxu0 0
  %1310 = vmatprep.subr.bf16.mxu0 0
  %1311 = vmatpush1.bf16.msra.mxu0 0
  %1312 = vmatprep.subr.bf16.mxu0 0
  %1313 = vmatpush1.bf16.msra.mxu0 0
  %1314 = vmatprep.subr.bf16.mxu0 0
  %1315 = vmatpush1.bf16.msra.mxu0 0
  %1316 = vmatprep.subr.bf16.mxu0 0
  %1317 = vmatpush1.bf16.msra.mxu0 0
  %1318 = vmatprep.subr.bf16.mxu0 0
  %1319 = vmatpush1.bf16.msra.mxu0 0
  %1320 = vmatprep.subr.bf16.mxu0 0
  %1321 = vmatpush1.bf16.msra.mxu0 0
  %1322 = vmatprep.subr.bf16.mxu0 0
  %1323 = vmatpush1.bf16.msra.mxu0 0
  %1324 = vmatprep.subr.bf16.mxu0 0
  %1325 = vmatpush1.bf16.msra.mxu0 0
  %1326 = vmatprep.subr.bf16.mxu0 0
  %1327 = vmatpush1.bf16.msra.mxu0 0
  %1328 = vmatprep.subr.bf16.mxu0 0
  %1329 = vmatpush1.bf16.msra.mxu0 0
  %1330 = vmatprep.subr.bf16.mxu0 0
  %1331 = vmatpush1.bf16.msra.mxu0 0
  %1332 = vmatprep.subr.bf16.mxu0 0
  %1333 = vmatpush1.bf16.msra.mxu0 0
  %1334 = vmatprep.mubr.bf16.mxu0 0
  %1335 = vmatmul.mubr.bf16.gmra.mrb[0].mxu0 %v1214
  %v1336 = vpop.f32.mrb[0].mxu0
  %v1337 = vadd.f32 0.0, %v1336
  %v1338 = vpop.f32.mrb[0].mxu0
  %v1339 = vpop.f32.mrb[0].mxu0
  %v1340 = vpop.f32.mrb[0].mxu0
  %1341 = vdwg.mxu0
  %1343 = vrot.lane.b32.xlu0 %v1337, 32
  %v1344 = vpop.permute.xlu0 %1343
  %v1346 = vadd.f32 %v1210, %v1344
  %1347 = vmatprep.subr.bf16.mxu0 0
  %1348 = vmatpush1.bf16.msra.mxu0 %v176
  %1349 = vmatprep.subr.bf16.mxu0 0
  %1350 = vmatpush1.bf16.msra.mxu0 0
  %1351 = vmatprep.subr.bf16.mxu0 0
  %1352 = vmatpush1.bf16.msra.mxu0 0
  %1353 = vmatprep.subr.bf16.mxu0 0
  %1354 = vmatpush1.bf16.msra.mxu0 0
  %1355 = vmatprep.subr.bf16.mxu0 0
  %1356 = vmatpush1.bf16.msra.mxu0 0
  %1357 = vmatprep.subr.bf16.mxu0 0
  %1358 = vmatpush1.bf16.msra.mxu0 0
  %1359 = vmatprep.subr.bf16.mxu0 0
  %1360 = vmatpush1.bf16.msra.mxu0 0
  %1361 = vmatprep.subr.bf16.mxu0 0
  %1362 = vmatpush1.bf16.msra.mxu0 0
  %1363 = vmatprep.subr.bf16.mxu0 0
  %1364 = vmatpush1.bf16.msra.mxu0 0
  %1365 = vmatprep.subr.bf16.mxu0 0
  %1366 = vmatpush1.bf16.msra.mxu0 0
  %1367 = vmatprep.subr.bf16.mxu0 0
  %1368 = vmatpush1.bf16.msra.mxu0 0
  %1369 = vmatprep.subr.bf16.mxu0 0
  %1370 = vmatpush1.bf16.msra.mxu0 0
  %1371 = vmatprep.subr.bf16.mxu0 0
  %1372 = vmatpush1.bf16.msra.mxu0 0
  %1373 = vmatprep.subr.bf16.mxu0 0
  %1374 = vmatpush1.bf16.msra.mxu0 0
  %1375 = vmatprep.subr.bf16.mxu0 0
  %1376 = vmatpush1.bf16.msra.mxu0 0
  %1377 = vmatprep.subr.bf16.mxu0 0
  %1378 = vmatpush1.bf16.msra.mxu0 0
  %1379 = vmatprep.mubr.bf16.mxu0 0
  %1380 = vmatmul.mubr.bf16.gmra.mrb[0].mxu0 %v1214
  %v1381 = vpop.f32.mrb[0].mxu0
  %v1382 = vadd.f32 0.0, %v1381
  %v1383 = vpop.f32.mrb[0].mxu0
  %v1384 = vpop.f32.mrb[0].mxu0
  %v1385 = vpop.f32.mrb[0].mxu0
  %1386 = vdwg.mxu0
  %1388 = vrot.lane.b32.xlu0 %v1382, 48
  %v1389 = vpop.permute.xlu0 %1388
  %v1391 = vadd.f32 %v1210, %v1389
  %v1392 = vmul.f32 %v1256, 0.5
  %v1393 = vtanh.pop %v1392
  %v1394 = vadd.f32 %v1393, 1.0
  %v1395 = vmul.f32 %v1394, 0.5
  %v1396 = vmul.f32 %v1301, 0.5
  %v1397 = vtanh.pop %v1396
  %v1398 = vadd.f32 %v1397, 1.0
  %v1399 = vmul.f32 %v1398, 0.5
  %v1400 = vtanh.pop %v1346
  %v1401 = vmul.f32 %v1391, 0.5
  %v1402 = vtanh.pop %v1401
  %v1403 = vadd.f32 %v1402, 1.0
  %v1404 = vmul.f32 %v1403, 0.5
  %v1405 = vld [vmem:[#allocation3] sm:$0xf]
  %1407 = vrot.lane.b32.xlu0 %v1405, 16
  %v1408 = vpop.permute.xlu0 %1407
  %v1410 = vmul.f32 %v1399, %v1408
  %1412 = vrot.lane.b32.xlu0 %v1400, 96
  %v1413 = vpop.permute.xlu0 %1412
  %v1415 = vmul.f32 %v1395, %v1413
  %1417 = vrot.lane.b32.xlu0 %v1415, 16
  %v1418 = vpop.permute.xlu0 %1417
  %v1420 = vadd.f32 %v1410, %v1418
  %v1421 = vtanh.pop %v1420
  %1423 = vrot.lane.b32.xlu0 %v1421, 32
  %v1424 = vpop.permute.xlu0 %1423
  %v1426 = vmul.f32 %v1404, %v1424
  %1428 = vrot.lane.b32.xlu0 %v1420, 112
  %v1429 = vpop.permute.xlu0 %1428
  %1431 = vst.msk [vmem:[#allocation3] sm:$0xf] %vm262, %v1429
  %1433 = vrot.lane.b32.xlu0 %v1426, 80
  %v1434 = vpop.permute.xlu0 %1433
  %1436 = vst.msk [vmem:[#allocation2] sm:$0xf] %vm262, %v1434
  %s1437 = scalar_lea.vmem %s1, 20
  %v1438 = vld [vmem:[%s1437] sm:$0xf]
  %v1439 = vadd.f32 %v1438, %v1434
  %s1440 = scalar_lea.vmem %s3, 20
  %1441 = vst.msk [vmem:[%s1440] sm:$0xf] %vm262, %v1439
  %s1442 = scalar_lea.vmem %s0, 12
  %v1443 = vld [vmem:[%s1442] sm:$0x3]
  %v1444 = vunpack.c.l.bf16 %v1443
  %v1445 = vld [vmem:[#allocation2] sm:$0xf]
  %v1446 = vpack.c.bf16 %v1445, %v1445
  %v1448 = vsel %vm34, %v1446, 0
  %1450 = vmatprep.subr.bf16.mxu0 0
  %1451 = vmatpush1.bf16.msra.mxu0 %v32
  %1452 = vmatprep.subr.bf16.mxu0 0
  %1453 = vmatpush1.bf16.msra.mxu0 0
  %1454 = vmatprep.subr.bf16.mxu0 0
  %1455 = vmatpush1.bf16.msra.mxu0 0
  %1456 = vmatprep.subr.bf16.mxu0 0
  %1457 = vmatpush1.bf16.msra.mxu0 0
  %1458 = vmatprep.subr.bf16.mxu0 0
  %1459 = vmatpush1.bf16.msra.mxu0 0
  %1460 = vmatprep.subr.bf16.mxu0 0
  %1461 = vmatpush1.bf16.msra.mxu0 0
  %1462 = vmatprep.subr.bf16.mxu0 0
  %1463 = vmatpush1.bf16.msra.mxu0 0
  %1464 = vmatprep.subr.bf16.mxu0 0
  %1465 = vmatpush1.bf16.msra.mxu0 0
  %1466 = vmatprep.subr.bf16.mxu0 0
  %1467 = vmatpush1.bf16.msra.mxu0 0
  %1468 = vmatprep.subr.bf16.mxu0 0
  %1469 = vmatpush1.bf16.msra.mxu0 0
  %1470 = vmatprep.subr.bf16.mxu0 0
  %1471 = vmatpush1.bf16.msra.mxu0 0
  %1472 = vmatprep.subr.bf16.mxu0 0
  %1473 = vmatpush1.bf16.msra.mxu0 0
  %1474 = vmatprep.subr.bf16.mxu0 0
  %1475 = vmatpush1.bf16.msra.mxu0 0
  %1476 = vmatprep.subr.bf16.mxu0 0
  %1477 = vmatpush1.bf16.msra.mxu0 0
  %1478 = vmatprep.subr.bf16.mxu0 0
  %1479 = vmatpush1.bf16.msra.mxu0 0
  %1480 = vmatprep.subr.bf16.mxu0 0
  %1481 = vmatpush1.bf16.msra.mxu0 0
  %1482 = vmatprep.mubr.bf16.mxu0 0
  %1483 = vmatmul.mubr.bf16.gmra.mrb[0].mxu0 %v1448
  %v1484 = vpop.f32.mrb[0].mxu0
  %v1485 = vadd.f32 0.0, %v1484
  %v1486 = vpop.f32.mrb[0].mxu0
  %v1487 = vpop.f32.mrb[0].mxu0
  %v1488 = vpop.f32.mrb[0].mxu0
  %1489 = vdwg.mxu0
  %v1490 = vadd.f32 %v1444, %v1485
  %1491 = vmatprep.subr.bf16.mxu0 0
  %1492 = vmatpush1.bf16.msra.mxu0 %v80
  %1493 = vmatprep.subr.bf16.mxu0 0
  %1494 = vmatpush1.bf16.msra.mxu0 0
  %1495 = vmatprep.subr.bf16.mxu0 0
  %1496 = vmatpush1.bf16.msra.mxu0 0
  %1497 = vmatprep.subr.bf16.mxu0 0
  %1498 = vmatpush1.bf16.msra.mxu0 0
  %1499 = vmatprep.subr.bf16.mxu0 0
  %1500 = vmatpush1.bf16.msra.mxu0 0
  %1501 = vmatprep.subr.bf16.mxu0 0
  %1502 = vmatpush1.bf16.msra.mxu0 0
  %1503 = vmatprep.subr.bf16.mxu0 0
  %1504 = vmatpush1.bf16.msra.mxu0 0
  %1505 = vmatprep.subr.bf16.mxu0 0
  %1506 = vmatpush1.bf16.msra.mxu0 0
  %1507 = vmatprep.subr.bf16.mxu0 0
  %1508 = vmatpush1.bf16.msra.mxu0 0
  %1509 = vmatprep.subr.bf16.mxu0 0
  %1510 = vmatpush1.bf16.msra.mxu0 0
  %1511 = vmatprep.subr.bf16.mxu0 0
  %1512 = vmatpush1.bf16.msra.mxu0 0
  %1513 = vmatprep.subr.bf16.mxu0 0
  %1514 = vmatpush1.bf16.msra.mxu0 0
  %1515 = vmatprep.subr.bf16.mxu0 0
  %1516 = vmatpush1.bf16.msra.mxu0 0
  %1517 = vmatprep.subr.bf16.mxu0 0
  %1518 = vmatpush1.bf16.msra.mxu0 0
  %1519 = vmatprep.subr.bf16.mxu0 0
  %1520 = vmatpush1.bf16.msra.mxu0 0
  %1521 = vmatprep.subr.bf16.mxu0 0
  %1522 = vmatpush1.bf16.msra.mxu0 0
  %1523 = vmatprep.mubr.bf16.mxu0 0
  %1524 = vmatmul.mubr.bf16.gmra.mrb[0].mxu0 %v1448
  %v1525 = vpop.f32.mrb[0].mxu0
  %v1526 = vadd.f32 0.0, %v1525
  %v1527 = vpop.f32.mrb[0].mxu0
  %v1528 = vpop.f32.mrb[0].mxu0
  %v1529 = vpop.f32.mrb[0].mxu0
  %1530 = vdwg.mxu0
  %1532 = vrot.lane.b32.xlu0 %v1526, 16
  %v1533 = vpop.permute.xlu0 %1532
  %v1535 = vadd.f32 %v1444, %v1533
  %1536 = vmatprep.subr.bf16.mxu0 0
  %1537 = vmatpush1.bf16.msra.mxu0 %v128
  %1538 = vmatprep.subr.bf16.mxu0 0
  %1539 = vmatpush1.bf16.msra.mxu0 0
  %1540 = vmatprep.subr.bf16.mxu0 0
  %1541 = vmatpush1.bf16.msra.mxu0 0
  %1542 = vmatprep.subr.bf16.mxu0 0
  %1543 = vmatpush1.bf16.msra.mxu0 0
  %1544 = vmatprep.subr.bf16.mxu0 0
  %1545 = vmatpush1.bf16.msra.mxu0 0
  %1546 = vmatprep.subr.bf16.mxu0 0
  %1547 = vmatpush1.bf16.msra.mxu0 0
  %1548 = vmatprep.subr.bf16.mxu0 0
  %1549 = vmatpush1.bf16.msra.mxu0 0
  %1550 = vmatprep.subr.bf16.mxu0 0
  %1551 = vmatpush1.bf16.msra.mxu0 0
  %1552 = vmatprep.subr.bf16.mxu0 0
  %1553 = vmatpush1.bf16.msra.mxu0 0
  %1554 = vmatprep.subr.bf16.mxu0 0
  %1555 = vmatpush1.bf16.msra.mxu0 0
  %1556 = vmatprep.subr.bf16.mxu0 0
  %1557 = vmatpush1.bf16.msra.mxu0 0
  %1558 = vmatprep.subr.bf16.mxu0 0
  %1559 = vmatpush1.bf16.msra.mxu0 0
  %1560 = vmatprep.subr.bf16.mxu0 0
  %1561 = vmatpush1.bf16.msra.mxu0 0
  %1562 = vmatprep.subr.bf16.mxu0 0
  %1563 = vmatpush1.bf16.msra.mxu0 0
  %1564 = vmatprep.subr.bf16.mxu0 0
  %1565 = vmatpush1.bf16.msra.mxu0 0
  %1566 = vmatprep.subr.bf16.mxu0 0
  %1567 = vmatpush1.bf16.msra.mxu0 0
  %1568 = vmatprep.mubr.bf16.mxu0 0
  %1569 = vmatmul.mubr.bf16.gmra.mrb[0].mxu0 %v1448
  %v1570 = vpop.f32.mrb[0].mxu0
  %v1571 = vadd.f32 0.0, %v1570
  %v1572 = vpop.f32.mrb[0].mxu0
  %v1573 = vpop.f32.mrb[0].mxu0
  %v1574 = vpop.f32.mrb[0].mxu0
  %1575 = vdwg.mxu0
  %1577 = vrot.lane.b32.xlu0 %v1571, 32
  %v1578 = vpop.permute.xlu0 %1577
  %v1580 = vadd.f32 %v1444, %v1578
  %1581 = vmatprep.subr.bf16.mxu0 0
  %1582 = vmatpush1.bf16.msra.mxu0 %v176
  %1583 = vmatprep.subr.bf16.mxu0 0
  %1584 = vmatpush1.bf16.msra.mxu0 0
  %1585 = vmatprep.subr.bf16.mxu0 0
  %1586 = vmatpush1.bf16.msra.mxu0 0
  %1587 = vmatprep.subr.bf16.mxu0 0
  %1588 = vmatpush1.bf16.msra.mxu0 0
  %1589 = vmatprep.subr.bf16.mxu0 0
  %1590 = vmatpush1.bf16.msra.mxu0 0
  %1591 = vmatprep.subr.bf16.mxu0 0
  %1592 = vmatpush1.bf16.msra.mxu0 0
  %1593 = vmatprep.subr.bf16.mxu0 0
  %1594 = vmatpush1.bf16.msra.mxu0 0
  %1595 = vmatprep.subr.bf16.mxu0 0
  %1596 = vmatpush1.bf16.msra.mxu0 0
  %1597 = vmatprep.subr.bf16.mxu0 0
  %1598 = vmatpush1.bf16.msra.mxu0 0
  %1599 = vmatprep.subr.bf16.mxu0 0
  %1600 = vmatpush1.bf16.msra.mxu0 0
  %1601 = vmatprep.subr.bf16.mxu0 0
  %1602 = vmatpush1.bf16.msra.mxu0 0
  %1603 = vmatprep.subr.bf16.mxu0 0
  %1604 = vmatpush1.bf16.msra.mxu0 0
  %1605 = vmatprep.subr.bf16.mxu0 0
  %1606 = vmatpush1.bf16.msra.mxu0 0
  %1607 = vmatprep.subr.bf16.mxu0 0
  %1608 = vmatpush1.bf16.msra.mxu0 0
  %1609 = vmatprep.subr.bf16.mxu0 0
  %1610 = vmatpush1.bf16.msra.mxu0 0
  %1611 = vmatprep.subr.bf16.mxu0 0
  %1612 = vmatpush1.bf16.msra.mxu0 0
  %1613 = vmatprep.mubr.bf16.mxu0 0
  %1614 = vmatmul.mubr.bf16.gmra.mrb[0].mxu0 %v1448
  %v1615 = vpop.f32.mrb[0].mxu0
  %v1616 = vadd.f32 0.0, %v1615
  %v1617 = vpop.f32.mrb[0].mxu0
  %v1618 = vpop.f32.mrb[0].mxu0
  %v1619 = vpop.f32.mrb[0].mxu0
  %1620 = vdwg.mxu0
  %1622 = vrot.lane.b32.xlu0 %v1616, 48
  %v1623 = vpop.permute.xlu0 %1622
  %v1625 = vadd.f32 %v1444, %v1623
  %v1626 = vmul.f32 %v1490, 0.5
  %v1627 = vtanh.pop %v1626
  %v1628 = vadd.f32 %v1627, 1.0
  %v1629 = vmul.f32 %v1628, 0.5
  %v1630 = vmul.f32 %v1535, 0.5
  %v1631 = vtanh.pop %v1630
  %v1632 = vadd.f32 %v1631, 1.0
  %v1633 = vmul.f32 %v1632, 0.5
  %v1634 = vtanh.pop %v1580
  %v1635 = vmul.f32 %v1625, 0.5
  %v1636 = vtanh.pop %v1635
  %v1637 = vadd.f32 %v1636, 1.0
  %v1638 = vmul.f32 %v1637, 0.5
  %v1639 = vld [vmem:[#allocation3] sm:$0xf]
  %1641 = vrot.lane.b32.xlu0 %v1639, 16
  %v1642 = vpop.permute.xlu0 %1641
  %v1644 = vmul.f32 %v1633, %v1642
  %1646 = vrot.lane.b32.xlu0 %v1634, 96
  %v1647 = vpop.permute.xlu0 %1646
  %v1649 = vmul.f32 %v1629, %v1647
  %1651 = vrot.lane.b32.xlu0 %v1649, 16
  %v1652 = vpop.permute.xlu0 %1651
  %v1654 = vadd.f32 %v1644, %v1652
  %v1655 = vtanh.pop %v1654
  %1657 = vrot.lane.b32.xlu0 %v1655, 32
  %v1658 = vpop.permute.xlu0 %1657
  %v1660 = vmul.f32 %v1638, %v1658
  %1662 = vrot.lane.b32.xlu0 %v1654, 112
  %v1663 = vpop.permute.xlu0 %1662
  %1665 = vst.msk [vmem:[#allocation3] sm:$0xf] %vm262, %v1663
  %1667 = vrot.lane.b32.xlu0 %v1660, 80
  %v1668 = vpop.permute.xlu0 %1667
  %1670 = vst.msk [vmem:[#allocation2] sm:$0xf] %vm262, %v1668
  %s1671 = scalar_lea.vmem %s1, 24
  %v1672 = vld [vmem:[%s1671] sm:$0xf]
  %v1673 = vadd.f32 %v1672, %v1668
  %s1674 = scalar_lea.vmem %s3, 24
  %1675 = vst.msk [vmem:[%s1674] sm:$0xf] %vm262, %v1673
  %s1676 = scalar_lea.vmem %s0, 14
  %v1677 = vld [vmem:[%s1676] sm:$0x3]
  %v1678 = vunpack.c.l.bf16 %v1677
  %v1679 = vld [vmem:[#allocation2] sm:$0xf]
  %v1680 = vpack.c.bf16 %v1679, %v1679
  %v1682 = vsel %vm34, %v1680, 0
  %1684 = vmatprep.subr.bf16.mxu0 0
  %1685 = vmatpush1.bf16.msra.mxu0 %v32
  %1686 = vmatprep.subr.bf16.mxu0 0
  %1687 = vmatpush1.bf16.msra.mxu0 0
  %1688 = vmatprep.subr.bf16.mxu0 0
  %1689 = vmatpush1.bf16.msra.mxu0 0
  %1690 = vmatprep.subr.bf16.mxu0 0
  %1691 = vmatpush1.bf16.msra.mxu0 0
  %1692 = vmatprep.subr.bf16.mxu0 0
  %1693 = vmatpush1.bf16.msra.mxu0 0
  %1694 = vmatprep.subr.bf16.mxu0 0
  %1695 = vmatpush1.bf16.msra.mxu0 0
  %1696 = vmatprep.subr.bf16.mxu0 0
  %1697 = vmatpush1.bf16.msra.mxu0 0
  %1698 = vmatprep.subr.bf16.mxu0 0
  %1699 = vmatpush1.bf16.msra.mxu0 0
  %1700 = vmatprep.subr.bf16.mxu0 0
  %1701 = vmatpush1.bf16.msra.mxu0 0
  %1702 = vmatprep.subr.bf16.mxu0 0
  %1703 = vmatpush1.bf16.msra.mxu0 0
  %1704 = vmatprep.subr.bf16.mxu0 0
  %1705 = vmatpush1.bf16.msra.mxu0 0
  %1706 = vmatprep.subr.bf16.mxu0 0
  %1707 = vmatpush1.bf16.msra.mxu0 0
  %1708 = vmatprep.subr.bf16.mxu0 0
  %1709 = vmatpush1.bf16.msra.mxu0 0
  %1710 = vmatprep.subr.bf16.mxu0 0
  %1711 = vmatpush1.bf16.msra.mxu0 0
  %1712 = vmatprep.subr.bf16.mxu0 0
  %1713 = vmatpush1.bf16.msra.mxu0 0
  %1714 = vmatprep.subr.bf16.mxu0 0
  %1715 = vmatpush1.bf16.msra.mxu0 0
  %1716 = vmatprep.mubr.bf16.mxu0 0
  %1717 = vmatmul.mubr.bf16.gmra.mrb[0].mxu0 %v1682
  %v1718 = vpop.f32.mrb[0].mxu0
  %v1719 = vadd.f32 0.0, %v1718
  %v1720 = vpop.f32.mrb[0].mxu0
  %v1721 = vpop.f32.mrb[0].mxu0
  %v1722 = vpop.f32.mrb[0].mxu0
  %1723 = vdwg.mxu0
  %v1724 = vadd.f32 %v1678, %v1719
  %1725 = vmatprep.subr.bf16.mxu0 0
  %1726 = vmatpush1.bf16.msra.mxu0 %v80
  %1727 = vmatprep.subr.bf16.mxu0 0
  %1728 = vmatpush1.bf16.msra.mxu0 0
  %1729 = vmatprep.subr.bf16.mxu0 0
  %1730 = vmatpush1.bf16.msra.mxu0 0
  %1731 = vmatprep.subr.bf16.mxu0 0
  %1732 = vmatpush1.bf16.msra.mxu0 0
  %1733 = vmatprep.subr.bf16.mxu0 0
  %1734 = vmatpush1.bf16.msra.mxu0 0
  %1735 = vmatprep.subr.bf16.mxu0 0
  %1736 = vmatpush1.bf16.msra.mxu0 0
  %1737 = vmatprep.subr.bf16.mxu0 0
  %1738 = vmatpush1.bf16.msra.mxu0 0
  %1739 = vmatprep.subr.bf16.mxu0 0
  %1740 = vmatpush1.bf16.msra.mxu0 0
  %1741 = vmatprep.subr.bf16.mxu0 0
  %1742 = vmatpush1.bf16.msra.mxu0 0
  %1743 = vmatprep.subr.bf16.mxu0 0
  %1744 = vmatpush1.bf16.msra.mxu0 0
  %1745 = vmatprep.subr.bf16.mxu0 0
  %1746 = vmatpush1.bf16.msra.mxu0 0
  %1747 = vmatprep.subr.bf16.mxu0 0
  %1748 = vmatpush1.bf16.msra.mxu0 0
  %1749 = vmatprep.subr.bf16.mxu0 0
  %1750 = vmatpush1.bf16.msra.mxu0 0
  %1751 = vmatprep.subr.bf16.mxu0 0
  %1752 = vmatpush1.bf16.msra.mxu0 0
  %1753 = vmatprep.subr.bf16.mxu0 0
  %1754 = vmatpush1.bf16.msra.mxu0 0
  %1755 = vmatprep.subr.bf16.mxu0 0
  %1756 = vmatpush1.bf16.msra.mxu0 0
  %1757 = vmatprep.mubr.bf16.mxu0 0
  %1758 = vmatmul.mubr.bf16.gmra.mrb[0].mxu0 %v1682
  %v1759 = vpop.f32.mrb[0].mxu0
  %v1760 = vadd.f32 0.0, %v1759
  %v1761 = vpop.f32.mrb[0].mxu0
  %v1762 = vpop.f32.mrb[0].mxu0
  %v1763 = vpop.f32.mrb[0].mxu0
  %1764 = vdwg.mxu0
  %1766 = vrot.lane.b32.xlu0 %v1760, 16
  %v1767 = vpop.permute.xlu0 %1766
  %v1769 = vadd.f32 %v1678, %v1767
  %1770 = vmatprep.subr.bf16.mxu0 0
  %1771 = vmatpush1.bf16.msra.mxu0 %v128
  %1772 = vmatprep.subr.bf16.mxu0 0
  %1773 = vmatpush1.bf16.msra.mxu0 0
  %1774 = vmatprep.subr.bf16.mxu0 0
  %1775 = vmatpush1.bf16.msra.mxu0 0
  %1776 = vmatprep.subr.bf16.mxu0 0
  %1777 = vmatpush1.bf16.msra.mxu0 0
  %1778 = vmatprep.subr.bf16.mxu0 0
  %1779 = vmatpush1.bf16.msra.mxu0 0
  %1780 = vmatprep.subr.bf16.mxu0 0
  %1781 = vmatpush1.bf16.msra.mxu0 0
  %1782 = vmatprep.subr.bf16.mxu0 0
  %1783 = vmatpush1.bf16.msra.mxu0 0
  %1784 = vmatprep.subr.bf16.mxu0 0
  %1785 = vmatpush1.bf16.msra.mxu0 0
  %1786 = vmatprep.subr.bf16.mxu0 0
  %1787 = vmatpush1.bf16.msra.mxu0 0
  %1788 = vmatprep.subr.bf16.mxu0 0
  %1789 = vmatpush1.bf16.msra.mxu0 0
  %1790 = vmatprep.subr.bf16.mxu0 0
  %1791 = vmatpush1.bf16.msra.mxu0 0
  %1792 = vmatprep.subr.bf16.mxu0 0
  %1793 = vmatpush1.bf16.msra.mxu0 0
  %1794 = vmatprep.subr.bf16.mxu0 0
  %1795 = vmatpush1.bf16.msra.mxu0 0
  %1796 = vmatprep.subr.bf16.mxu0 0
  %1797 = vmatpush1.bf16.msra.mxu0 0
  %1798 = vmatprep.subr.bf16.mxu0 0
  %1799 = vmatpush1.bf16.msra.mxu0 0
  %1800 = vmatprep.subr.bf16.mxu0 0
  %1801 = vmatpush1.bf16.msra.mxu0 0
  %1802 = vmatprep.mubr.bf16.mxu0 0
  %1803 = vmatmul.mubr.bf16.gmra.mrb[0].mxu0 %v1682
  %v1804 = vpop.f32.mrb[0].mxu0
  %v1805 = vadd.f32 0.0, %v1804
  %v1806 = vpop.f32.mrb[0].mxu0
  %v1807 = vpop.f32.mrb[0].mxu0
  %v1808 = vpop.f32.mrb[0].mxu0
  %1809 = vdwg.mxu0
  %1811 = vrot.lane.b32.xlu0 %v1805, 32
  %v1812 = vpop.permute.xlu0 %1811
  %v1814 = vadd.f32 %v1678, %v1812
  %1815 = vmatprep.subr.bf16.mxu0 0
  %1816 = vmatpush1.bf16.msra.mxu0 %v176
  %1817 = vmatprep.subr.bf16.mxu0 0
  %1818 = vmatpush1.bf16.msra.mxu0 0
  %1819 = vmatprep.subr.bf16.mxu0 0
  %1820 = vmatpush1.bf16.msra.mxu0 0
  %1821 = vmatprep.subr.bf16.mxu0 0
  %1822 = vmatpush1.bf16.msra.mxu0 0
  %1823 = vmatprep.subr.bf16.mxu0 0
  %1824 = vmatpush1.bf16.msra.mxu0 0
  %1825 = vmatprep.subr.bf16.mxu0 0
  %1826 = vmatpush1.bf16.msra.mxu0 0
  %1827 = vmatprep.subr.bf16.mxu0 0
  %1828 = vmatpush1.bf16.msra.mxu0 0
  %1829 = vmatprep.subr.bf16.mxu0 0
  %1830 = vmatpush1.bf16.msra.mxu0 0
  %1831 = vmatprep.subr.bf16.mxu0 0
  %1832 = vmatpush1.bf16.msra.mxu0 0
  %1833 = vmatprep.subr.bf16.mxu0 0
  %1834 = vmatpush1.bf16.msra.mxu0 0
  %1835 = vmatprep.subr.bf16.mxu0 0
  %1836 = vmatpush1.bf16.msra.mxu0 0
  %1837 = vmatprep.subr.bf16.mxu0 0
  %1838 = vmatpush1.bf16.msra.mxu0 0
  %1839 = vmatprep.subr.bf16.mxu0 0
  %1840 = vmatpush1.bf16.msra.mxu0 0
  %1841 = vmatprep.subr.bf16.mxu0 0
  %1842 = vmatpush1.bf16.msra.mxu0 0
  %1843 = vmatprep.subr.bf16.mxu0 0
  %1844 = vmatpush1.bf16.msra.mxu0 0
  %1845 = vmatprep.subr.bf16.mxu0 0
  %1846 = vmatpush1.bf16.msra.mxu0 0
  %1847 = vmatprep.mubr.bf16.mxu0 0
  %1848 = vmatmul.mubr.bf16.gmra.mrb[0].mxu0 %v1682
  %v1849 = vpop.f32.mrb[0].mxu0
  %v1850 = vadd.f32 0.0, %v1849
  %v1851 = vpop.f32.mrb[0].mxu0
  %v1852 = vpop.f32.mrb[0].mxu0
  %v1853 = vpop.f32.mrb[0].mxu0
  %1854 = vdwg.mxu0
  %1856 = vrot.lane.b32.xlu0 %v1850, 48
  %v1857 = vpop.permute.xlu0 %1856
  %v1859 = vadd.f32 %v1678, %v1857
  %v1860 = vmul.f32 %v1724, 0.5
  %v1861 = vtanh.pop %v1860
  %v1862 = vadd.f32 %v1861, 1.0
  %v1863 = vmul.f32 %v1862, 0.5
  %v1864 = vmul.f32 %v1769, 0.5
  %v1865 = vtanh.pop %v1864
  %v1866 = vadd.f32 %v1865, 1.0
  %v1867 = vmul.f32 %v1866, 0.5
  %v1868 = vtanh.pop %v1814
  %v1869 = vmul.f32 %v1859, 0.5
  %v1870 = vtanh.pop %v1869
  %v1871 = vadd.f32 %v1870, 1.0
  %v1872 = vmul.f32 %v1871, 0.5
  %v1873 = vld [vmem:[#allocation3] sm:$0xf]
  %1875 = vrot.lane.b32.xlu0 %v1873, 16
  %v1876 = vpop.permute.xlu0 %1875
  %v1878 = vmul.f32 %v1867, %v1876
  %1880 = vrot.lane.b32.xlu0 %v1868, 96
  %v1881 = vpop.permute.xlu0 %1880
  %v1883 = vmul.f32 %v1863, %v1881
  %1885 = vrot.lane.b32.xlu0 %v1883, 16
  %v1886 = vpop.permute.xlu0 %1885
  %v1888 = vadd.f32 %v1878, %v1886
  %v1889 = vtanh.pop %v1888
  %1891 = vrot.lane.b32.xlu0 %v1889, 32
  %v1892 = vpop.permute.xlu0 %1891
  %v1894 = vmul.f32 %v1872, %v1892
  %1896 = vrot.lane.b32.xlu0 %v1888, 112
  %v1897 = vpop.permute.xlu0 %1896
  %1899 = vst.msk [vmem:[#allocation3] sm:$0xf] %vm262, %v1897
  %1901 = vrot.lane.b32.xlu0 %v1894, 80
  %v1902 = vpop.permute.xlu0 %1901
  %1904 = vst.msk [vmem:[#allocation2] sm:$0xf] %vm262, %v1902
  %s1905 = scalar_lea.vmem %s1, 28
  %v1906 = vld [vmem:[%s1905] sm:$0xf]
  %v1907 = vadd.f32 %v1906, %v1902
  %s1908 = scalar_lea.vmem %s3, 28
  %1909 = vst.msk [vmem:[%s1908] sm:$0xf] %vm262, %v1907
  // Predicated region
  $region18: #{model_forward.44} parent=0 // pred_check
    _
  $region19: #{model_forward.44} parent=0 // pred_check_branch
    %1911 = sbr.rel (0) target = $region21
  $region20: #{model_forward.44} parent=0 // pred_region
    _
  $region21: #{model_forward.44} parent=0 // pred_fallthru
    _
  // Predicated region
  $region22: #{model_forward.44} parent=0 // pred_check
    _
  $region23: #{model_forward.44} parent=0 // pred_check_branch
    %1913 = sbr.rel (0) target = $region25
  $region24: #{model_forward.44} parent=0 // pred_region
    _
  $region25: #{model_forward.44} parent=0 // pred_fallthru
    _

</llo_original>
